<compile_context>
chip_gen: v7x
topology: tpu7x:2x2x1
jax: 0.10.0
libtpu: 0.0.40
codegen_flags: <defaults>
</compile_context>

<pallas_src>
import functools

import jax
import jax.numpy as jnp
from jax.experimental import pallas as pl
from jax.experimental.pallas import tpu as pltpu


def cross_attention_kernel(q_ref, kv_ref, wq_ref, wk_ref, wv_ref, wp_ref, bp_ref,
                           o_ref, *, num_heads, scale):
    H = num_heads
    bt, N, dim = q_ref.shape
    NK = kv_ref.shape[1]
    C = wq_ref.shape[1]
    hd = C // H
    dt = q_ref.dtype                       # MXU operand dtype (bf16 stays bf16)

    # ---- lane-dense QKV projections ---------------------------------------
    # Flatten the batch tile into the matmul M dimension: one (bt*N, dim) @
    # (dim, C) matmul per projection (full-width contraction, no head padding).
    q2 = q_ref[...].reshape(bt * N, dim)
    kv2 = kv_ref[...].reshape(bt * NK, dim)

    wq = wq_ref[...]                       # (dim, C), already W.T, compute dtype
    wk = wk_ref[...]
    wv = wv_ref[...]
    wp = wp_ref[...]                       # (C, C),   already W.T
    bp = bp_ref[...].astype(jnp.float32)   # (1, C)

    Qf = jnp.dot(q2, wq, preferred_element_type=jnp.float32)     # (bt*N,  C)
    Kf = jnp.dot(kv2, wk, preferred_element_type=jnp.float32)    # (bt*NK, C)
    Vf = jnp.dot(kv2, wv, preferred_element_type=jnp.float32)    # (bt*NK, C)

    Q3 = Qf.astype(dt).reshape(bt, N, C)
    K3 = Kf.astype(dt).reshape(bt, NK, C)
    V3 = Vf.astype(dt).reshape(bt, NK, C)

    # ---- per-head attention as batch-tile-batched matmuls ------------------
    head_outs = []
    for h in range(H):                     # H is small (6 in AnchorTransformer)
        lo = h * hd
        Qh = Q3[:, :, lo:lo + hd]          # (bt, N,  hd)  static lane slice
        Kh = K3[:, :, lo:lo + hd]          # (bt, NK, hd)
        Vh = V3[:, :, lo:lo + hd]

        S = jnp.einsum('bne,bke->bnk', Qh, Kh,
                       preferred_element_type=jnp.float32) * scale   # (bt, N, NK)
        S = S - jnp.max(S, axis=-1, keepdims=True)
        P = jnp.exp(S)
        denom = jnp.sum(P, axis=-1, keepdims=True)
        # EUP approximate reciprocal + one Newton step (keeps f32 accuracy,
        # avoids the VPU divide).
        r = pl.reciprocal(denom, approx=True)
        r = r * (2.0 - denom * r)
        P = P * r
        # attn_drop is identity (p=0.0, eval mode)
        Oh = jnp.einsum('bnk,bke->bne', P.astype(dt), Vh,
                        preferred_element_type=jnp.float32)           # (bt, N, hd)
        head_outs.append(Oh.astype(dt))

    # ---- output projection with the head-concat folded into one contraction
    O = jnp.concatenate(head_outs, axis=-1).reshape(bt * N, C)        # (bt*N, C)
    out = jnp.dot(O, wp, preferred_element_type=jnp.float32) + bp     # (bt*N, C)
    # proj_drop is identity (p=0.0, eval mode)
    o_ref[...] = out.reshape(bt, N, C).astype(o_ref.dtype)


def prepare_cross_attention_params(params, compute_dtype=jnp.float32):
    """One-time (model-load) weight re-layout + dtype cast — NOT per call.

    PyTorch nn.Linear stores W as (out, in); y = x @ W.T (+ b), so the kernel
    consumes W.T in the compute dtype (bf16 weights halve DMA/VMEM on bf16
    models).  The bias stays f32 (added onto the f32 accumulator).
    """
    wq, wk, wv, wp, bp = params
    wq_t = jnp.asarray(wq).T.astype(compute_dtype)   # (dim, C)
    wk_t = jnp.asarray(wk).T.astype(compute_dtype)   # (dim, C)
    wv_t = jnp.asarray(wv).T.astype(compute_dtype)   # (dim, C)
    wp_t = jnp.asarray(wp).T.astype(compute_dtype)   # (C, C)
    bp2 = jnp.asarray(bp).reshape(1, -1).astype(jnp.float32)
    return wq_t, wk_t, wv_t, wp_t, bp2


def _pick_batch_tile(B, N, NK, dim, C, elem_bytes, target_step_bytes=2 << 20):
    """Largest divisor of B whose double-buffered per-step traffic fits the
    target, while keeping >= 2 grid steps (v7x has 2 TensorCores sharding the
    'parallel' batch axis)."""
    best = 1
    for bt in range(1, B + 1):
        if B % bt:
            continue
        if B >= 2 and B // bt < 2:
            continue                        # don't swallow the whole batch
        step_bytes = 2 * bt * (N * dim + NK * dim + N * C) * elem_bytes
        if step_bytes <= target_step_bytes:
            best = bt
    return best


def _estimate_vmem_bytes(bt, N, NK, dim, C, elem_bytes):
    """Explicit scoped-VMEM budget (defaults are only 16/32 MiB)."""
    io = 2 * bt * (N * dim + NK * dim + N * C) * elem_bytes          # dbl-buffered blocks
    w = (3 * dim * C + C * C) * elem_bytes + 4 * C                   # single-buffered weights
    inter = 4 * (3 * bt * N * C + 2 * bt * NK * C                    # f32 Q/K/V (+ casts)
                 + 2 * bt * N * NK                                   # S / P (live head)
                 + 2 * bt * N * C)                                   # concat O + out
    total = 2 * (io + w + inter)                                     # 2x headroom
    return int(min(max(total, 8 << 20), 64 << 20))                   # 64 MiB cap (v7x safe)


def _build_cross_attention_call(B, N, NK, dim, C, H, out_dtype, *, scale,
                                batch_tile, vmem_limit_bytes,
                                single_buffer_weights):
    kernel = functools.partial(cross_attention_kernel, num_heads=H, scale=scale)

    def wspec(shape):
        # Weight/bias index_map is constant across the grid -> single-buffer to
        # avoid double-buffering ~(3*dim*C + C*C) elements of VMEM.
        if single_buffer_weights:
            return pl.BlockSpec(shape, lambda b: (0,) * len(shape),
                                pipeline_mode=pl.Buffered(1))
        return pl.BlockSpec(shape, lambda b: (0,) * len(shape))

    return pl.pallas_call(
        kernel,
        out_shape=jax.ShapeDtypeStruct((B, N, C), out_dtype),
        grid_spec=pltpu.PrefetchScalarGridSpec(
            num_scalar_prefetch=0,
            grid=(B // batch_tile,),
            in_specs=[
                pl.BlockSpec((batch_tile, N, dim), lambda b: (b, 0, 0)),   # q
                pl.BlockSpec((batch_tile, NK, dim), lambda b: (b, 0, 0)),  # v (= k src)
                wspec((dim, C)),    # Wq.T
                wspec((dim, C)),    # Wk.T
                wspec((dim, C)),    # Wv.T
                wspec((C, C)),      # Wproj.T
                wspec((1, C)),      # bproj
            ],
            out_specs=pl.BlockSpec((batch_tile, N, C), lambda b: (b, 0, 0)),
        ),
        compiler_params=pltpu.CompilerParams(
            dimension_semantics=("parallel",),
            vmem_limit_bytes=vmem_limit_bytes),
    )


def cross_attention(q, v, prepared_params, *, num_heads, qk_scale=None,
                    batch_tile=None, vmem_limit_bytes=None):
    """CrossAttention.forward (eval mode; k source = v, qkv_bias=False)."""
    B, N, dim = q.shape
    Bv, NK, dim_v = v.shape
    assert Bv == B and dim_v == dim, "q/v batch or feature dims mismatch"

    wq_t, wk_t, wv_t, wp_t, bp2 = prepared_params
    assert wq_t.shape[0] == dim, "prepared Wq must be (dim, out_dim)"
    C = wq_t.shape[1]
    assert C % num_heads == 0, "out_dim must be divisible by num_heads"
    hd = C // num_heads
    scale = qk_scale if qk_scale is not None else hd ** (-0.5)

    elem_bytes = jnp.dtype(q.dtype).itemsize
    if batch_tile is None:
        batch_tile = _pick_batch_tile(B, N, NK, dim, C, elem_bytes)
    assert B % batch_tile == 0, "batch_tile must divide B"
    if vmem_limit_bytes is None:
        vmem_limit_bytes = _estimate_vmem_bytes(batch_tile, N, NK, dim, C,
                                                elem_bytes)

    args = (q, v, wq_t, wk_t, wv_t, wp_t, bp2)
    try:
        call = _build_cross_attention_call(
            B, N, NK, dim, C, num_heads, q.dtype, scale=scale,
            batch_tile=batch_tile, vmem_limit_bytes=vmem_limit_bytes,
            single_buffer_weights=True)
        return call(*args)
    except Exception:
        # Fallback for jax builds where pipeline_mode=pl.Buffered(1) is not
        # supported on BlockSpec: default double-buffered weight blocks.
        call = _build_cross_attention_call(
            B, N, NK, dim, C, num_heads, q.dtype, scale=scale,
            batch_tile=batch_tile, vmem_limit_bytes=vmem_limit_bytes,
            single_buffer_weights=False)
        return call(*args)


def reference(q, v, params, *, num_heads, qk_scale=None):
    """Pure-JAX reference mirroring the PyTorch forward (eval mode)."""
    wq, wk, wv, wp, bp = params
    B, N, _ = q.shape
    NK = v.shape[1]
    C = wq.shape[0]
    hd = C // num_heads
    scale = qk_scale if qk_scale is not None else hd ** (-0.5)

    Q = (q.astype(jnp.float32) @ wq.T).reshape(B, N, num_heads, hd).transpose(0, 2, 1, 3)
    K = (v.astype(jnp.float32) @ wk.T).reshape(B, NK, num_heads, hd).transpose(0, 2, 1, 3)
    V = (v.astype(jnp.float32) @ wv.T).reshape(B, NK, num_heads, hd).transpose(0, 2, 1, 3)

    attn = jnp.einsum("bhnd,bhkd->bhnk", Q, K) * scale
    attn = jax.nn.softmax(attn, axis=-1)
    x = jnp.einsum("bhnk,bhkd->bhnd", attn, V).transpose(0, 2, 1, 3).reshape(B, N, C)
    return x @ wp.T + bp


if __name__ == "__main__":
    # Small shapes consistent with the module's forward.
    B, N, NK = 2, 8, 16
    dim, out_dim, num_heads = 32, 32, 4

    key = jax.random.PRNGKey(0)
    kq, kv_, k1, k2, k3, k4, k5 = jax.random.split(key, 7)

    q = jax.random.normal(kq, (B, N, dim), dtype=jnp.float32)
    v = jax.random.normal(kv_, (B, NK, dim), dtype=jnp.float32)

    # Deterministic parameter init (PyTorch nn.Linear weight shape: (out, in)).
    wq = jax.random.normal(k1, (out_dim, dim), dtype=jnp.float32) * 0.1
    wk = jax.random.normal(k2, (out_dim, dim), dtype=jnp.float32) * 0.1
    wv = jax.random.normal(k3, (out_dim, dim), dtype=jnp.float32) * 0.1
    wp = jax.random.normal(k4, (out_dim, out_dim), dtype=jnp.float32) * 0.1
    bp = jax.random.normal(k5, (out_dim,), dtype=jnp.float32) * 0.1
    params = (wq, wk, wv, wp, bp)

    # Weight re-layout + cast done ONCE (model-load time), outside the kernel call.
    prepared = prepare_cross_attention_params(params, compute_dtype=q.dtype)

    out = cross_attention(q, v, prepared, num_heads=num_heads)
    out = jax.block_until_ready(out)

    ref = reference(q, v, params, num_heads=num_heads)
    assert out.shape == (B, N, out_dim)
    assert jnp.allclose(out, ref, atol=5e-4, rtol=5e-4), "mismatch vs reference"

    print("KERNEL_OK")
</pallas_src>

<mosaic_0001>
module attributes {stable_mosaic.version = 11 : i64} {
  func.func @cross_attention_kernel(%arg0: i32, %arg1: memref<1x8x32xf32, #tpu.memory_space<vmem>>, %arg2: memref<1x16x32xf32, #tpu.memory_space<vmem>>, %arg3: memref<32x32xf32, #tpu.memory_space<vmem>>, %arg4: memref<32x32xf32, #tpu.memory_space<vmem>>, %arg5: memref<32x32xf32, #tpu.memory_space<vmem>>, %arg6: memref<32x32xf32, #tpu.memory_space<vmem>>, %arg7: memref<1x32xf32, #tpu.memory_space<vmem>>, %arg8: memref<1x8x32xf32, #tpu.memory_space<vmem>>) attributes {dimension_semantics = [#tpu.dimension_semantics<parallel>], iteration_bounds = array<i64: 2>, scalar_prefetch = 0 : i64, scratch_operands = 0 : i64, tpu.core_type = #tpu.core_type<tc>, window_params = [{transform_indices = @transform_0, window_bounds = array<i64: 1, 8, 32>}, {transform_indices = @transform_1, window_bounds = array<i64: 1, 16, 32>}, {pipeline_mode = #tpu.pipeline_mode<synchronous>, transform_indices = @transform_2, window_bounds = array<i64: 32, 32>}, {pipeline_mode = #tpu.pipeline_mode<synchronous>, transform_indices = @transform_3, window_bounds = array<i64: 32, 32>}, {pipeline_mode = #tpu.pipeline_mode<synchronous>, transform_indices = @transform_4, window_bounds = array<i64: 32, 32>}, {pipeline_mode = #tpu.pipeline_mode<synchronous>, transform_indices = @transform_5, window_bounds = array<i64: 32, 32>}, {pipeline_mode = #tpu.pipeline_mode<synchronous>, transform_indices = @transform_6, window_bounds = array<i64: 1, 32>}, {transform_indices = @transform_7, window_bounds = array<i64: 1, 8, 32>}]} {
    %c0 = arith.constant 0 : index
    %c0_0 = arith.constant 0 : index
    %c0_1 = arith.constant 0 : index
    %0 = vector.load %arg1[%c0, %c0_0, %c0_1] : memref<1x8x32xf32, #tpu.memory_space<vmem>>, vector<1x8x32xf32>
    %1 = vector.shape_cast %0 : vector<1x8x32xf32> to vector<8x32xf32>
    %c0_2 = arith.constant 0 : index
    %c0_3 = arith.constant 0 : index
    %c0_4 = arith.constant 0 : index
    %2 = vector.load %arg2[%c0_2, %c0_3, %c0_4] : memref<1x16x32xf32, #tpu.memory_space<vmem>>, vector<1x16x32xf32>
    %3 = vector.shape_cast %2 : vector<1x16x32xf32> to vector<16x32xf32>
    %c0_5 = arith.constant 0 : index
    %c0_6 = arith.constant 0 : index
    %4 = vector.load %arg3[%c0_5, %c0_6] : memref<32x32xf32, #tpu.memory_space<vmem>>, vector<32x32xf32>
    %c0_7 = arith.constant 0 : index
    %c0_8 = arith.constant 0 : index
    %5 = vector.load %arg4[%c0_7, %c0_8] : memref<32x32xf32, #tpu.memory_space<vmem>>, vector<32x32xf32>
    %c0_9 = arith.constant 0 : index
    %c0_10 = arith.constant 0 : index
    %6 = vector.load %arg5[%c0_9, %c0_10] : memref<32x32xf32, #tpu.memory_space<vmem>>, vector<32x32xf32>
    %c0_11 = arith.constant 0 : index
    %c0_12 = arith.constant 0 : index
    %7 = vector.load %arg6[%c0_11, %c0_12] : memref<32x32xf32, #tpu.memory_space<vmem>>, vector<32x32xf32>
    %c0_13 = arith.constant 0 : index
    %c0_14 = arith.constant 0 : index
    %8 = vector.load %arg7[%c0_13, %c0_14] : memref<1x32xf32, #tpu.memory_space<vmem>>, vector<1x32xf32>
    %cst = arith.constant dense<0.000000e+00> : vector<8x32xf32>
    %9 = tpu.matmul %1, %4, %cst {dimension_numbers = #tpu.dot_dimension_numbers<[1], [0], [0], [1], [0, 0, 1, 1], [], []>} : vector<8x32xf32>, vector<32x32xf32>, vector<8x32xf32> -> vector<8x32xf32>
    %cst_15 = arith.constant dense<0.000000e+00> : vector<16x32xf32>
    %10 = tpu.matmul %3, %5, %cst_15 {dimension_numbers = #tpu.dot_dimension_numbers<[1], [0], [0], [1], [0, 0, 1, 1], [], []>} : vector<16x32xf32>, vector<32x32xf32>, vector<16x32xf32> -> vector<16x32xf32>
    %cst_16 = arith.constant dense<0.000000e+00> : vector<16x32xf32>
    %11 = tpu.matmul %3, %6, %cst_16 {dimension_numbers = #tpu.dot_dimension_numbers<[1], [0], [0], [1], [0, 0, 1, 1], [], []>} : vector<16x32xf32>, vector<32x32xf32>, vector<16x32xf32> -> vector<16x32xf32>
    %12 = vector.shape_cast %9 : vector<8x32xf32> to vector<1x8x32xf32>
    %13 = vector.shape_cast %10 : vector<16x32xf32> to vector<1x16x32xf32>
    %14 = vector.shape_cast %11 : vector<16x32xf32> to vector<1x16x32xf32>
    %15 = vector.extract_strided_slice %12 {offsets = [0, 0, 0], sizes = [1, 8, 8], strides = [1, 1, 1]} : vector<1x8x32xf32> to vector<1x8x8xf32>
    %16 = vector.extract_strided_slice %13 {offsets = [0, 0, 0], sizes = [1, 16, 8], strides = [1, 1, 1]} : vector<1x16x32xf32> to vector<1x16x8xf32>
    %17 = vector.extract_strided_slice %14 {offsets = [0, 0, 0], sizes = [1, 16, 8], strides = [1, 1, 1]} : vector<1x16x32xf32> to vector<1x16x8xf32>
    "tpu.trace_start"() <{level = 10 : i32, message = "bne,bke->bnk"}> : () -> ()
    %cst_17 = arith.constant dense<0.000000e+00> : vector<1x8x16xf32>
    %18 = tpu.matmul %15, %16, %cst_17 {dimension_numbers = #tpu.dot_dimension_numbers<[2], [2], [1], [1], [0, 0, 0, 1, 1, 1], [0], [0]>} : vector<1x8x8xf32>, vector<1x16x8xf32>, vector<1x8x16xf32> -> vector<1x8x16xf32>
    "tpu.trace_stop"() : () -> ()
    %cst_18 = arith.constant 0.353553385 : f32
    %19 = vector.broadcast %cst_18 : f32 to vector<1x8x16xf32>
    %20 = arith.mulf %18, %19 : vector<1x8x16xf32>
    %cst_19 = arith.constant dense<0xFF800000> : vector<1x8xf32>
    %21 = vector.multi_reduction <maximumf>, %20, %cst_19 [2] : vector<1x8x16xf32> to vector<1x8xf32>
    %22 = vector.shape_cast %21 : vector<1x8xf32> to vector<1x8x1xf32>
    %23 = vector.broadcast %22 : vector<1x8x1xf32> to vector<1x8x16xf32>
    %24 = arith.subf %20, %23 : vector<1x8x16xf32>
    %25 = math.exp %24 : vector<1x8x16xf32>
    %cst_20 = arith.constant dense<0.000000e+00> : vector<1x8xf32>
    %26 = vector.multi_reduction <add>, %25, %cst_20 [2] : vector<1x8x16xf32> to vector<1x8xf32>
    %27 = vector.shape_cast %26 : vector<1x8xf32> to vector<1x8x1xf32>
    %28 = tpu.reciprocal %27 {approx = true} : vector<1x8x1xf32> -> vector<1x8x1xf32>
    %29 = arith.mulf %27, %28 : vector<1x8x1xf32>
    %cst_21 = arith.constant 2.000000e+00 : f32
    %30 = vector.broadcast %cst_21 : f32 to vector<1x8x1xf32>
    %31 = arith.subf %30, %29 : vector<1x8x1xf32>
    %32 = arith.mulf %28, %31 : vector<1x8x1xf32>
    %33 = vector.broadcast %32 : vector<1x8x1xf32> to vector<1x8x16xf32>
    %34 = arith.mulf %25, %33 : vector<1x8x16xf32>
    "tpu.trace_start"() <{level = 10 : i32, message = "bnk,bke->bne"}> : () -> ()
    %cst_22 = arith.constant dense<0.000000e+00> : vector<1x8x8xf32>
    %35 = tpu.matmul %34, %17, %cst_22 {dimension_numbers = #tpu.dot_dimension_numbers<[2], [1], [1], [2], [0, 0, 0, 1, 1, 2], [0], [0]>} : vector<1x8x16xf32>, vector<1x16x8xf32>, vector<1x8x8xf32> -> vector<1x8x8xf32>
    "tpu.trace_stop"() : () -> ()
    %36 = vector.extract_strided_slice %12 {offsets = [0, 0, 8], sizes = [1, 8, 8], strides = [1, 1, 1]} : vector<1x8x32xf32> to vector<1x8x8xf32>
    %37 = vector.extract_strided_slice %13 {offsets = [0, 0, 8], sizes = [1, 16, 8], strides = [1, 1, 1]} : vector<1x16x32xf32> to vector<1x16x8xf32>
    %38 = vector.extract_strided_slice %14 {offsets = [0, 0, 8], sizes = [1, 16, 8], strides = [1, 1, 1]} : vector<1x16x32xf32> to vector<1x16x8xf32>
    "tpu.trace_start"() <{level = 10 : i32, message = "bne,bke->bnk"}> : () -> ()
    %cst_23 = arith.constant dense<0.000000e+00> : vector<1x8x16xf32>
    %39 = tpu.matmul %36, %37, %cst_23 {dimension_numbers = #tpu.dot_dimension_numbers<[2], [2], [1], [1], [0, 0, 0, 1, 1, 1], [0], [0]>} : vector<1x8x8xf32>, vector<1x16x8xf32>, vector<1x8x16xf32> -> vector<1x8x16xf32>
    "tpu.trace_stop"() : () -> ()
    %cst_24 = arith.constant 0.353553385 : f32
    %40 = vector.broadcast %cst_24 : f32 to vector<1x8x16xf32>
    %41 = arith.mulf %39, %40 : vector<1x8x16xf32>
    %cst_25 = arith.constant dense<0xFF800000> : vector<1x8xf32>
    %42 = vector.multi_reduction <maximumf>, %41, %cst_25 [2] : vector<1x8x16xf32> to vector<1x8xf32>
    %43 = vector.shape_cast %42 : vector<1x8xf32> to vector<1x8x1xf32>
    %44 = vector.broadcast %43 : vector<1x8x1xf32> to vector<1x8x16xf32>
    %45 = arith.subf %41, %44 : vector<1x8x16xf32>
    %46 = math.exp %45 : vector<1x8x16xf32>
    %cst_26 = arith.constant dense<0.000000e+00> : vector<1x8xf32>
    %47 = vector.multi_reduction <add>, %46, %cst_26 [2] : vector<1x8x16xf32> to vector<1x8xf32>
    %48 = vector.shape_cast %47 : vector<1x8xf32> to vector<1x8x1xf32>
    %49 = tpu.reciprocal %48 {approx = true} : vector<1x8x1xf32> -> vector<1x8x1xf32>
    %50 = arith.mulf %48, %49 : vector<1x8x1xf32>
    %cst_27 = arith.constant 2.000000e+00 : f32
    %51 = vector.broadcast %cst_27 : f32 to vector<1x8x1xf32>
    %52 = arith.subf %51, %50 : vector<1x8x1xf32>
    %53 = arith.mulf %49, %52 : vector<1x8x1xf32>
    %54 = vector.broadcast %53 : vector<1x8x1xf32> to vector<1x8x16xf32>
    %55 = arith.mulf %46, %54 : vector<1x8x16xf32>
    "tpu.trace_start"() <{level = 10 : i32, message = "bnk,bke->bne"}> : () -> ()
    %cst_28 = arith.constant dense<0.000000e+00> : vector<1x8x8xf32>
    %56 = tpu.matmul %55, %38, %cst_28 {dimension_numbers = #tpu.dot_dimension_numbers<[2], [1], [1], [2], [0, 0, 0, 1, 1, 2], [0], [0]>} : vector<1x8x16xf32>, vector<1x16x8xf32>, vector<1x8x8xf32> -> vector<1x8x8xf32>
    "tpu.trace_stop"() : () -> ()
    %57 = vector.extract_strided_slice %12 {offsets = [0, 0, 16], sizes = [1, 8, 8], strides = [1, 1, 1]} : vector<1x8x32xf32> to vector<1x8x8xf32>
    %58 = vector.extract_strided_slice %13 {offsets = [0, 0, 16], sizes = [1, 16, 8], strides = [1, 1, 1]} : vector<1x16x32xf32> to vector<1x16x8xf32>
    %59 = vector.extract_strided_slice %14 {offsets = [0, 0, 16], sizes = [1, 16, 8], strides = [1, 1, 1]} : vector<1x16x32xf32> to vector<1x16x8xf32>
    "tpu.trace_start"() <{level = 10 : i32, message = "bne,bke->bnk"}> : () -> ()
    %cst_29 = arith.constant dense<0.000000e+00> : vector<1x8x16xf32>
    %60 = tpu.matmul %57, %58, %cst_29 {dimension_numbers = #tpu.dot_dimension_numbers<[2], [2], [1], [1], [0, 0, 0, 1, 1, 1], [0], [0]>} : vector<1x8x8xf32>, vector<1x16x8xf32>, vector<1x8x16xf32> -> vector<1x8x16xf32>
    "tpu.trace_stop"() : () -> ()
    %cst_30 = arith.constant 0.353553385 : f32
    %61 = vector.broadcast %cst_30 : f32 to vector<1x8x16xf32>
    %62 = arith.mulf %60, %61 : vector<1x8x16xf32>
    %cst_31 = arith.constant dense<0xFF800000> : vector<1x8xf32>
    %63 = vector.multi_reduction <maximumf>, %62, %cst_31 [2] : vector<1x8x16xf32> to vector<1x8xf32>
    %64 = vector.shape_cast %63 : vector<1x8xf32> to vector<1x8x1xf32>
    %65 = vector.broadcast %64 : vector<1x8x1xf32> to vector<1x8x16xf32>
    %66 = arith.subf %62, %65 : vector<1x8x16xf32>
    %67 = math.exp %66 : vector<1x8x16xf32>
    %cst_32 = arith.constant dense<0.000000e+00> : vector<1x8xf32>
    %68 = vector.multi_reduction <add>, %67, %cst_32 [2] : vector<1x8x16xf32> to vector<1x8xf32>
    %69 = vector.shape_cast %68 : vector<1x8xf32> to vector<1x8x1xf32>
    %70 = tpu.reciprocal %69 {approx = true} : vector<1x8x1xf32> -> vector<1x8x1xf32>
    %71 = arith.mulf %69, %70 : vector<1x8x1xf32>
    %cst_33 = arith.constant 2.000000e+00 : f32
    %72 = vector.broadcast %cst_33 : f32 to vector<1x8x1xf32>
    %73 = arith.subf %72, %71 : vector<1x8x1xf32>
    %74 = arith.mulf %70, %73 : vector<1x8x1xf32>
    %75 = vector.broadcast %74 : vector<1x8x1xf32> to vector<1x8x16xf32>
    %76 = arith.mulf %67, %75 : vector<1x8x16xf32>
    "tpu.trace_start"() <{level = 10 : i32, message = "bnk,bke->bne"}> : () -> ()
    %cst_34 = arith.constant dense<0.000000e+00> : vector<1x8x8xf32>
    %77 = tpu.matmul %76, %59, %cst_34 {dimension_numbers = #tpu.dot_dimension_numbers<[2], [1], [1], [2], [0, 0, 0, 1, 1, 2], [0], [0]>} : vector<1x8x16xf32>, vector<1x16x8xf32>, vector<1x8x8xf32> -> vector<1x8x8xf32>
    "tpu.trace_stop"() : () -> ()
    %78 = vector.extract_strided_slice %12 {offsets = [0, 0, 24], sizes = [1, 8, 8], strides = [1, 1, 1]} : vector<1x8x32xf32> to vector<1x8x8xf32>
    %79 = vector.extract_strided_slice %13 {offsets = [0, 0, 24], sizes = [1, 16, 8], strides = [1, 1, 1]} : vector<1x16x32xf32> to vector<1x16x8xf32>
    %80 = vector.extract_strided_slice %14 {offsets = [0, 0, 24], sizes = [1, 16, 8], strides = [1, 1, 1]} : vector<1x16x32xf32> to vector<1x16x8xf32>
    "tpu.trace_start"() <{level = 10 : i32, message = "bne,bke->bnk"}> : () -> ()
    %cst_35 = arith.constant dense<0.000000e+00> : vector<1x8x16xf32>
    %81 = tpu.matmul %78, %79, %cst_35 {dimension_numbers = #tpu.dot_dimension_numbers<[2], [2], [1], [1], [0, 0, 0, 1, 1, 1], [0], [0]>} : vector<1x8x8xf32>, vector<1x16x8xf32>, vector<1x8x16xf32> -> vector<1x8x16xf32>
    "tpu.trace_stop"() : () -> ()
    %cst_36 = arith.constant 0.353553385 : f32
    %82 = vector.broadcast %cst_36 : f32 to vector<1x8x16xf32>
    %83 = arith.mulf %81, %82 : vector<1x8x16xf32>
    %cst_37 = arith.constant dense<0xFF800000> : vector<1x8xf32>
    %84 = vector.multi_reduction <maximumf>, %83, %cst_37 [2] : vector<1x8x16xf32> to vector<1x8xf32>
    %85 = vector.shape_cast %84 : vector<1x8xf32> to vector<1x8x1xf32>
    %86 = vector.broadcast %85 : vector<1x8x1xf32> to vector<1x8x16xf32>
    %87 = arith.subf %83, %86 : vector<1x8x16xf32>
    %88 = math.exp %87 : vector<1x8x16xf32>
    %cst_38 = arith.constant dense<0.000000e+00> : vector<1x8xf32>
    %89 = vector.multi_reduction <add>, %88, %cst_38 [2] : vector<1x8x16xf32> to vector<1x8xf32>
    %90 = vector.shape_cast %89 : vector<1x8xf32> to vector<1x8x1xf32>
    %91 = tpu.reciprocal %90 {approx = true} : vector<1x8x1xf32> -> vector<1x8x1xf32>
    %92 = arith.mulf %90, %91 : vector<1x8x1xf32>
    %cst_39 = arith.constant 2.000000e+00 : f32
    %93 = vector.broadcast %cst_39 : f32 to vector<1x8x1xf32>
    %94 = arith.subf %93, %92 : vector<1x8x1xf32>
    %95 = arith.mulf %91, %94 : vector<1x8x1xf32>
    %96 = vector.broadcast %95 : vector<1x8x1xf32> to vector<1x8x16xf32>
    %97 = arith.mulf %88, %96 : vector<1x8x16xf32>
    "tpu.trace_start"() <{level = 10 : i32, message = "bnk,bke->bne"}> : () -> ()
    %cst_40 = arith.constant dense<0.000000e+00> : vector<1x8x8xf32>
    %98 = tpu.matmul %97, %80, %cst_40 {dimension_numbers = #tpu.dot_dimension_numbers<[2], [1], [1], [2], [0, 0, 0, 1, 1, 2], [0], [0]>} : vector<1x8x16xf32>, vector<1x16x8xf32>, vector<1x8x8xf32> -> vector<1x8x8xf32>
    "tpu.trace_stop"() : () -> ()
    %99 = tpu.concatenate %35, %56, %77, %98 in 2 : vector<1x8x8xf32>, vector<1x8x8xf32>, vector<1x8x8xf32>, vector<1x8x8xf32> -> vector<1x8x32xf32>
    %100 = vector.shape_cast %99 : vector<1x8x32xf32> to vector<8x32xf32>
    %cst_41 = arith.constant dense<0.000000e+00> : vector<8x32xf32>
    %101 = tpu.matmul %100, %7, %cst_41 {dimension_numbers = #tpu.dot_dimension_numbers<[1], [0], [0], [1], [0, 0, 1, 1], [], []>} : vector<8x32xf32>, vector<32x32xf32>, vector<8x32xf32> -> vector<8x32xf32>
    %102 = vector.broadcast %8 : vector<1x32xf32> to vector<8x32xf32>
    %103 = arith.addf %101, %102 : vector<8x32xf32>
    %104 = vector.shape_cast %103 : vector<8x32xf32> to vector<1x8x32xf32>
    %c0_42 = arith.constant 0 : index
    %c0_43 = arith.constant 0 : index
    %c0_44 = arith.constant 0 : index
    %105 = vector.load %arg8[%c0_42, %c0_43, %c0_44] : memref<1x8x32xf32, #tpu.memory_space<vmem>>, vector<1x8x32xf32>
    tpu.vector_store %arg8[%c0_42, %c0_43, %c0_44], %104 {strides = array<i32>} : memref<1x8x32xf32, #tpu.memory_space<vmem>>, vector<1x8x32xf32>,
    return
  }
  func.func @transform_0(%arg0: i32) -> (i32, i32, i32) {
    %c0_i32 = arith.constant 0 : i32
    %c0_i32_0 = arith.constant 0 : i32
    %c0_i32_1 = arith.constant 0 : i32
    return %arg0, %c0_i32, %c0_i32_0 : i32, i32, i32
  }
  func.func @transform_1(%arg0: i32) -> (i32, i32, i32) {
    %c0_i32 = arith.constant 0 : i32
    %c0_i32_0 = arith.constant 0 : i32
    %c0_i32_1 = arith.constant 0 : i32
    return %arg0, %c0_i32, %c0_i32_0 : i32, i32, i32
  }
  func.func @transform_2(%arg0: i32) -> (i32, i32) {
    %c0_i32 = arith.constant 0 : i32
    %c0_i32_0 = arith.constant 0 : i32
    %c0_i32_1 = arith.constant 0 : i32
    return %c0_i32, %c0_i32_0 : i32, i32
  }
  func.func @transform_3(%arg0: i32) -> (i32, i32) {
    %c0_i32 = arith.constant 0 : i32
    %c0_i32_0 = arith.constant 0 : i32
    %c0_i32_1 = arith.constant 0 : i32
    return %c0_i32, %c0_i32_0 : i32, i32
  }
  func.func @transform_4(%arg0: i32) -> (i32, i32) {
    %c0_i32 = arith.constant 0 : i32
    %c0_i32_0 = arith.constant 0 : i32
    %c0_i32_1 = arith.constant 0 : i32
    return %c0_i32, %c0_i32_0 : i32, i32
  }
  func.func @transform_5(%arg0: i32) -> (i32, i32) {
    %c0_i32 = arith.constant 0 : i32
    %c0_i32_0 = arith.constant 0 : i32
    %c0_i32_1 = arith.constant 0 : i32
    return %c0_i32, %c0_i32_0 : i32, i32
  }
  func.func @transform_6(%arg0: i32) -> (i32, i32) {
    %c0_i32 = arith.constant 0 : i32
    %c0_i32_0 = arith.constant 0 : i32
    %c0_i32_1 = arith.constant 0 : i32
    return %c0_i32, %c0_i32_0 : i32, i32
  }
  func.func @transform_7(%arg0: i32) -> (i32, i32, i32) {
    %c0_i32 = arith.constant 0 : i32
    %c0_i32_0 = arith.constant 0 : i32
    %c0_i32_1 = arith.constant 0 : i32
    return %arg0, %c0_i32, %c0_i32_0 : i32, i32, i32
  }
}

module attributes {stable_mosaic.version = 11 : i64} {
  func.func @cross_attention_kernel(%arg0: i32, %arg1: memref<1x8x32xf32, #tpu.memory_space<vmem>>, %arg2: memref<1x16x32xf32, #tpu.memory_space<vmem>>, %arg3: memref<32x32xf32, #tpu.memory_space<vmem>>, %arg4: memref<32x32xf32, #tpu.memory_space<vmem>>, %arg5: memref<32x32xf32, #tpu.memory_space<vmem>>, %arg6: memref<32x32xf32, #tpu.memory_space<vmem>>, %arg7: memref<1x32xf32, #tpu.memory_space<vmem>>, %arg8: memref<1x8x32xf32, #tpu.memory_space<vmem>>) attributes {dimension_semantics = [#tpu.dimension_semantics<parallel>], iteration_bounds = array<i64: 2>, scalar_prefetch = 0 : i64, scratch_operands = 0 : i64, tpu.core_type = #tpu.core_type<tc>, window_params = [{transform_indices = @transform_0, window_bounds = array<i64: 1, 8, 32>}, {transform_indices = @transform_1, window_bounds = array<i64: 1, 16, 32>}, {pipeline_mode = #tpu.pipeline_mode<synchronous>, transform_indices = @transform_2, window_bounds = array<i64: 32, 32>}, {pipeline_mode = #tpu.pipeline_mode<synchronous>, transform_indices = @transform_3, window_bounds = array<i64: 32, 32>}, {pipeline_mode = #tpu.pipeline_mode<synchronous>, transform_indices = @transform_4, window_bounds = array<i64: 32, 32>}, {pipeline_mode = #tpu.pipeline_mode<synchronous>, transform_indices = @transform_5, window_bounds = array<i64: 32, 32>}, {pipeline_mode = #tpu.pipeline_mode<synchronous>, transform_indices = @transform_6, window_bounds = array<i64: 1, 32>}, {transform_indices = @transform_7, window_bounds = array<i64: 1, 8, 32>}]} {
    %c0 = arith.constant 0 : index
    %c0_0 = arith.constant 0 : index
    %c0_1 = arith.constant 0 : index
    %0 = vector.load %arg1[%c0, %c0_0, %c0_1] : memref<1x8x32xf32, #tpu.memory_space<vmem>>, vector<1x8x32xf32>
    %1 = vector.shape_cast %0 : vector<1x8x32xf32> to vector<8x32xf32>
    %c0_2 = arith.constant 0 : index
    %c0_3 = arith.constant 0 : index
    %c0_4 = arith.constant 0 : index
    %2 = vector.load %arg2[%c0_2, %c0_3, %c0_4] : memref<1x16x32xf32, #tpu.memory_space<vmem>>, vector<1x16x32xf32>
    %3 = vector.shape_cast %2 : vector<1x16x32xf32> to vector<16x32xf32>
    %c0_5 = arith.constant 0 : index
    %c0_6 = arith.constant 0 : index
    %4 = vector.load %arg3[%c0_5, %c0_6] : memref<32x32xf32, #tpu.memory_space<vmem>>, vector<32x32xf32>
    %c0_7 = arith.constant 0 : index
    %c0_8 = arith.constant 0 : index
    %5 = vector.load %arg4[%c0_7, %c0_8] : memref<32x32xf32, #tpu.memory_space<vmem>>, vector<32x32xf32>
    %c0_9 = arith.constant 0 : index
    %c0_10 = arith.constant 0 : index
    %6 = vector.load %arg5[%c0_9, %c0_10] : memref<32x32xf32, #tpu.memory_space<vmem>>, vector<32x32xf32>
    %c0_11 = arith.constant 0 : index
    %c0_12 = arith.constant 0 : index
    %7 = vector.load %arg6[%c0_11, %c0_12] : memref<32x32xf32, #tpu.memory_space<vmem>>, vector<32x32xf32>
    %c0_13 = arith.constant 0 : index
    %c0_14 = arith.constant 0 : index
    %8 = vector.load %arg7[%c0_13, %c0_14] : memref<1x32xf32, #tpu.memory_space<vmem>>, vector<1x32xf32>
    %cst = arith.constant dense<0.000000e+00> : vector<8x32xf32>
    %9 = tpu.matmul %1, %4, %cst {dimension_numbers = #tpu.dot_dimension_numbers<[1], [0], [0], [1], [0, 0, 1, 1], [], []>} : vector<8x32xf32>, vector<32x32xf32>, vector<8x32xf32> -> vector<8x32xf32>
    %cst_15 = arith.constant dense<0.000000e+00> : vector<16x32xf32>
    %10 = tpu.matmul %3, %5, %cst_15 {dimension_numbers = #tpu.dot_dimension_numbers<[1], [0], [0], [1], [0, 0, 1, 1], [], []>} : vector<16x32xf32>, vector<32x32xf32>, vector<16x32xf32> -> vector<16x32xf32>
    %cst_16 = arith.constant dense<0.000000e+00> : vector<16x32xf32>
    %11 = tpu.matmul %3, %6, %cst_16 {dimension_numbers = #tpu.dot_dimension_numbers<[1], [0], [0], [1], [0, 0, 1, 1], [], []>} : vector<16x32xf32>, vector<32x32xf32>, vector<16x32xf32> -> vector<16x32xf32>
    %12 = vector.shape_cast %9 : vector<8x32xf32> to vector<1x8x32xf32>
    %13 = vector.shape_cast %10 : vector<16x32xf32> to vector<1x16x32xf32>
    %14 = vector.shape_cast %11 : vector<16x32xf32> to vector<1x16x32xf32>
    %15 = vector.extract_strided_slice %12 {offsets = [0, 0, 0], sizes = [1, 8, 8], strides = [1, 1, 1]} : vector<1x8x32xf32> to vector<1x8x8xf32>
    %16 = vector.extract_strided_slice %13 {offsets = [0, 0, 0], sizes = [1, 16, 8], strides = [1, 1, 1]} : vector<1x16x32xf32> to vector<1x16x8xf32>
    %17 = vector.extract_strided_slice %14 {offsets = [0, 0, 0], sizes = [1, 16, 8], strides = [1, 1, 1]} : vector<1x16x32xf32> to vector<1x16x8xf32>
    "tpu.trace_start"() <{level = 10 : i32, message = "bne,bke->bnk"}> : () -> ()
    %cst_17 = arith.constant dense<0.000000e+00> : vector<1x8x16xf32>
    %18 = tpu.matmul %15, %16, %cst_17 {dimension_numbers = #tpu.dot_dimension_numbers<[2], [2], [1], [1], [0, 0, 0, 1, 1, 1], [0], [0]>} : vector<1x8x8xf32>, vector<1x16x8xf32>, vector<1x8x16xf32> -> vector<1x8x16xf32>
    "tpu.trace_stop"() : () -> ()
    %cst_18 = arith.constant 0.353553385 : f32
    %19 = vector.broadcast %cst_18 : f32 to vector<1x8x16xf32>
    %20 = arith.mulf %18, %19 : vector<1x8x16xf32>
    %cst_19 = arith.constant dense<0xFF800000> : vector<1x8xf32>
    %21 = vector.multi_reduction <maximumf>, %20, %cst_19 [2] : vector<1x8x16xf32> to vector<1x8xf32>
    %22 = vector.shape_cast %21 : vector<1x8xf32> to vector<1x8x1xf32>
    %23 = vector.broadcast %22 : vector<1x8x1xf32> to vector<1x8x16xf32>
    %24 = arith.subf %20, %23 : vector<1x8x16xf32>
    %25 = math.exp %24 : vector<1x8x16xf32>
    %cst_20 = arith.constant dense<0.000000e+00> : vector<1x8xf32>
    %26 = vector.multi_reduction <add>, %25, %cst_20 [2] : vector<1x8x16xf32> to vector<1x8xf32>
    %27 = vector.shape_cast %26 : vector<1x8xf32> to vector<1x8x1xf32>
    %28 = tpu.reciprocal %27 {approx = true} : vector<1x8x1xf32> -> vector<1x8x1xf32>
    %29 = arith.mulf %27, %28 : vector<1x8x1xf32>
    %cst_21 = arith.constant 2.000000e+00 : f32
    %30 = vector.broadcast %cst_21 : f32 to vector<1x8x1xf32>
    %31 = arith.subf %30, %29 : vector<1x8x1xf32>
    %32 = arith.mulf %28, %31 : vector<1x8x1xf32>
    %33 = vector.broadcast %32 : vector<1x8x1xf32> to vector<1x8x16xf32>
    %34 = arith.mulf %25, %33 : vector<1x8x16xf32>
    "tpu.trace_start"() <{level = 10 : i32, message = "bnk,bke->bne"}> : () -> ()
    %cst_22 = arith.constant dense<0.000000e+00> : vector<1x8x8xf32>
    %35 = tpu.matmul %34, %17, %cst_22 {dimension_numbers = #tpu.dot_dimension_numbers<[2], [1], [1], [2], [0, 0, 0, 1, 1, 2], [0], [0]>} : vector<1x8x16xf32>, vector<1x16x8xf32>, vector<1x8x8xf32> -> vector<1x8x8xf32>
    "tpu.trace_stop"() : () -> ()
    %36 = vector.extract_strided_slice %12 {offsets = [0, 0, 8], sizes = [1, 8, 8], strides = [1, 1, 1]} : vector<1x8x32xf32> to vector<1x8x8xf32>
    %37 = vector.extract_strided_slice %13 {offsets = [0, 0, 8], sizes = [1, 16, 8], strides = [1, 1, 1]} : vector<1x16x32xf32> to vector<1x16x8xf32>
    %38 = vector.extract_strided_slice %14 {offsets = [0, 0, 8], sizes = [1, 16, 8], strides = [1, 1, 1]} : vector<1x16x32xf32> to vector<1x16x8xf32>
    "tpu.trace_start"() <{level = 10 : i32, message = "bne,bke->bnk"}> : () -> ()
    %cst_23 = arith.constant dense<0.000000e+00> : vector<1x8x16xf32>
    %39 = tpu.matmul %36, %37, %cst_23 {dimension_numbers = #tpu.dot_dimension_numbers<[2], [2], [1], [1], [0, 0, 0, 1, 1, 1], [0], [0]>} : vector<1x8x8xf32>, vector<1x16x8xf32>, vector<1x8x16xf32> -> vector<1x8x16xf32>
    "tpu.trace_stop"() : () -> ()
    %cst_24 = arith.constant 0.353553385 : f32
    %40 = vector.broadcast %cst_24 : f32 to vector<1x8x16xf32>
    %41 = arith.mulf %39, %40 : vector<1x8x16xf32>
    %cst_25 = arith.constant dense<0xFF800000> : vector<1x8xf32>
    %42 = vector.multi_reduction <maximumf>, %41, %cst_25 [2] : vector<1x8x16xf32> to vector<1x8xf32>
    %43 = vector.shape_cast %42 : vector<1x8xf32> to vector<1x8x1xf32>
    %44 = vector.broadcast %43 : vector<1x8x1xf32> to vector<1x8x16xf32>
    %45 = arith.subf %41, %44 : vector<1x8x16xf32>
    %46 = math.exp %45 : vector<1x8x16xf32>
    %cst_26 = arith.constant dense<0.000000e+00> : vector<1x8xf32>
    %47 = vector.multi_reduction <add>, %46, %cst_26 [2] : vector<1x8x16xf32> to vector<1x8xf32>
    %48 = vector.shape_cast %47 : vector<1x8xf32> to vector<1x8x1xf32>
    %49 = tpu.reciprocal %48 {approx = true} : vector<1x8x1xf32> -> vector<1x8x1xf32>
    %50 = arith.mulf %48, %49 : vector<1x8x1xf32>
    %cst_27 = arith.constant 2.000000e+00 : f32
    %51 = vector.broadcast %cst_27 : f32 to vector<1x8x1xf32>
    %52 = arith.subf %51, %50 : vector<1x8x1xf32>
    %53 = arith.mulf %49, %52 : vector<1x8x1xf32>
    %54 = vector.broadcast %53 : vector<1x8x1xf32> to vector<1x8x16xf32>
    %55 = arith.mulf %46, %54 : vector<1x8x16xf32>
    "tpu.trace_start"() <{level = 10 : i32, message = "bnk,bke->bne"}> : () -> ()
    %cst_28 = arith.constant dense<0.000000e+00> : vector<1x8x8xf32>
    %56 = tpu.matmul %55, %38, %cst_28 {dimension_numbers = #tpu.dot_dimension_numbers<[2], [1], [1], [2], [0, 0, 0, 1, 1, 2], [0], [0]>} : vector<1x8x16xf32>, vector<1x16x8xf32>, vector<1x8x8xf32> -> vector<1x8x8xf32>
    "tpu.trace_stop"() : () -> ()
    %57 = vector.extract_strided_slice %12 {offsets = [0, 0, 16], sizes = [1, 8, 8], strides = [1, 1, 1]} : vector<1x8x32xf32> to vector<1x8x8xf32>
    %58 = vector.extract_strided_slice %13 {offsets = [0, 0, 16], sizes = [1, 16, 8], strides = [1, 1, 1]} : vector<1x16x32xf32> to vector<1x16x8xf32>
    %59 = vector.extract_strided_slice %14 {offsets = [0, 0, 16], sizes = [1, 16, 8], strides = [1, 1, 1]} : vector<1x16x32xf32> to vector<1x16x8xf32>
    "tpu.trace_start"() <{level = 10 : i32, message = "bne,bke->bnk"}> : () -> ()
    %cst_29 = arith.constant dense<0.000000e+00> : vector<1x8x16xf32>
    %60 = tpu.matmul %57, %58, %cst_29 {dimension_numbers = #tpu.dot_dimension_numbers<[2], [2], [1], [1], [0, 0, 0, 1, 1, 1], [0], [0]>} : vector<1x8x8xf32>, vector<1x16x8xf32>, vector<1x8x16xf32> -> vector<1x8x16xf32>
    "tpu.trace_stop"() : () -> ()
    %cst_30 = arith.constant 0.353553385 : f32
    %61 = vector.broadcast %cst_30 : f32 to vector<1x8x16xf32>
    %62 = arith.mulf %60, %61 : vector<1x8x16xf32>
    %cst_31 = arith.constant dense<0xFF800000> : vector<1x8xf32>
    %63 = vector.multi_reduction <maximumf>, %62, %cst_31 [2] : vector<1x8x16xf32> to vector<1x8xf32>
    %64 = vector.shape_cast %63 : vector<1x8xf32> to vector<1x8x1xf32>
    %65 = vector.broadcast %64 : vector<1x8x1xf32> to vector<1x8x16xf32>
    %66 = arith.subf %62, %65 : vector<1x8x16xf32>
    %67 = math.exp %66 : vector<1x8x16xf32>
    %cst_32 = arith.constant dense<0.000000e+00> : vector<1x8xf32>
    %68 = vector.multi_reduction <add>, %67, %cst_32 [2] : vector<1x8x16xf32> to vector<1x8xf32>
    %69 = vector.shape_cast %68 : vector<1x8xf32> to vector<1x8x1xf32>
    %70 = tpu.reciprocal %69 {approx = true} : vector<1x8x1xf32> -> vector<1x8x1xf32>
    %71 = arith.mulf %69, %70 : vector<1x8x1xf32>
    %cst_33 = arith.constant 2.000000e+00 : f32
    %72 = vector.broadcast %cst_33 : f32 to vector<1x8x1xf32>
    %73 = arith.subf %72, %71 : vector<1x8x1xf32>
    %74 = arith.mulf %70, %73 : vector<1x8x1xf32>
    %75 = vector.broadcast %74 : vector<1x8x1xf32> to vector<1x8x16xf32>
    %76 = arith.mulf %67, %75 : vector<1x8x16xf32>
    "tpu.trace_start"() <{level = 10 : i32, message = "bnk,bke->bne"}> : () -> ()
    %cst_34 = arith.constant dense<0.000000e+00> : vector<1x8x8xf32>
    %77 = tpu.matmul %76, %59, %cst_34 {dimension_numbers = #tpu.dot_dimension_numbers<[2], [1], [1], [2], [0, 0, 0, 1, 1, 2], [0], [0]>} : vector<1x8x16xf32>, vector<1x16x8xf32>, vector<1x8x8xf32> -> vector<1x8x8xf32>
    "tpu.trace_stop"() : () -> ()
    %78 = vector.extract_strided_slice %12 {offsets = [0, 0, 24], sizes = [1, 8, 8], strides = [1, 1, 1]} : vector<1x8x32xf32> to vector<1x8x8xf32>
    %79 = vector.extract_strided_slice %13 {offsets = [0, 0, 24], sizes = [1, 16, 8], strides = [1, 1, 1]} : vector<1x16x32xf32> to vector<1x16x8xf32>
    %80 = vector.extract_strided_slice %14 {offsets = [0, 0, 24], sizes = [1, 16, 8], strides = [1, 1, 1]} : vector<1x16x32xf32> to vector<1x16x8xf32>
    "tpu.trace_start"() <{level = 10 : i32, message = "bne,bke->bnk"}> : () -> ()
    %cst_35 = arith.constant dense<0.000000e+00> : vector<1x8x16xf32>
    %81 = tpu.matmul %78, %79, %cst_35 {dimension_numbers = #tpu.dot_dimension_numbers<[2], [2], [1], [1], [0, 0, 0, 1, 1, 1], [0], [0]>} : vector<1x8x8xf32>, vector<1x16x8xf32>, vector<1x8x16xf32> -> vector<1x8x16xf32>
    "tpu.trace_stop"() : () -> ()
    %cst_36 = arith.constant 0.353553385 : f32
    %82 = vector.broadcast %cst_36 : f32 to vector<1x8x16xf32>
    %83 = arith.mulf %81, %82 : vector<1x8x16xf32>
    %cst_37 = arith.constant dense<0xFF800000> : vector<1x8xf32>
    %84 = vector.multi_reduction <maximumf>, %83, %cst_37 [2] : vector<1x8x16xf32> to vector<1x8xf32>
    %85 = vector.shape_cast %84 : vector<1x8xf32> to vector<1x8x1xf32>
    %86 = vector.broadcast %85 : vector<1x8x1xf32> to vector<1x8x16xf32>
    %87 = arith.subf %83, %86 : vector<1x8x16xf32>
    %88 = math.exp %87 : vector<1x8x16xf32>
    %cst_38 = arith.constant dense<0.000000e+00> : vector<1x8xf32>
    %89 = vector.multi_reduction <add>, %88, %cst_38 [2] : vector<1x8x16xf32> to vector<1x8xf32>
    %90 = vector.shape_cast %89 : vector<1x8xf32> to vector<1x8x1xf32>
    %91 = tpu.reciprocal %90 {approx = true} : vector<1x8x1xf32> -> vector<1x8x1xf32>
    %92 = arith.mulf %90, %91 : vector<1x8x1xf32>
    %cst_39 = arith.constant 2.000000e+00 : f32
    %93 = vector.broadcast %cst_39 : f32 to vector<1x8x1xf32>
    %94 = arith.subf %93, %92 : vector<1x8x1xf32>
    %95 = arith.mulf %91, %94 : vector<1x8x1xf32>
    %96 = vector.broadcast %95 : vector<1x8x1xf32> to vector<1x8x16xf32>
    %97 = arith.mulf %88, %96 : vector<1x8x16xf32>
    "tpu.trace_start"() <{level = 10 : i32, message = "bnk,bke->bne"}> : () -> ()
    %cst_40 = arith.constant dense<0.000000e+00> : vector<1x8x8xf32>
    %98 = tpu.matmul %97, %80, %cst_40 {dimension_numbers = #tpu.dot_dimension_numbers<[2], [1], [1], [2], [0, 0, 0, 1, 1, 2], [0], [0]>} : vector<1x8x16xf32>, vector<1x16x8xf32>, vector<1x8x8xf32> -> vector<1x8x8xf32>
    "tpu.trace_stop"() : () -> ()
    %99 = tpu.concatenate %35, %56, %77, %98 in 2 : vector<1x8x8xf32>, vector<1x8x8xf32>, vector<1x8x8xf32>, vector<1x8x8xf32> -> vector<1x8x32xf32>
    %100 = vector.shape_cast %99 : vector<1x8x32xf32> to vector<8x32xf32>
    %cst_41 = arith.constant dense<0.000000e+00> : vector<8x32xf32>
    %101 = tpu.matmul %100, %7, %cst_41 {dimension_numbers = #tpu.dot_dimension_numbers<[1], [0], [0], [1], [0, 0, 1, 1], [], []>} : vector<8x32xf32>, vector<32x32xf32>, vector<8x32xf32> -> vector<8x32xf32>
    %102 = vector.broadcast %8 : vector<1x32xf32> to vector<8x32xf32>
    %103 = arith.addf %101, %102 : vector<8x32xf32>
    %104 = vector.shape_cast %103 : vector<8x32xf32> to vector<1x8x32xf32>
    %c0_42 = arith.constant 0 : index
    %c0_43 = arith.constant 0 : index
    %c0_44 = arith.constant 0 : index
    %105 = vector.load %arg8[%c0_42, %c0_43, %c0_44] : memref<1x8x32xf32, #tpu.memory_space<vmem>>, vector<1x8x32xf32>
    tpu.vector_store %arg8[%c0_42, %c0_43, %c0_44], %104 {strides = array<i32>} : memref<1x8x32xf32, #tpu.memory_space<vmem>>, vector<1x8x32xf32>,
    return
  }
  func.func @transform_0(%arg0: i32) -> (i32, i32, i32) {
    %c0_i32 = arith.constant 0 : i32
    %c0_i32_0 = arith.constant 0 : i32
    %c0_i32_1 = arith.constant 0 : i32
    return %arg0, %c0_i32, %c0_i32_0 : i32, i32, i32
  }
  func.func @transform_1(%arg0: i32) -> (i32, i32, i32) {
    %c0_i32 = arith.constant 0 : i32
    %c0_i32_0 = arith.constant 0 : i32
    %c0_i32_1 = arith.constant 0 : i32
    return %arg0, %c0_i32, %c0_i32_0 : i32, i32, i32
  }
  func.func @transform_2(%arg0: i32) -> (i32, i32) {
    %c0_i32 = arith.constant 0 : i32
    %c0_i32_0 = arith.constant 0 : i32
    %c0_i32_1 = arith.constant 0 : i32
    return %c0_i32, %c0_i32_0 : i32, i32
  }
  func.func @transform_3(%arg0: i32) -> (i32, i32) {
    %c0_i32 = arith.constant 0 : i32
    %c0_i32_0 = arith.constant 0 : i32
    %c0_i32_1 = arith.constant 0 : i32
    return %c0_i32, %c0_i32_0 : i32, i32
  }
  func.func @transform_4(%arg0: i32) -> (i32, i32) {
    %c0_i32 = arith.constant 0 : i32
    %c0_i32_0 = arith.constant 0 : i32
    %c0_i32_1 = arith.constant 0 : i32
    return %c0_i32, %c0_i32_0 : i32, i32
  }
  func.func @transform_5(%arg0: i32) -> (i32, i32) {
    %c0_i32 = arith.constant 0 : i32
    %c0_i32_0 = arith.constant 0 : i32
    %c0_i32_1 = arith.constant 0 : i32
    return %c0_i32, %c0_i32_0 : i32, i32
  }
  func.func @transform_6(%arg0: i32) -> (i32, i32) {
    %c0_i32 = arith.constant 0 : i32
    %c0_i32_0 = arith.constant 0 : i32
    %c0_i32_1 = arith.constant 0 : i32
    return %c0_i32, %c0_i32_0 : i32, i32
  }
  func.func @transform_7(%arg0: i32) -> (i32, i32, i32) {
    %c0_i32 = arith.constant 0 : i32
    %c0_i32_0 = arith.constant 0 : i32
    %c0_i32_1 = arith.constant 0 : i32
    return %arg0, %c0_i32, %c0_i32_0 : i32, i32, i32
  }
}

</mosaic_0001>

<llo_original>
// kernel: tpu_custom_call.1
$region0: #{tpu_custom_call.1}
  #allocation0 [shape = 'u32[]', space=smem, size = 0x4, offset = 0x4, fixed_abs, tag = 'smem constant byte address 0x4 - core index']
  #allocation1 [shape = 'u32[144,128]{1,0:T(1,128)}', space=vmem, size = 0x12000, scoped, tag = 'internal scratch']
  %s0 = inlined_call_operand.hbm [shape: f32[2,8,32], index: 0, kind: input, shape index: {}]
  %s1 = inlined_call_operand.hbm [shape: f32[2,16,32], index: 1, kind: input, shape index: {}]
  %s2 = inlined_call_operand.hbm [shape: f32[32,32], index: 2, kind: input, shape index: {}]
  %s3 = inlined_call_operand.hbm [shape: f32[32,32], index: 3, kind: input, shape index: {}]
  %s4 = inlined_call_operand.hbm [shape: f32[32,32], index: 4, kind: input, shape index: {}]
  %s5 = inlined_call_operand.hbm [shape: f32[32,32], index: 5, kind: input, shape index: {}]
  %s6 = inlined_call_operand.vmem [shape: f32[1,32], index: 6, kind: input, shape index: {}]
  %s7 = inlined_call_operand.hbm [shape: f32[2,8,32], index: 7, kind: output, shape index: {}]
  %s8 = sld [smem:[#allocation0]]
  $region85: #{tpu_custom_call.1} parent=0
    _
  %s10 = ssub.s32 1, %s8
  %s11 = scalar_select 0, %s10, %s8
  $region1: #{tpu_custom_call.1} parent=0
    #allocation2 [shape = 'u8[8192]{0}', space=vmem, size = 0x2000, scoped, tag = 'input window, operand 0']
    #allocation3 [shape = 's32[2]{0}', space=sflag, size = 0x8, scoped, tag = 'scoped memory for tpu_custom_call.1']
    #allocation4 [shape = 's32[2]{0}', space=sflag, size = 0x8, scoped, tag = 'scoped memory for tpu_custom_call.1']
    #allocation5 [shape = 'u8[16384]{0}', space=vmem, size = 0x4000, scoped, tag = 'input window, operand 1']
    #allocation6 [shape = 's32[2]{0}', space=sflag, size = 0x8, scoped, tag = 'scoped memory for tpu_custom_call.1']
    #allocation7 [shape = 'u8[16384]{0}', space=vmem, size = 0x4000, scoped, tag = 'input window, operand 2, single buffered']
    #allocation8 [shape = 'u8[16384]{0}', space=vmem, size = 0x4000, scoped, tag = 'input window, operand 3, single buffered']
    #allocation9 [shape = 's32[1]{0}', space=sflag, size = 0x4, scoped, tag = 'scoped memory for tpu_custom_call.1']
    #allocation10 [shape = 'u8[16384]{0}', space=vmem, size = 0x4000, scoped, tag = 'input window, operand 4, single buffered']
    #allocation11 [shape = 'u8[16384]{0}', space=vmem, size = 0x4000, scoped, tag = 'input window, operand 5, single buffered']
    #allocation12 [shape = 's32[1]{0}', space=sflag, size = 0x4, scoped, tag = 'scoped memory for tpu_custom_call.1']
    #allocation13 [shape = 'u8[8192]{0}', space=vmem, size = 0x2000, scoped, tag = 'output window, operand 0']
    %12 = vsyncpa [#allocation3], 0
    %s13 = scalar_lea.sflag [#allocation3], 1
    %14 = vsyncpa %s13, 0
    %15 = vsyncpa [#allocation6], 0
    %s16 = scalar_lea.sflag [#allocation6], 1
    %17 = vsyncpa %s16, 0
    %18 = vsyncpa [#allocation9], 0
    %19 = vsyncpa [#allocation12], 0
    %20 = vsyncpa [#allocation4], 0
    %s21 = scalar_lea.sflag [#allocation4], 1
    %22 = vsyncpa %s21, 0
    loop: start=0, step=1, limit=4
    $region2: #{tpu_custom_call.1} parent=1 // loop_pre_header
      _
    $region3: #{tpu_custom_call.1} parent=1 // loop_header
      %s24 = sphi 0, %s28
      %p25 = scmp.ge.s32.totalorder %s24, 4
      %s34 = sphi 0, %s36
      %s37 = sphi 0, %s34
      %s38 = sphi 0, %s37
      %s54 = sphi 0, %s38
      %s60 = sphi 0, %s62
      %s63 = sphi 0, %s60
      %s64 = sphi 0, %s63
      %s80 = sphi 0, %s64
      %s84 = sphi 0, %s84
      %s86 = sphi 0, %s84
      %s87 = sphi 0, %s86
      %s101 = sphi 0, %s87
      %s105 = sphi 0, %s105
      %s107 = sphi 0, %s105
      %s108 = sphi 0, %s107
      %s122 = sphi 0, %s108
      %s126 = sphi 0, %s126
      %s128 = sphi 0, %s126
      %s129 = sphi 0, %s128
      %s143 = sphi 0, %s129
      %s147 = sphi 0, %s147
      %s149 = sphi 0, %s147
      %s150 = sphi 0, %s149
      %s164 = sphi 0, %s150
      %s168 = sphi 0, %s168
      %s170 = sphi 0, %s168
      %s171 = sphi 0, %s170
      %s185 = sphi 0, %s171
      %s191 = sphi 0, %s193
      %s194 = sphi 0, %s191
      %s195 = sphi 0, %s194
      %s211 = sphi 0, %s195
    $region4: #{tpu_custom_call.1} parent=1 // loop_header_branch
      %27 = sbr.rel (%p25) target = $region8
    $region5: #{tpu_custom_call.1} parent=1 // loop_body
      %s29 = ssub.s32 %s24, 1
      %s30 = ssub.s32 %s24, 2
      %s31 = sadd.s32 %s24, 1
      %s32 = ssub.s32 %s24, %s31
      %p33 = scmp.eq.s32.totalorder %s32, 0
      %s35 = sadd.s32 %s34, 1
      %s36 = scalar_select %p33, %s34, %s35
      %p39 = pneg %p33
      %p40 = scmp.eq.s32.totalorder %s24, 1
      %p41 = por %p39, %p40
      %p42 = scmp.ne.s32.totalorder %s34, %s37
      %p43 = scmp.eq.s32.totalorder %s24, 0
      %p44 = por %p42, %p43
      %p45 = scmp.ne.s32.totalorder %s34, %s37
      %p46 = scmp.eq.s32.totalorder %s29, 1
      %p47 = por %p45, %p46
      %p48 = scmp.ne.s32.totalorder %s37, %s38
      %p49 = scmp.eq.s32.totalorder %s29, 0
      %p50 = por %p48, %p49
      %p51 = scmp.ne.s32.totalorder %s37, %s38
      %p52 = scmp.eq.s32.totalorder %s30, 1
      %p53 = por %p51, %p52
      %p55 = scmp.ne.s32.totalorder %s38, %s54
      %p56 = scmp.eq.s32.totalorder %s30, 0
      %p57 = por %p55, %p56
      %s58 = ssub.s32 %s24, %s31
      %p59 = scmp.eq.s32.totalorder %s58, 0
      %s61 = sadd.s32 %s60, 1
      %s62 = scalar_select %p59, %s60, %s61
      %p65 = pneg %p59
      %p66 = scmp.eq.s32.totalorder %s24, 1
      %p67 = por %p65, %p66
      %p68 = scmp.ne.s32.totalorder %s60, %s63
      %p69 = scmp.eq.s32.totalorder %s24, 0
      %p70 = por %p68, %p69
      %p71 = scmp.ne.s32.totalorder %s60, %s63
      %p72 = scmp.eq.s32.totalorder %s29, 1
      %p73 = por %p71, %p72
      %p74 = scmp.ne.s32.totalorder %s63, %s64
      %p75 = scmp.eq.s32.totalorder %s29, 0
      %p76 = por %p74, %p75
      %p77 = scmp.ne.s32.totalorder %s63, %s64
      %p78 = scmp.eq.s32.totalorder %s30, 1
      %p79 = por %p77, %p78
      %p81 = scmp.ne.s32.totalorder %s64, %s80
      %p82 = scmp.eq.s32.totalorder %s30, 0
      %p83 = por %p81, %p82
      %s85 = sadd.s32 %s84, 1
      %p88 = scmp.eq.s32.totalorder %s24, 1
      %p89 = scmp.ne.s32.totalorder %s84, %s86
      %p90 = scmp.eq.s32.totalorder %s24, 0
      %p91 = por %p89, %p90
      %p92 = scmp.ne.s32.totalorder %s84, %s86
      %p93 = scmp.eq.s32.totalorder %s29, 1
      %p94 = por %p92, %p93
      %p95 = scmp.ne.s32.totalorder %s86, %s87
      %p96 = scmp.eq.s32.totalorder %s29, 0
      %p97 = por %p95, %p96
      %p98 = scmp.ne.s32.totalorder %s86, %s87
      %p99 = scmp.eq.s32.totalorder %s30, 1
      %p100 = por %p98, %p99
      %p102 = scmp.ne.s32.totalorder %s87, %s101
      %p103 = scmp.eq.s32.totalorder %s30, 0
      %p104 = por %p102, %p103
      %s106 = sadd.s32 %s105, 1
      %p109 = scmp.eq.s32.totalorder %s24, 1
      %p110 = scmp.ne.s32.totalorder %s105, %s107
      %p111 = scmp.eq.s32.totalorder %s24, 0
      %p112 = por %p110, %p111
      %p113 = scmp.ne.s32.totalorder %s105, %s107
      %p114 = scmp.eq.s32.totalorder %s29, 1
      %p115 = por %p113, %p114
      %p116 = scmp.ne.s32.totalorder %s107, %s108
      %p117 = scmp.eq.s32.totalorder %s29, 0
      %p118 = por %p116, %p117
      %p119 = scmp.ne.s32.totalorder %s107, %s108
      %p120 = scmp.eq.s32.totalorder %s30, 1
      %p121 = por %p119, %p120
      %p123 = scmp.ne.s32.totalorder %s108, %s122
      %p124 = scmp.eq.s32.totalorder %s30, 0
      %p125 = por %p123, %p124
      %s127 = sadd.s32 %s126, 1
      %p130 = scmp.eq.s32.totalorder %s24, 1
      %p131 = scmp.ne.s32.totalorder %s126, %s128
      %p132 = scmp.eq.s32.totalorder %s24, 0
      %p133 = por %p131, %p132
      %p134 = scmp.ne.s32.totalorder %s126, %s128
      %p135 = scmp.eq.s32.totalorder %s29, 1
      %p136 = por %p134, %p135
      %p137 = scmp.ne.s32.totalorder %s128, %s129
      %p138 = scmp.eq.s32.totalorder %s29, 0
      %p139 = por %p137, %p138
      %p140 = scmp.ne.s32.totalorder %s128, %s129
      %p141 = scmp.eq.s32.totalorder %s30, 1
      %p142 = por %p140, %p141
      %p144 = scmp.ne.s32.totalorder %s129, %s143
      %p145 = scmp.eq.s32.totalorder %s30, 0
      %p146 = por %p144, %p145
      %s148 = sadd.s32 %s147, 1
      %p151 = scmp.eq.s32.totalorder %s24, 1
      %p152 = scmp.ne.s32.totalorder %s147, %s149
      %p153 = scmp.eq.s32.totalorder %s24, 0
      %p154 = por %p152, %p153
      %p155 = scmp.ne.s32.totalorder %s147, %s149
      %p156 = scmp.eq.s32.totalorder %s29, 1
      %p157 = por %p155, %p156
      %p158 = scmp.ne.s32.totalorder %s149, %s150
      %p159 = scmp.eq.s32.totalorder %s29, 0
      %p160 = por %p158, %p159
      %p161 = scmp.ne.s32.totalorder %s149, %s150
      %p162 = scmp.eq.s32.totalorder %s30, 1
      %p163 = por %p161, %p162
      %p165 = scmp.ne.s32.totalorder %s150, %s164
      %p166 = scmp.eq.s32.totalorder %s30, 0
      %p167 = por %p165, %p166
      %s169 = sadd.s32 %s168, 1
      %p172 = scmp.eq.s32.totalorder %s24, 1
      %p173 = scmp.ne.s32.totalorder %s168, %s170
      %p174 = scmp.eq.s32.totalorder %s24, 0
      %p175 = por %p173, %p174
      %p176 = scmp.ne.s32.totalorder %s168, %s170
      %p177 = scmp.eq.s32.totalorder %s29, 1
      %p178 = por %p176, %p177
      %p179 = scmp.ne.s32.totalorder %s170, %s171
      %p180 = scmp.eq.s32.totalorder %s29, 0
      %p181 = por %p179, %p180
      %p182 = scmp.ne.s32.totalorder %s170, %s171
      %p183 = scmp.eq.s32.totalorder %s30, 1
      %p184 = por %p182, %p183
      %p186 = scmp.ne.s32.totalorder %s171, %s185
      %p187 = scmp.eq.s32.totalorder %s30, 0
      %p188 = por %p186, %p187
      %s189 = ssub.s32 %s24, %s31
      %p190 = scmp.eq.s32.totalorder %s189, 0
      %s192 = sadd.s32 %s191, 1
      %s193 = scalar_select %p190, %s191, %s192
      %p196 = pneg %p190
      %p197 = scmp.eq.s32.totalorder %s24, 1
      %p198 = por %p196, %p197
      %p199 = scmp.ne.s32.totalorder %s191, %s194
      %p200 = scmp.eq.s32.totalorder %s24, 0
      %p201 = por %p199, %p200
      %p202 = scmp.ne.s32.totalorder %s191, %s194
      %p203 = scmp.eq.s32.totalorder %s29, 1
      %p204 = por %p202, %p203
      %p205 = scmp.ne.s32.totalorder %s194, %s195
      %p206 = scmp.eq.s32.totalorder %s29, 0
      %p207 = por %p205, %p206
      %p208 = scmp.ne.s32.totalorder %s194, %s195
      %p209 = scmp.eq.s32.totalorder %s30, 1
      %p210 = por %p208, %p209
      %p212 = scmp.ne.s32.totalorder %s195, %s211
      %p213 = scmp.eq.s32.totalorder %s30, 0
      %p214 = por %p212, %p213
      %p215 = scmp.le.s32.totalorder 1, %s24
      %p216 = scmp.lt.s32.totalorder %s24, 3
      %p217 = pnand %p215, %p216
      %p218 = pneg %p217
      // Predicated region
      $region9: #{tpu_custom_call.1} parent=5 // pred_check
        _
      $region10: #{tpu_custom_call.1} parent=5 // pred_check_branch
        %220 = sbr.rel (%p217) target = $region12
      $region11: #{tpu_custom_call.1} parent=5 // pred_region
        %s221 = ssub.s32 %s24, 1
        // Predicated region
        $region13: #{tpu_custom_call.1} parent=11 // pred_check
          %p222 = pneg %p97
        $region14: #{tpu_custom_call.1} parent=11 // pred_check_branch
          %224 = sbr.rel (%p222) target = $region16
        $region15: #{tpu_custom_call.1} parent=11 // pred_region
          %s226 = ssub.s32 512, 512
          %227 = vsyncadd [#allocation6], %s226
          %s228 = sshll.u32 [#allocation7], 4
          %s229 = int_to_ptr.vmem [resolvable:$true] %s228
          %234 = dma.hbm_to_vmem [thread:$0]  %s2, 512, %s229, [#allocation6], 128, 128, 8
        $region16: #{tpu_custom_call.1} parent=11 // pred_fallthru
          _
        // Predicated region
        $region17: #{tpu_custom_call.1} parent=11 // pred_check
          %p235 = pneg %p118
        $region18: #{tpu_custom_call.1} parent=11 // pred_check_branch
          %237 = sbr.rel (%p235) target = $region20
        $region19: #{tpu_custom_call.1} parent=11 // pred_region
          %s239 = ssub.s32 512, 512
          %240 = vsyncadd [#allocation9], %s239
          %s241 = sshll.u32 [#allocation8], 4
          %s242 = int_to_ptr.vmem [resolvable:$true] %s241
          %247 = dma.hbm_to_vmem [thread:$0]  %s3, 512, %s242, [#allocation9], 128, 128, 8
        $region20: #{tpu_custom_call.1} parent=11 // pred_fallthru
          _
        // Predicated region
        $region21: #{tpu_custom_call.1} parent=11 // pred_check
          %p248 = pneg %p139
        $region22: #{tpu_custom_call.1} parent=11 // pred_check_branch
          %250 = sbr.rel (%p248) target = $region24
        $region23: #{tpu_custom_call.1} parent=11 // pred_region
          %s252 = ssub.s32 512, 512
          %253 = vsyncadd [#allocation9], %s252
          %s254 = sshll.u32 [#allocation10], 4
          %s255 = int_to_ptr.vmem [resolvable:$true] %s254
          %260 = dma.hbm_to_vmem [thread:$0]  %s4, 512, %s255, [#allocation9], 128, 128, 8
        $region24: #{tpu_custom_call.1} parent=11 // pred_fallthru
          _
        // Predicated region
        $region25: #{tpu_custom_call.1} parent=11 // pred_check
          %p261 = pneg %p160
        $region26: #{tpu_custom_call.1} parent=11 // pred_check_branch
          %263 = sbr.rel (%p261) target = $region28
        $region27: #{tpu_custom_call.1} parent=11 // pred_region
          %s265 = ssub.s32 512, 512
          %266 = vsyncadd [#allocation12], %s265
          %s267 = sshll.u32 [#allocation11], 4
          %s268 = int_to_ptr.vmem [resolvable:$true] %s267
          %273 = dma.hbm_to_vmem [thread:$0]  %s5, 512, %s268, [#allocation12], 128, 128, 8
        $region28: #{tpu_custom_call.1} parent=11 // pred_fallthru
          _
        // Predicated region
        $region29: #{tpu_custom_call.1} parent=11 // pred_check
          %p274 = pneg %p181
        $region30: #{tpu_custom_call.1} parent=11 // pred_check_branch
          %276 = sbr.rel (%p274) target = $region32
        $region31: #{tpu_custom_call.1} parent=11 // pred_region
          _
        $region32: #{tpu_custom_call.1} parent=11 // pred_fallthru
          _
      $region12: #{tpu_custom_call.1} parent=5 // pred_fallthru
        _
      %p277 = scmp.lt.s32.totalorder %s24, 2
      // Predicated region
      $region33: #{tpu_custom_call.1} parent=5 // pred_check
        %p278 = pneg %p277
      $region34: #{tpu_custom_call.1} parent=5 // pred_check_branch
        %280 = sbr.rel (%p278) target = $region36
      $region35: #{tpu_custom_call.1} parent=5 // pred_region
        // Predicated region
        $region37: #{tpu_custom_call.1} parent=35 // pred_check
          %p281 = pneg %p44
        $region38: #{tpu_custom_call.1} parent=35 // pred_check_branch
          %283 = sbr.rel (%p281) target = $region40
        $region39: #{tpu_custom_call.1} parent=35 // pred_region
          %s284 = sand.u32 %s34, 1
          %s285 = scalar_lea.sflag [#allocation3], %s284
          %s286 = sand.u32 %s34, 1
          %s287 = smul.addr %s286, 8
          %s288 = scalar_lea.vmem [#allocation2], %s287
          %s290 = ssub.s32 128, 128
          %291 = vsyncadd %s285, %s290
          %s292 = smul.addr %s24, 128
          %s293 = scalar_lea.hbm %s0, %s292
          %s295 = sshll.u32 %s288, 4
          %s296 = int_to_ptr.vmem [resolvable:$true] %s295
          %298 = dma.hbm_to_vmem [thread:$0]  %s293, 128, %s296, %s285
        $region40: #{tpu_custom_call.1} parent=35 // pred_fallthru
          _
        // Predicated region
        $region41: #{tpu_custom_call.1} parent=35 // pred_check
          %p299 = pneg %p70
        $region42: #{tpu_custom_call.1} parent=35 // pred_check_branch
          %301 = sbr.rel (%p299) target = $region44
        $region43: #{tpu_custom_call.1} parent=35 // pred_region
          %s302 = sand.u32 %s24, 1
          %s303 = scalar_lea.sflag [#allocation6], %s302
          %s304 = sand.u32 %s60, 1
          %s305 = smul.addr %s304, 16
          %s306 = scalar_lea.vmem [#allocation5], %s305
          %s308 = ssub.s32 256, 256
          %309 = vsyncadd %s303, %s308
          %s310 = smul.addr %s24, 2
          %s311 = smul.addr %s310, 128
          %s312 = scalar_lea.hbm %s1, %s311
          %s313 = sshll.u32 %s306, 4
          %s314 = int_to_ptr.vmem [resolvable:$true] %s313
          %319 = dma.hbm_to_vmem [thread:$0]  %s312, 256, %s314, %s303, 128, 128, 8
        $region44: #{tpu_custom_call.1} parent=35 // pred_fallthru
          _
      $region36: #{tpu_custom_call.1} parent=5 // pred_fallthru
        _
      %p320 = scmp.le.s32.totalorder 1, %s24
      %p321 = scmp.lt.s32.totalorder %s24, 3
      %p322 = pnand %p320, %p321
      %p323 = pneg %p322
      // Predicated region
      $region45: #{tpu_custom_call.1} parent=5 // pred_check
        _
      $region46: #{tpu_custom_call.1} parent=5 // pred_check_branch
        %325 = sbr.rel (%p322) target = $region48
      $region47: #{tpu_custom_call.1} parent=5 // pred_region
        %s326 = ssub.s32 %s24, 1
        %s327 = sand.u32 %s37, 1
        %s328 = scalar_lea.sflag [#allocation3], %s327
        %s329 = sand.u32 %s37, 1
        %s330 = smul.addr %s329, 8
        %s331 = scalar_lea.vmem [#allocation2], %s330
        // Predicated region
        $region49: #{tpu_custom_call.1} parent=47 // pred_check
          %p332 = pneg %p50
        $region50: #{tpu_custom_call.1} parent=47 // pred_check_branch
          %334 = sbr.rel (%p332) target = $region52
        $region51: #{tpu_custom_call.1} parent=47 // pred_region
          %335 = dma.done %s328, 128
        $region52: #{tpu_custom_call.1} parent=47 // pred_fallthru
          _
        %s336 = sand.u32 %s29, 1
        %s337 = scalar_lea.sflag [#allocation6], %s336
        %s338 = sand.u32 %s63, 1
        %s339 = smul.addr %s338, 16
        %s340 = scalar_lea.vmem [#allocation5], %s339
        // Predicated region
        $region53: #{tpu_custom_call.1} parent=47 // pred_check
          %p341 = pneg %p76
        $region54: #{tpu_custom_call.1} parent=47 // pred_check_branch
          %343 = sbr.rel (%p341) target = $region56
        $region55: #{tpu_custom_call.1} parent=47 // pred_region
          %344 = dma.done %s337, 256
        $region56: #{tpu_custom_call.1} parent=47 // pred_fallthru
          _
        // Predicated region
        $region57: #{tpu_custom_call.1} parent=47 // pred_check
          %p345 = pneg %p97
        $region58: #{tpu_custom_call.1} parent=47 // pred_check_branch
          %347 = sbr.rel (%p345) target = $region60
        $region59: #{tpu_custom_call.1} parent=47 // pred_region
          %348 = dma.done [#allocation6], 512
        $region60: #{tpu_custom_call.1} parent=47 // pred_fallthru
          _
        // Predicated region
        $region61: #{tpu_custom_call.1} parent=47 // pred_check
          %p349 = pneg %p118
        $region62: #{tpu_custom_call.1} parent=47 // pred_check_branch
          %351 = sbr.rel (%p349) target = $region64
        $region63: #{tpu_custom_call.1} parent=47 // pred_region
          %352 = dma.done [#allocation9], 512
        $region64: #{tpu_custom_call.1} parent=47 // pred_fallthru
          _
        // Predicated region
        $region65: #{tpu_custom_call.1} parent=47 // pred_check
          %p353 = pneg %p139
        $region66: #{tpu_custom_call.1} parent=47 // pred_check_branch
          %355 = sbr.rel (%p353) target = $region68
        $region67: #{tpu_custom_call.1} parent=47 // pred_region
          %356 = dma.done [#allocation9], 512
        $region68: #{tpu_custom_call.1} parent=47 // pred_fallthru
          _
        // Predicated region
        $region69: #{tpu_custom_call.1} parent=47 // pred_check
          %p357 = pneg %p160
        $region70: #{tpu_custom_call.1} parent=47 // pred_check_branch
          %359 = sbr.rel (%p357) target = $region72
        $region71: #{tpu_custom_call.1} parent=47 // pred_region
          %360 = dma.done [#allocation12], 512
        $region72: #{tpu_custom_call.1} parent=47 // pred_fallthru
          _
        %s361 = sand.u32 %s37, 1
        %s362 = scalar_lea.sflag [#allocation3], %s361
        %s363 = sand.u32 %s37, 1
        %s364 = smul.addr %s363, 8
        %s365 = scalar_lea.vmem [#allocation2], %s364
        %p366 = pneg %p50
        %p367 = pneg %p47
        %s368 = sand.u32 %s29, 1
        %s369 = scalar_lea.sflag [#allocation6], %s368
        %s370 = sand.u32 %s63, 1
        %s371 = smul.addr %s370, 16
        %s372 = scalar_lea.vmem [#allocation5], %s371
        %p373 = pneg %p76
        %p374 = pneg %p73
        %p375 = pneg %p97
        %p376 = pneg %p94
        %p377 = pneg %p118
        %p378 = pneg %p115
        %p379 = pneg %p139
        %p380 = pneg %p136
        %p381 = pneg %p160
        %p382 = pneg %p157
        %p383 = pneg %p181
        %p384 = pneg %p178
        %p385 = pneg %p207
        %p386 = pneg %p204
        %s387 = sand.u32 %s194, 1
        %s388 = scalar_lea.sflag [#allocation4], %s387
        %s389 = sand.u32 %s194, 1
        %s390 = smul.addr %s389, 8
        %s391 = scalar_lea.vmem [#allocation13], %s390
        %v392 = vld [vmem:[%s331] sm:$0xff]
        %v393 = vld [vmem:[%s340] sm:$0xff]
        %v394 = vld [vmem:[%s340 + $0x8] sm:$0xff]
        %v395 = vld [vmem:[#allocation7] sm:$0xff]
        %v396 = vld [vmem:[#allocation7 + $0x8] sm:$0xff]
        %v397 = vld [vmem:[#allocation7 + $0x10] sm:$0xff]
        %v398 = vld [vmem:[#allocation7 + $0x18] sm:$0xff]
        %v399 = vld [vmem:[#allocation8] sm:$0xff]
        %v400 = vld [vmem:[#allocation8 + $0x8] sm:$0xff]
        %v401 = vld [vmem:[#allocation8 + $0x10] sm:$0xff]
        %v402 = vld [vmem:[#allocation8 + $0x18] sm:$0xff]
        %v403 = vld [vmem:[#allocation10] sm:$0xff]
        %v404 = vld [vmem:[#allocation10 + $0x8] sm:$0xff]
        %v405 = vld [vmem:[#allocation10 + $0x10] sm:$0xff]
        %v406 = vld [vmem:[#allocation10 + $0x18] sm:$0xff]
        %v407 = vld [vmem:[#allocation11] sm:$0xff]
        %v408 = vld [vmem:[#allocation11 + $0x8] sm:$0xff]
        %v409 = vld [vmem:[#allocation11 + $0x10] sm:$0xff]
        %v410 = vld [vmem:[#allocation11 + $0x18] sm:$0xff]
        %v411 = vld [vmem:[%s6] sm:$0x1]
        %vm412 = vcmask 261120
        %v414 = vsel %vm412, %v392, 0
        %416 = vmatprep.subr.mxu0 0.0
        %417 = vmatpush1.msra.mxu0 %v395
        %418 = vmatprep.subr.mxu0 0.0
        %419 = vmatpush1.msra.mxu0 %v396
        %420 = vmatprep.subr.mxu0 0.0
        %421 = vmatpush1.msra.mxu0 %v397
        %422 = vmatprep.subr.mxu0 0.0
        %423 = vmatpush1.msra.mxu0 %v398
        %424 = vmatprep.subr.mxu0 0.0
        %425 = vmatpush1.msra.mxu0 0.0
        %426 = vmatprep.subr.mxu0 0.0
        %427 = vmatpush1.msra.mxu0 0.0
        %428 = vmatprep.subr.mxu0 0.0
        %429 = vmatpush1.msra.mxu0 0.0
        %430 = vmatprep.subr.mxu0 0.0
        %431 = vmatpush1.msra.mxu0 0.0
        %432 = vmatprep.subr.mxu0 0.0
        %433 = vmatpush1.msra.mxu0 0.0
        %434 = vmatprep.subr.mxu0 0.0
        %435 = vmatpush1.msra.mxu0 0.0
        %436 = vmatprep.subr.mxu0 0.0
        %437 = vmatpush1.msra.mxu0 0.0
        %438 = vmatprep.subr.mxu0 0.0
        %439 = vmatpush1.msra.mxu0 0.0
        %440 = vmatprep.subr.mxu0 0.0
        %441 = vmatpush1.msra.mxu0 0.0
        %442 = vmatprep.subr.mxu0 0.0
        %443 = vmatpush1.msra.mxu0 0.0
        %444 = vmatprep.subr.mxu0 0.0
        %445 = vmatpush1.msra.mxu0 0.0
        %446 = vmatprep.subr.mxu0 0.0
        %447 = vmatpush1.msra.mxu0 0.0
        %448 = vmatprep.subr.mxu0 0.0
        %449 = vmatpush1.msra.mxu0 0.0
        %450 = vmatprep.subr.mxu0 0.0
        %451 = vmatpush1.msra.mxu0 0.0
        %452 = vmatprep.subr.mxu0 0.0
        %453 = vmatpush1.msra.mxu0 0.0
        %454 = vmatprep.subr.mxu0 0.0
        %455 = vmatpush1.msra.mxu0 0.0
        %456 = vmatprep.subr.mxu0 0.0
        %457 = vmatpush1.msra.mxu0 0.0
        %458 = vmatprep.subr.mxu0 0.0
        %459 = vmatpush1.msra.mxu0 0.0
        %460 = vmatprep.subr.mxu0 0.0
        %461 = vmatpush1.msra.mxu0 0.0
        %462 = vmatprep.subr.mxu0 0.0
        %463 = vmatpush1.msra.mxu0 0.0
        %464 = vmatprep.subr.mxu0 0.0
        %465 = vmatpush1.msra.mxu0 0.0
        %466 = vmatprep.subr.mxu0 0.0
        %467 = vmatpush1.msra.mxu0 0.0
        %468 = vmatprep.subr.mxu0 0.0
        %469 = vmatpush1.msra.mxu0 0.0
        %470 = vmatprep.subr.mxu0 0.0
        %471 = vmatpush1.msra.mxu0 0.0
        %472 = vmatprep.subr.mxu0 0.0
        %473 = vmatpush1.msra.mxu0 0.0
        %474 = vmatprep.subr.mxu0 0.0
        %475 = vmatpush1.msra.mxu0 0.0
        %476 = vmatprep.subr.mxu0 0.0
        %477 = vmatpush1.msra.mxu0 0.0
        %478 = vmatprep.subr.mxu0 0.0
        %479 = vmatpush1.msra.mxu0 0.0
        %480 = vmatprep.mubr.f32.mxu0 0.0
        %481 = vmatmul.mubr.f32.gmra.mrb[0].mxu0 %v414
        %v482 = vpop.f32.mrb[0].mxu0
        %v483 = vadd.f32 0.0, %v482
        %v484 = vpop.f32.mrb[0].mxu0
        %485 = vdwg.mxu0
        %v487 = vsel %vm412, %v393, 0
        %v490 = vsel %vm412, %v394, 0
        %492 = vmatprep.subr.mxu0 0.0
        %493 = vmatpush1.msra.mxu0 %v399
        %494 = vmatprep.subr.mxu0 0.0
        %495 = vmatpush1.msra.mxu0 %v400
        %496 = vmatprep.subr.mxu0 0.0
        %497 = vmatpush1.msra.mxu0 %v401
        %498 = vmatprep.subr.mxu0 0.0
        %499 = vmatpush1.msra.mxu0 %v402
        %500 = vmatprep.subr.mxu0 0.0
        %501 = vmatpush1.msra.mxu0 0.0
        %502 = vmatprep.subr.mxu0 0.0
        %503 = vmatpush1.msra.mxu0 0.0
        %504 = vmatprep.subr.mxu0 0.0
        %505 = vmatpush1.msra.mxu0 0.0
        %506 = vmatprep.subr.mxu0 0.0
        %507 = vmatpush1.msra.mxu0 0.0
        %508 = vmatprep.subr.mxu0 0.0
        %509 = vmatpush1.msra.mxu0 0.0
        %510 = vmatprep.subr.mxu0 0.0
        %511 = vmatpush1.msra.mxu0 0.0
        %512 = vmatprep.subr.mxu0 0.0
        %513 = vmatpush1.msra.mxu0 0.0
        %514 = vmatprep.subr.mxu0 0.0
        %515 = vmatpush1.msra.mxu0 0.0
        %516 = vmatprep.subr.mxu0 0.0
        %517 = vmatpush1.msra.mxu0 0.0
        %518 = vmatprep.subr.mxu0 0.0
        %519 = vmatpush1.msra.mxu0 0.0
        %520 = vmatprep.subr.mxu0 0.0
        %521 = vmatpush1.msra.mxu0 0.0
        %522 = vmatprep.subr.mxu0 0.0
        %523 = vmatpush1.msra.mxu0 0.0
        %524 = vmatprep.subr.mxu0 0.0
        %525 = vmatpush1.msra.mxu0 0.0
        %526 = vmatprep.subr.mxu0 0.0
        %527 = vmatpush1.msra.mxu0 0.0
        %528 = vmatprep.subr.mxu0 0.0
        %529 = vmatpush1.msra.mxu0 0.0
        %530 = vmatprep.subr.mxu0 0.0
        %531 = vmatpush1.msra.mxu0 0.0
        %532 = vmatprep.subr.mxu0 0.0
        %533 = vmatpush1.msra.mxu0 0.0
        %534 = vmatprep.subr.mxu0 0.0
        %535 = vmatpush1.msra.mxu0 0.0
        %536 = vmatprep.subr.mxu0 0.0
        %537 = vmatpush1.msra.mxu0 0.0
        %538 = vmatprep.subr.mxu0 0.0
        %539 = vmatpush1.msra.mxu0 0.0
        %540 = vmatprep.subr.mxu0 0.0
        %541 = vmatpush1.msra.mxu0 0.0
        %542 = vmatprep.subr.mxu0 0.0
        %543 = vmatpush1.msra.mxu0 0.0
        %544 = vmatprep.subr.mxu0 0.0
        %545 = vmatpush1.msra.mxu0 0.0
        %546 = vmatprep.subr.mxu0 0.0
        %547 = vmatpush1.msra.mxu0 0.0
        %548 = vmatprep.subr.mxu0 0.0
        %549 = vmatpush1.msra.mxu0 0.0
        %550 = vmatprep.subr.mxu0 0.0
        %551 = vmatpush1.msra.mxu0 0.0
        %552 = vmatprep.subr.mxu0 0.0
        %553 = vmatpush1.msra.mxu0 0.0
        %554 = vmatprep.subr.mxu0 0.0
        %555 = vmatpush1.msra.mxu0 0.0
        %556 = vmatprep.mubr.f32.mxu0 0.0
        %557 = vmatmul.mubr.f32.gmra.mrb[0].mxu0 %v487
        %v558 = vpop.f32.mrb[0].mxu0
        %v559 = vadd.f32 0.0, %v558
        %v560 = vpop.f32.mrb[0].mxu0
        %561 = vmatprep.mubr.f32.mxu0 0.0
        %562 = vmatmul.mubr.f32.gmra.mrb[0].mxu0 %v490
        %v563 = vpop.f32.mrb[0].mxu0
        %v564 = vadd.f32 0.0, %v563
        %v565 = vpop.f32.mrb[0].mxu0
        %566 = vdwg.mxu0
        %567 = vmatprep.subr.mxu0 0.0
        %568 = vmatpush1.msra.mxu0 %v403
        %569 = vmatprep.subr.mxu0 0.0
        %570 = vmatpush1.msra.mxu0 %v404
        %571 = vmatprep.subr.mxu0 0.0
        %572 = vmatpush1.msra.mxu0 %v405
        %573 = vmatprep.subr.mxu0 0.0
        %574 = vmatpush1.msra.mxu0 %v406
        %575 = vmatprep.subr.mxu0 0.0
        %576 = vmatpush1.msra.mxu0 0.0
        %577 = vmatprep.subr.mxu0 0.0
        %578 = vmatpush1.msra.mxu0 0.0
        %579 = vmatprep.subr.mxu0 0.0
        %580 = vmatpush1.msra.mxu0 0.0
        %581 = vmatprep.subr.mxu0 0.0
        %582 = vmatpush1.msra.mxu0 0.0
        %583 = vmatprep.subr.mxu0 0.0
        %584 = vmatpush1.msra.mxu0 0.0
        %585 = vmatprep.subr.mxu0 0.0
        %586 = vmatpush1.msra.mxu0 0.0
        %587 = vmatprep.subr.mxu0 0.0
        %588 = vmatpush1.msra.mxu0 0.0
        %589 = vmatprep.subr.mxu0 0.0
        %590 = vmatpush1.msra.mxu0 0.0
        %591 = vmatprep.subr.mxu0 0.0
        %592 = vmatpush1.msra.mxu0 0.0
        %593 = vmatprep.subr.mxu0 0.0
        %594 = vmatpush1.msra.mxu0 0.0
        %595 = vmatprep.subr.mxu0 0.0
        %596 = vmatpush1.msra.mxu0 0.0
        %597 = vmatprep.subr.mxu0 0.0
        %598 = vmatpush1.msra.mxu0 0.0
        %599 = vmatprep.subr.mxu0 0.0
        %600 = vmatpush1.msra.mxu0 0.0
        %601 = vmatprep.subr.mxu0 0.0
        %602 = vmatpush1.msra.mxu0 0.0
        %603 = vmatprep.subr.mxu0 0.0
        %604 = vmatpush1.msra.mxu0 0.0
        %605 = vmatprep.subr.mxu0 0.0
        %606 = vmatpush1.msra.mxu0 0.0
        %607 = vmatprep.subr.mxu0 0.0
        %608 = vmatpush1.msra.mxu0 0.0
        %609 = vmatprep.subr.mxu0 0.0
        %610 = vmatpush1.msra.mxu0 0.0
        %611 = vmatprep.subr.mxu0 0.0
        %612 = vmatpush1.msra.mxu0 0.0
        %613 = vmatprep.subr.mxu0 0.0
        %614 = vmatpush1.msra.mxu0 0.0
        %615 = vmatprep.subr.mxu0 0.0
        %616 = vmatpush1.msra.mxu0 0.0
        %617 = vmatprep.subr.mxu0 0.0
        %618 = vmatpush1.msra.mxu0 0.0
        %619 = vmatprep.subr.mxu0 0.0
        %620 = vmatpush1.msra.mxu0 0.0
        %621 = vmatprep.subr.mxu0 0.0
        %622 = vmatpush1.msra.mxu0 0.0
        %623 = vmatprep.subr.mxu0 0.0
        %624 = vmatpush1.msra.mxu0 0.0
        %625 = vmatprep.subr.mxu0 0.0
        %626 = vmatpush1.msra.mxu0 0.0
        %627 = vmatprep.subr.mxu0 0.0
        %628 = vmatpush1.msra.mxu0 0.0
        %629 = vmatprep.subr.mxu0 0.0
        %630 = vmatpush1.msra.mxu0 0.0
        %631 = vmatprep.mubr.f32.mxu0 0.0
        %632 = vmatmul.mubr.f32.gmra.mrb[0].mxu0 %v487
        %v633 = vpop.f32.mrb[0].mxu0
        %v634 = vadd.f32 0.0, %v633
        %v635 = vpop.f32.mrb[0].mxu0
        %636 = vmatprep.mubr.f32.mxu0 0.0
        %637 = vmatmul.mubr.f32.gmra.mrb[0].mxu0 %v490
        %v638 = vpop.f32.mrb[0].mxu0
        %v639 = vadd.f32 0.0, %v638
        %v640 = vpop.f32.mrb[0].mxu0
        %641 = vdwg.mxu0
        %vm642 = vcmask 64512
        %v644 = vsel %vm642, %v483, 0
        %v647 = vsel %vm642, %v559, 0
        %v650 = vsel %vm642, %v564, 0
        %652 = vmatprep.subr.mxu0 0.0
        %653 = vmatpush1.xpose.msra.mxu0 %v647
        %654 = vmatprep.subr.mxu0 0.0
        %655 = vmatpush1.xpose.msra.mxu0 %v650
        %656 = vmatprep.subr.mxu0 0.0
        %657 = vmatpush1.xpose.msra.mxu0 0.0
        %658 = vmatprep.subr.mxu0 0.0
        %659 = vmatpush1.xpose.msra.mxu0 0.0
        %660 = vmatprep.subr.mxu0 0.0
        %661 = vmatpush1.xpose.msra.mxu0 0.0
        %662 = vmatprep.subr.mxu0 0.0
        %663 = vmatpush1.xpose.msra.mxu0 0.0
        %664 = vmatprep.subr.mxu0 0.0
        %665 = vmatpush1.xpose.msra.mxu0 0.0
        %666 = vmatprep.subr.mxu0 0.0
        %667 = vmatpush1.xpose.msra.mxu0 0.0
        %668 = vmatprep.subr.mxu0 0.0
        %669 = vmatpush1.xpose.msra.mxu0 0.0
        %670 = vmatprep.subr.mxu0 0.0
        %671 = vmatpush1.xpose.msra.mxu0 0.0
        %672 = vmatprep.subr.mxu0 0.0
        %673 = vmatpush1.xpose.msra.mxu0 0.0
        %674 = vmatprep.subr.mxu0 0.0
        %675 = vmatpush1.xpose.msra.mxu0 0.0
        %676 = vmatprep.subr.mxu0 0.0
        %677 = vmatpush1.xpose.msra.mxu0 0.0
        %678 = vmatprep.subr.mxu0 0.0
        %679 = vmatpush1.xpose.msra.mxu0 0.0
        %680 = vmatprep.subr.mxu0 0.0
        %681 = vmatpush1.xpose.msra.mxu0 0.0
        %682 = vmatprep.subr.mxu0 0.0
        %683 = vmatpush1.xpose.msra.mxu0 0.0
        %684 = vmatprep.subr.mxu0 0.0
        %685 = vmatpush1.xpose.msra.mxu0 0.0
        %686 = vmatprep.subr.mxu0 0.0
        %687 = vmatpush1.xpose.msra.mxu0 0.0
        %688 = vmatprep.subr.mxu0 0.0
        %689 = vmatpush1.xpose.msra.mxu0 0.0
        %690 = vmatprep.subr.mxu0 0.0
        %691 = vmatpush1.xpose.msra.mxu0 0.0
        %692 = vmatprep.subr.mxu0 0.0
        %693 = vmatpush1.xpose.msra.mxu0 0.0
        %694 = vmatprep.subr.mxu0 0.0
        %695 = vmatpush1.xpose.msra.mxu0 0.0
        %696 = vmatprep.subr.mxu0 0.0
        %697 = vmatpush1.xpose.msra.mxu0 0.0
        %698 = vmatprep.subr.mxu0 0.0
        %699 = vmatpush1.xpose.msra.mxu0 0.0
        %700 = vmatprep.subr.mxu0 0.0
        %701 = vmatpush1.xpose.msra.mxu0 0.0
        %702 = vmatprep.subr.mxu0 0.0
        %703 = vmatpush1.xpose.msra.mxu0 0.0
        %704 = vmatprep.subr.mxu0 0.0
        %705 = vmatpush1.xpose.msra.mxu0 0.0
        %706 = vmatprep.subr.mxu0 0.0
        %707 = vmatpush1.xpose.msra.mxu0 0.0
        %708 = vmatprep.subr.mxu0 0.0
        %709 = vmatpush1.xpose.msra.mxu0 0.0
        %710 = vmatprep.subr.mxu0 0.0
        %711 = vmatpush1.xpose.msra.mxu0 0.0
        %712 = vmatprep.subr.mxu0 0.0
        %713 = vmatpush1.xpose.msra.mxu0 0.0
        %714 = vmatprep.subr.mxu0 0.0
        %715 = vmatpush1.xpose.msra.mxu0 0.0
        %716 = vmatprep.mubr.f32.mxu0 0.0
        %717 = vmatmul.mubr.f32.gmra.mrb[0].mxu0 %v644
        %v718 = vpop.f32.mrb[0].mxu0
        %v719 = vadd.f32 0.0, %v718
        %v720 = vpop.f32.mrb[0].mxu0
        %721 = vdwg.mxu0
        %v722 = vmul.f32 %v719, 0.35355338
        %vm723 = vcmask 130048
        %v724 = vsel %vm723, %v722, -inf
        %725 = vmax.xlane.f32.xlu0 %v724
        %v726 = vpop.xlane.xlu0 %725
        %v727 = vsub.f32 %v722, %v726
        %v728 = vmul.f32 %v727, 1.442695
        %v729 = vpow.pop %v728
        %v730 = vsel %vm723, %v729, 0.0
        %731 = vadd.xlane.f32.xlu0 %v730
        %v732 = vpop.xlane.xlu0 %731
        %v733 = vrcp.pop %v732
        %v734 = vmul.f32 %v732, %v733
        %v735 = vsub.f32 2.0, %v734
        %v736 = vmul.f32 %v733, %v735
        %v737 = vmul.f32 %v729, %v736
        %v739 = vsel %vm723, %v737, 0
        %741 = vmatprep.subr.mxu0 0.0
        %742 = vmatpush1.msra.mxu0 %v634
        %743 = vmatprep.subr.mxu0 0.0
        %744 = vmatpush1.msra.mxu0 %v639
        %745 = vmatprep.subr.mxu0 0.0
        %746 = vmatpush1.msra.mxu0 0.0
        %747 = vmatprep.subr.mxu0 0.0
        %748 = vmatpush1.msra.mxu0 0.0
        %749 = vmatprep.subr.mxu0 0.0
        %750 = vmatpush1.msra.mxu0 0.0
        %751 = vmatprep.subr.mxu0 0.0
        %752 = vmatpush1.msra.mxu0 0.0
        %753 = vmatprep.subr.mxu0 0.0
        %754 = vmatpush1.msra.mxu0 0.0
        %755 = vmatprep.subr.mxu0 0.0
        %756 = vmatpush1.msra.mxu0 0.0
        %757 = vmatprep.subr.mxu0 0.0
        %758 = vmatpush1.msra.mxu0 0.0
        %759 = vmatprep.subr.mxu0 0.0
        %760 = vmatpush1.msra.mxu0 0.0
        %761 = vmatprep.subr.mxu0 0.0
        %762 = vmatpush1.msra.mxu0 0.0
        %763 = vmatprep.subr.mxu0 0.0
        %764 = vmatpush1.msra.mxu0 0.0
        %765 = vmatprep.subr.mxu0 0.0
        %766 = vmatpush1.msra.mxu0 0.0
        %767 = vmatprep.subr.mxu0 0.0
        %768 = vmatpush1.msra.mxu0 0.0
        %769 = vmatprep.subr.mxu0 0.0
        %770 = vmatpush1.msra.mxu0 0.0
        %771 = vmatprep.subr.mxu0 0.0
        %772 = vmatpush1.msra.mxu0 0.0
        %773 = vmatprep.subr.mxu0 0.0
        %774 = vmatpush1.msra.mxu0 0.0
        %775 = vmatprep.subr.mxu0 0.0
        %776 = vmatpush1.msra.mxu0 0.0
        %777 = vmatprep.subr.mxu0 0.0
        %778 = vmatpush1.msra.mxu0 0.0
        %779 = vmatprep.subr.mxu0 0.0
        %780 = vmatpush1.msra.mxu0 0.0
        %781 = vmatprep.subr.mxu0 0.0
        %782 = vmatpush1.msra.mxu0 0.0
        %783 = vmatprep.subr.mxu0 0.0
        %784 = vmatpush1.msra.mxu0 0.0
        %785 = vmatprep.subr.mxu0 0.0
        %786 = vmatpush1.msra.mxu0 0.0
        %787 = vmatprep.subr.mxu0 0.0
        %788 = vmatpush1.msra.mxu0 0.0
        %789 = vmatprep.subr.mxu0 0.0
        %790 = vmatpush1.msra.mxu0 0.0
        %791 = vmatprep.subr.mxu0 0.0
        %792 = vmatpush1.msra.mxu0 0.0
        %793 = vmatprep.subr.mxu0 0.0
        %794 = vmatpush1.msra.mxu0 0.0
        %795 = vmatprep.subr.mxu0 0.0
        %796 = vmatpush1.msra.mxu0 0.0
        %797 = vmatprep.subr.mxu0 0.0
        %798 = vmatpush1.msra.mxu0 0.0
        %799 = vmatprep.subr.mxu0 0.0
        %800 = vmatpush1.msra.mxu0 0.0
        %801 = vmatprep.subr.mxu0 0.0
        %802 = vmatpush1.msra.mxu0 0.0
        %803 = vmatprep.subr.mxu0 0.0
        %804 = vmatpush1.msra.mxu0 0.0
        %805 = vmatprep.mubr.f32.mxu0 0.0
        %806 = vmatmul.mubr.f32.gmra.mrb[0].mxu0 %v739
        %v807 = vpop.f32.mrb[0].mxu0
        %v808 = vadd.f32 0.0, %v807
        %v809 = vpop.f32.mrb[0].mxu0
        %810 = vdwg.mxu0
        %811 = vrot.lane.b32.xlu0 %v483, 120
        %v812 = vpop.permute.xlu0 %811
        %813 = vrot.lane.b32.xlu0 %v559, 120
        %v814 = vpop.permute.xlu0 %813
        %815 = vrot.lane.b32.xlu0 %v564, 120
        %v816 = vpop.permute.xlu0 %815
        %v817 = vsel %vm642, %v812, 0
        %v819 = vsel %vm642, %v814, 0
        %v821 = vsel %vm642, %v816, 0
        %823 = vmatprep.subr.mxu0 0.0
        %824 = vmatpush1.xpose.msra.mxu0 %v819
        %825 = vmatprep.subr.mxu0 0.0
        %826 = vmatpush1.xpose.msra.mxu0 %v821
        %827 = vmatprep.subr.mxu0 0.0
        %828 = vmatpush1.xpose.msra.mxu0 0.0
        %829 = vmatprep.subr.mxu0 0.0
        %830 = vmatpush1.xpose.msra.mxu0 0.0
        %831 = vmatprep.subr.mxu0 0.0
        %832 = vmatpush1.xpose.msra.mxu0 0.0
        %833 = vmatprep.subr.mxu0 0.0
        %834 = vmatpush1.xpose.msra.mxu0 0.0
        %835 = vmatprep.subr.mxu0 0.0
        %836 = vmatpush1.xpose.msra.mxu0 0.0
        %837 = vmatprep.subr.mxu0 0.0
        %838 = vmatpush1.xpose.msra.mxu0 0.0
        %839 = vmatprep.subr.mxu0 0.0
        %840 = vmatpush1.xpose.msra.mxu0 0.0
        %841 = vmatprep.subr.mxu0 0.0
        %842 = vmatpush1.xpose.msra.mxu0 0.0
        %843 = vmatprep.subr.mxu0 0.0
        %844 = vmatpush1.xpose.msra.mxu0 0.0
        %845 = vmatprep.subr.mxu0 0.0
        %846 = vmatpush1.xpose.msra.mxu0 0.0
        %847 = vmatprep.subr.mxu0 0.0
        %848 = vmatpush1.xpose.msra.mxu0 0.0
        %849 = vmatprep.subr.mxu0 0.0
        %850 = vmatpush1.xpose.msra.mxu0 0.0
        %851 = vmatprep.subr.mxu0 0.0
        %852 = vmatpush1.xpose.msra.mxu0 0.0
        %853 = vmatprep.subr.mxu0 0.0
        %854 = vmatpush1.xpose.msra.mxu0 0.0
        %855 = vmatprep.subr.mxu0 0.0
        %856 = vmatpush1.xpose.msra.mxu0 0.0
        %857 = vmatprep.subr.mxu0 0.0
        %858 = vmatpush1.xpose.msra.mxu0 0.0
        %859 = vmatprep.subr.mxu0 0.0
        %860 = vmatpush1.xpose.msra.mxu0 0.0
        %861 = vmatprep.subr.mxu0 0.0
        %862 = vmatpush1.xpose.msra.mxu0 0.0
        %863 = vmatprep.subr.mxu0 0.0
        %864 = vmatpush1.xpose.msra.mxu0 0.0
        %865 = vmatprep.subr.mxu0 0.0
        %866 = vmatpush1.xpose.msra.mxu0 0.0
        %867 = vmatprep.subr.mxu0 0.0
        %868 = vmatpush1.xpose.msra.mxu0 0.0
        %869 = vmatprep.subr.mxu0 0.0
        %870 = vmatpush1.xpose.msra.mxu0 0.0
        %871 = vmatprep.subr.mxu0 0.0
        %872 = vmatpush1.xpose.msra.mxu0 0.0
        %873 = vmatprep.subr.mxu0 0.0
        %874 = vmatpush1.xpose.msra.mxu0 0.0
        %875 = vmatprep.subr.mxu0 0.0
        %876 = vmatpush1.xpose.msra.mxu0 0.0
        %877 = vmatprep.subr.mxu0 0.0
        %878 = vmatpush1.xpose.msra.mxu0 0.0
        %879 = vmatprep.subr.mxu0 0.0
        %880 = vmatpush1.xpose.msra.mxu0 0.0
        %881 = vmatprep.subr.mxu0 0.0
        %882 = vmatpush1.xpose.msra.mxu0 0.0
        %883 = vmatprep.subr.mxu0 0.0
        %884 = vmatpush1.xpose.msra.mxu0 0.0
        %885 = vmatprep.subr.mxu0 0.0
        %886 = vmatpush1.xpose.msra.mxu0 0.0
        %887 = vmatprep.mubr.f32.mxu0 0.0
        %888 = vmatmul.mubr.f32.gmra.mrb[0].mxu0 %v817
        %v889 = vpop.f32.mrb[0].mxu0
        %v890 = vadd.f32 0.0, %v889
        %v891 = vpop.f32.mrb[0].mxu0
        %892 = vdwg.mxu0
        %v893 = vmul.f32 %v890, 0.35355338
        %v894 = vsel %vm723, %v893, -inf
        %895 = vmax.xlane.f32.xlu0 %v894
        %v896 = vpop.xlane.xlu0 %895
        %v897 = vsub.f32 %v893, %v896
        %v898 = vmul.f32 %v897, 1.442695
        %v899 = vpow.pop %v898
        %v900 = vsel %vm723, %v899, 0.0
        %901 = vadd.xlane.f32.xlu0 %v900
        %v902 = vpop.xlane.xlu0 %901
        %v903 = vrcp.pop %v902
        %v904 = vmul.f32 %v902, %v903
        %v905 = vsub.f32 2.0, %v904
        %v906 = vmul.f32 %v903, %v905
        %v907 = vmul.f32 %v899, %v906
        %910 = vrot.lane.b32.xlu0 %v634, 120
        %v911 = vpop.permute.xlu0 %910
        %912 = vrot.lane.b32.xlu0 %v639, 120
        %v913 = vpop.permute.xlu0 %912
        %v917 = vsel %vm723, %v907, 0
        %919 = vmatprep.subr.mxu0 0.0
        %920 = vmatpush1.msra.mxu0 %v911
        %921 = vmatprep.subr.mxu0 0.0
        %922 = vmatpush1.msra.mxu0 %v913
        %923 = vmatprep.subr.mxu0 0.0
        %924 = vmatpush1.msra.mxu0 0.0
        %925 = vmatprep.subr.mxu0 0.0
        %926 = vmatpush1.msra.mxu0 0.0
        %927 = vmatprep.subr.mxu0 0.0
        %928 = vmatpush1.msra.mxu0 0.0
        %929 = vmatprep.subr.mxu0 0.0
        %930 = vmatpush1.msra.mxu0 0.0
        %931 = vmatprep.subr.mxu0 0.0
        %932 = vmatpush1.msra.mxu0 0.0
        %933 = vmatprep.subr.mxu0 0.0
        %934 = vmatpush1.msra.mxu0 0.0
        %935 = vmatprep.subr.mxu0 0.0
        %936 = vmatpush1.msra.mxu0 0.0
        %937 = vmatprep.subr.mxu0 0.0
        %938 = vmatpush1.msra.mxu0 0.0
        %939 = vmatprep.subr.mxu0 0.0
        %940 = vmatpush1.msra.mxu0 0.0
        %941 = vmatprep.subr.mxu0 0.0
        %942 = vmatpush1.msra.mxu0 0.0
        %943 = vmatprep.subr.mxu0 0.0
        %944 = vmatpush1.msra.mxu0 0.0
        %945 = vmatprep.subr.mxu0 0.0
        %946 = vmatpush1.msra.mxu0 0.0
        %947 = vmatprep.subr.mxu0 0.0
        %948 = vmatpush1.msra.mxu0 0.0
        %949 = vmatprep.subr.mxu0 0.0
        %950 = vmatpush1.msra.mxu0 0.0
        %951 = vmatprep.subr.mxu0 0.0
        %952 = vmatpush1.msra.mxu0 0.0
        %953 = vmatprep.subr.mxu0 0.0
        %954 = vmatpush1.msra.mxu0 0.0
        %955 = vmatprep.subr.mxu0 0.0
        %956 = vmatpush1.msra.mxu0 0.0
        %957 = vmatprep.subr.mxu0 0.0
        %958 = vmatpush1.msra.mxu0 0.0
        %959 = vmatprep.subr.mxu0 0.0
        %960 = vmatpush1.msra.mxu0 0.0
        %961 = vmatprep.subr.mxu0 0.0
        %962 = vmatpush1.msra.mxu0 0.0
        %963 = vmatprep.subr.mxu0 0.0
        %964 = vmatpush1.msra.mxu0 0.0
        %965 = vmatprep.subr.mxu0 0.0
        %966 = vmatpush1.msra.mxu0 0.0
        %967 = vmatprep.subr.mxu0 0.0
        %968 = vmatpush1.msra.mxu0 0.0
        %969 = vmatprep.subr.mxu0 0.0
        %970 = vmatpush1.msra.mxu0 0.0
        %971 = vmatprep.subr.mxu0 0.0
        %972 = vmatpush1.msra.mxu0 0.0
        %973 = vmatprep.subr.mxu0 0.0
        %974 = vmatpush1.msra.mxu0 0.0
        %975 = vmatprep.subr.mxu0 0.0
        %976 = vmatpush1.msra.mxu0 0.0
        %977 = vmatprep.subr.mxu0 0.0
        %978 = vmatpush1.msra.mxu0 0.0
        %979 = vmatprep.subr.mxu0 0.0
        %980 = vmatpush1.msra.mxu0 0.0
        %981 = vmatprep.subr.mxu0 0.0
        %982 = vmatpush1.msra.mxu0 0.0
        %983 = vmatprep.mubr.f32.mxu0 0.0
        %984 = vmatmul.mubr.f32.gmra.mrb[0].mxu0 %v917
        %v985 = vpop.f32.mrb[0].mxu0
        %v986 = vadd.f32 0.0, %v985
        %v987 = vpop.f32.mrb[0].mxu0
        %988 = vdwg.mxu0
        %989 = vrot.lane.b32.xlu0 %v483, 112
        %v990 = vpop.permute.xlu0 %989
        %991 = vrot.lane.b32.xlu0 %v559, 112
        %v992 = vpop.permute.xlu0 %991
        %993 = vrot.lane.b32.xlu0 %v564, 112
        %v994 = vpop.permute.xlu0 %993
        %v995 = vsel %vm642, %v990, 0
        %v997 = vsel %vm642, %v992, 0
        %v999 = vsel %vm642, %v994, 0
        %1001 = vmatprep.subr.mxu0 0.0
        %1002 = vmatpush1.xpose.msra.mxu0 %v997
        %1003 = vmatprep.subr.mxu0 0.0
        %1004 = vmatpush1.xpose.msra.mxu0 %v999
        %1005 = vmatprep.subr.mxu0 0.0
        %1006 = vmatpush1.xpose.msra.mxu0 0.0
        %1007 = vmatprep.subr.mxu0 0.0
        %1008 = vmatpush1.xpose.msra.mxu0 0.0
        %1009 = vmatprep.subr.mxu0 0.0
        %1010 = vmatpush1.xpose.msra.mxu0 0.0
        %1011 = vmatprep.subr.mxu0 0.0
        %1012 = vmatpush1.xpose.msra.mxu0 0.0
        %1013 = vmatprep.subr.mxu0 0.0
        %1014 = vmatpush1.xpose.msra.mxu0 0.0
        %1015 = vmatprep.subr.mxu0 0.0
        %1016 = vmatpush1.xpose.msra.mxu0 0.0
        %1017 = vmatprep.subr.mxu0 0.0
        %1018 = vmatpush1.xpose.msra.mxu0 0.0
        %1019 = vmatprep.subr.mxu0 0.0
        %1020 = vmatpush1.xpose.msra.mxu0 0.0
        %1021 = vmatprep.subr.mxu0 0.0
        %1022 = vmatpush1.xpose.msra.mxu0 0.0
        %1023 = vmatprep.subr.mxu0 0.0
        %1024 = vmatpush1.xpose.msra.mxu0 0.0
        %1025 = vmatprep.subr.mxu0 0.0
        %1026 = vmatpush1.xpose.msra.mxu0 0.0
        %1027 = vmatprep.subr.mxu0 0.0
        %1028 = vmatpush1.xpose.msra.mxu0 0.0
        %1029 = vmatprep.subr.mxu0 0.0
        %1030 = vmatpush1.xpose.msra.mxu0 0.0
        %1031 = vmatprep.subr.mxu0 0.0
        %1032 = vmatpush1.xpose.msra.mxu0 0.0
        %1033 = vmatprep.subr.mxu0 0.0
        %1034 = vmatpush1.xpose.msra.mxu0 0.0
        %1035 = vmatprep.subr.mxu0 0.0
        %1036 = vmatpush1.xpose.msra.mxu0 0.0
        %1037 = vmatprep.subr.mxu0 0.0
        %1038 = vmatpush1.xpose.msra.mxu0 0.0
        %1039 = vmatprep.subr.mxu0 0.0
        %1040 = vmatpush1.xpose.msra.mxu0 0.0
        %1041 = vmatprep.subr.mxu0 0.0
        %1042 = vmatpush1.xpose.msra.mxu0 0.0
        %1043 = vmatprep.subr.mxu0 0.0
        %1044 = vmatpush1.xpose.msra.mxu0 0.0
        %1045 = vmatprep.subr.mxu0 0.0
        %1046 = vmatpush1.xpose.msra.mxu0 0.0
        %1047 = vmatprep.subr.mxu0 0.0
        %1048 = vmatpush1.xpose.msra.mxu0 0.0
        %1049 = vmatprep.subr.mxu0 0.0
        %1050 = vmatpush1.xpose.msra.mxu0 0.0
        %1051 = vmatprep.subr.mxu0 0.0
        %1052 = vmatpush1.xpose.msra.mxu0 0.0
        %1053 = vmatprep.subr.mxu0 0.0
        %1054 = vmatpush1.xpose.msra.mxu0 0.0
        %1055 = vmatprep.subr.mxu0 0.0
        %1056 = vmatpush1.xpose.msra.mxu0 0.0
        %1057 = vmatprep.subr.mxu0 0.0
        %1058 = vmatpush1.xpose.msra.mxu0 0.0
        %1059 = vmatprep.subr.mxu0 0.0
        %1060 = vmatpush1.xpose.msra.mxu0 0.0
        %1061 = vmatprep.subr.mxu0 0.0
        %1062 = vmatpush1.xpose.msra.mxu0 0.0
        %1063 = vmatprep.subr.mxu0 0.0
        %1064 = vmatpush1.xpose.msra.mxu0 0.0
        %1065 = vmatprep.mubr.f32.mxu0 0.0
        %1066 = vmatmul.mubr.f32.gmra.mrb[0].mxu0 %v995
        %v1067 = vpop.f32.mrb[0].mxu0
        %v1068 = vadd.f32 0.0, %v1067
        %v1069 = vpop.f32.mrb[0].mxu0
        %1070 = vdwg.mxu0
        %v1071 = vmul.f32 %v1068, 0.35355338
        %v1072 = vsel %vm723, %v1071, -inf
        %1073 = vmax.xlane.f32.xlu0 %v1072
        %v1074 = vpop.xlane.xlu0 %1073
        %v1075 = vsub.f32 %v1071, %v1074
        %v1076 = vmul.f32 %v1075, 1.442695
        %v1077 = vpow.pop %v1076
        %v1078 = vsel %vm723, %v1077, 0.0
        %1079 = vadd.xlane.f32.xlu0 %v1078
        %v1080 = vpop.xlane.xlu0 %1079
        %v1081 = vrcp.pop %v1080
        %v1082 = vmul.f32 %v1080, %v1081
        %v1083 = vsub.f32 2.0, %v1082
        %v1084 = vmul.f32 %v1081, %v1083
        %v1085 = vmul.f32 %v1077, %v1084
        %1086 = vrot.lane.b32.xlu0 %v634, 112
        %v1087 = vpop.permute.xlu0 %1086
        %1088 = vrot.lane.b32.xlu0 %v639, 112
        %v1089 = vpop.permute.xlu0 %1088
        %v1093 = vsel %vm723, %v1085, 0
        %1095 = vmatprep.subr.mxu0 0.0
        %1096 = vmatpush1.msra.mxu0 %v1087
        %1097 = vmatprep.subr.mxu0 0.0
        %1098 = vmatpush1.msra.mxu0 %v1089
        %1099 = vmatprep.subr.mxu0 0.0
        %1100 = vmatpush1.msra.mxu0 0.0
        %1101 = vmatprep.subr.mxu0 0.0
        %1102 = vmatpush1.msra.mxu0 0.0
        %1103 = vmatprep.subr.mxu0 0.0
        %1104 = vmatpush1.msra.mxu0 0.0
        %1105 = vmatprep.subr.mxu0 0.0
        %1106 = vmatpush1.msra.mxu0 0.0
        %1107 = vmatprep.subr.mxu0 0.0
        %1108 = vmatpush1.msra.mxu0 0.0
        %1109 = vmatprep.subr.mxu0 0.0
        %1110 = vmatpush1.msra.mxu0 0.0
        %1111 = vmatprep.subr.mxu0 0.0
        %1112 = vmatpush1.msra.mxu0 0.0
        %1113 = vmatprep.subr.mxu0 0.0
        %1114 = vmatpush1.msra.mxu0 0.0
        %1115 = vmatprep.subr.mxu0 0.0
        %1116 = vmatpush1.msra.mxu0 0.0
        %1117 = vmatprep.subr.mxu0 0.0
        %1118 = vmatpush1.msra.mxu0 0.0
        %1119 = vmatprep.subr.mxu0 0.0
        %1120 = vmatpush1.msra.mxu0 0.0
        %1121 = vmatprep.subr.mxu0 0.0
        %1122 = vmatpush1.msra.mxu0 0.0
        %1123 = vmatprep.subr.mxu0 0.0
        %1124 = vmatpush1.msra.mxu0 0.0
        %1125 = vmatprep.subr.mxu0 0.0
        %1126 = vmatpush1.msra.mxu0 0.0
        %1127 = vmatprep.subr.mxu0 0.0
        %1128 = vmatpush1.msra.mxu0 0.0
        %1129 = vmatprep.subr.mxu0 0.0
        %1130 = vmatpush1.msra.mxu0 0.0
        %1131 = vmatprep.subr.mxu0 0.0
        %1132 = vmatpush1.msra.mxu0 0.0
        %1133 = vmatprep.subr.mxu0 0.0
        %1134 = vmatpush1.msra.mxu0 0.0
        %1135 = vmatprep.subr.mxu0 0.0
        %1136 = vmatpush1.msra.mxu0 0.0
        %1137 = vmatprep.subr.mxu0 0.0
        %1138 = vmatpush1.msra.mxu0 0.0
        %1139 = vmatprep.subr.mxu0 0.0
        %1140 = vmatpush1.msra.mxu0 0.0
        %1141 = vmatprep.subr.mxu0 0.0
        %1142 = vmatpush1.msra.mxu0 0.0
        %1143 = vmatprep.subr.mxu0 0.0
        %1144 = vmatpush1.msra.mxu0 0.0
        %1145 = vmatprep.subr.mxu0 0.0
        %1146 = vmatpush1.msra.mxu0 0.0
        %1147 = vmatprep.subr.mxu0 0.0
        %1148 = vmatpush1.msra.mxu0 0.0
        %1149 = vmatprep.subr.mxu0 0.0
        %1150 = vmatpush1.msra.mxu0 0.0
        %1151 = vmatprep.subr.mxu0 0.0
        %1152 = vmatpush1.msra.mxu0 0.0
        %1153 = vmatprep.subr.mxu0 0.0
        %1154 = vmatpush1.msra.mxu0 0.0
        %1155 = vmatprep.subr.mxu0 0.0
        %1156 = vmatpush1.msra.mxu0 0.0
        %1157 = vmatprep.subr.mxu0 0.0
        %1158 = vmatpush1.msra.mxu0 0.0
        %1159 = vmatprep.mubr.f32.mxu0 0.0
        %1160 = vmatmul.mubr.f32.gmra.mrb[0].mxu0 %v1093
        %v1161 = vpop.f32.mrb[0].mxu0
        %v1162 = vadd.f32 0.0, %v1161
        %v1163 = vpop.f32.mrb[0].mxu0
        %1164 = vdwg.mxu0
        %1165 = vrot.lane.b32.xlu0 %v483, 104
        %v1166 = vpop.permute.xlu0 %1165
        %1167 = vrot.lane.b32.xlu0 %v559, 104
        %v1168 = vpop.permute.xlu0 %1167
        %1169 = vrot.lane.b32.xlu0 %v564, 104
        %v1170 = vpop.permute.xlu0 %1169
        %v1171 = vsel %vm642, %v1166, 0
        %v1173 = vsel %vm642, %v1168, 0
        %v1175 = vsel %vm642, %v1170, 0
        %1177 = vmatprep.subr.mxu0 0.0
        %1178 = vmatpush1.xpose.msra.mxu0 %v1173
        %1179 = vmatprep.subr.mxu0 0.0
        %1180 = vmatpush1.xpose.msra.mxu0 %v1175
        %1181 = vmatprep.subr.mxu0 0.0
        %1182 = vmatpush1.xpose.msra.mxu0 0.0
        %1183 = vmatprep.subr.mxu0 0.0
        %1184 = vmatpush1.xpose.msra.mxu0 0.0
        %1185 = vmatprep.subr.mxu0 0.0
        %1186 = vmatpush1.xpose.msra.mxu0 0.0
        %1187 = vmatprep.subr.mxu0 0.0
        %1188 = vmatpush1.xpose.msra.mxu0 0.0
        %1189 = vmatprep.subr.mxu0 0.0
        %1190 = vmatpush1.xpose.msra.mxu0 0.0
        %1191 = vmatprep.subr.mxu0 0.0
        %1192 = vmatpush1.xpose.msra.mxu0 0.0
        %1193 = vmatprep.subr.mxu0 0.0
        %1194 = vmatpush1.xpose.msra.mxu0 0.0
        %1195 = vmatprep.subr.mxu0 0.0
        %1196 = vmatpush1.xpose.msra.mxu0 0.0
        %1197 = vmatprep.subr.mxu0 0.0
        %1198 = vmatpush1.xpose.msra.mxu0 0.0
        %1199 = vmatprep.subr.mxu0 0.0
        %1200 = vmatpush1.xpose.msra.mxu0 0.0
        %1201 = vmatprep.subr.mxu0 0.0
        %1202 = vmatpush1.xpose.msra.mxu0 0.0
        %1203 = vmatprep.subr.mxu0 0.0
        %1204 = vmatpush1.xpose.msra.mxu0 0.0
        %1205 = vmatprep.subr.mxu0 0.0
        %1206 = vmatpush1.xpose.msra.mxu0 0.0
        %1207 = vmatprep.subr.mxu0 0.0
        %1208 = vmatpush1.xpose.msra.mxu0 0.0
        %1209 = vmatprep.subr.mxu0 0.0
        %1210 = vmatpush1.xpose.msra.mxu0 0.0
        %1211 = vmatprep.subr.mxu0 0.0
        %1212 = vmatpush1.xpose.msra.mxu0 0.0
        %1213 = vmatprep.subr.mxu0 0.0
        %1214 = vmatpush1.xpose.msra.mxu0 0.0
        %1215 = vmatprep.subr.mxu0 0.0
        %1216 = vmatpush1.xpose.msra.mxu0 0.0
        %1217 = vmatprep.subr.mxu0 0.0
        %1218 = vmatpush1.xpose.msra.mxu0 0.0
        %1219 = vmatprep.subr.mxu0 0.0
        %1220 = vmatpush1.xpose.msra.mxu0 0.0
        %1221 = vmatprep.subr.mxu0 0.0
        %1222 = vmatpush1.xpose.msra.mxu0 0.0
        %1223 = vmatprep.subr.mxu0 0.0
        %1224 = vmatpush1.xpose.msra.mxu0 0.0
        %1225 = vmatprep.subr.mxu0 0.0
        %1226 = vmatpush1.xpose.msra.mxu0 0.0
        %1227 = vmatprep.subr.mxu0 0.0
        %1228 = vmatpush1.xpose.msra.mxu0 0.0
        %1229 = vmatprep.subr.mxu0 0.0
        %1230 = vmatpush1.xpose.msra.mxu0 0.0
        %1231 = vmatprep.subr.mxu0 0.0
        %1232 = vmatpush1.xpose.msra.mxu0 0.0
        %1233 = vmatprep.subr.mxu0 0.0
        %1234 = vmatpush1.xpose.msra.mxu0 0.0
        %1235 = vmatprep.subr.mxu0 0.0
        %1236 = vmatpush1.xpose.msra.mxu0 0.0
        %1237 = vmatprep.subr.mxu0 0.0
        %1238 = vmatpush1.xpose.msra.mxu0 0.0
        %1239 = vmatprep.subr.mxu0 0.0
        %1240 = vmatpush1.xpose.msra.mxu0 0.0
        %1241 = vmatprep.mubr.f32.mxu0 0.0
        %1242 = vmatmul.mubr.f32.gmra.mrb[0].mxu0 %v1171
        %v1243 = vpop.f32.mrb[0].mxu0
        %v1244 = vadd.f32 0.0, %v1243
        %v1245 = vpop.f32.mrb[0].mxu0
        %1246 = vdwg.mxu0
        %v1247 = vmul.f32 %v1244, 0.35355338
        %v1248 = vsel %vm723, %v1247, -inf
        %1249 = vmax.xlane.f32.xlu0 %v1248
        %v1250 = vpop.xlane.xlu0 %1249
        %v1251 = vsub.f32 %v1247, %v1250
        %v1252 = vmul.f32 %v1251, 1.442695
        %v1253 = vpow.pop %v1252
        %v1254 = vsel %vm723, %v1253, 0.0
        %1255 = vadd.xlane.f32.xlu0 %v1254
        %v1256 = vpop.xlane.xlu0 %1255
        %v1257 = vrcp.pop %v1256
        %v1258 = vmul.f32 %v1256, %v1257
        %v1259 = vsub.f32 2.0, %v1258
        %v1260 = vmul.f32 %v1257, %v1259
        %v1261 = vmul.f32 %v1253, %v1260
        %1262 = vrot.lane.b32.xlu0 %v634, 104
        %v1263 = vpop.permute.xlu0 %1262
        %1264 = vrot.lane.b32.xlu0 %v639, 104
        %v1265 = vpop.permute.xlu0 %1264
        %v1269 = vsel %vm723, %v1261, 0
        %1271 = vmatprep.subr.mxu0 0.0
        %1272 = vmatpush1.msra.mxu0 %v1263
        %1273 = vmatprep.subr.mxu0 0.0
        %1274 = vmatpush1.msra.mxu0 %v1265
        %1275 = vmatprep.subr.mxu0 0.0
        %1276 = vmatpush1.msra.mxu0 0.0
        %1277 = vmatprep.subr.mxu0 0.0
        %1278 = vmatpush1.msra.mxu0 0.0
        %1279 = vmatprep.subr.mxu0 0.0
        %1280 = vmatpush1.msra.mxu0 0.0
        %1281 = vmatprep.subr.mxu0 0.0
        %1282 = vmatpush1.msra.mxu0 0.0
        %1283 = vmatprep.subr.mxu0 0.0
        %1284 = vmatpush1.msra.mxu0 0.0
        %1285 = vmatprep.subr.mxu0 0.0
        %1286 = vmatpush1.msra.mxu0 0.0
        %1287 = vmatprep.subr.mxu0 0.0
        %1288 = vmatpush1.msra.mxu0 0.0
        %1289 = vmatprep.subr.mxu0 0.0
        %1290 = vmatpush1.msra.mxu0 0.0
        %1291 = vmatprep.subr.mxu0 0.0
        %1292 = vmatpush1.msra.mxu0 0.0
        %1293 = vmatprep.subr.mxu0 0.0
        %1294 = vmatpush1.msra.mxu0 0.0
        %1295 = vmatprep.subr.mxu0 0.0
        %1296 = vmatpush1.msra.mxu0 0.0
        %1297 = vmatprep.subr.mxu0 0.0
        %1298 = vmatpush1.msra.mxu0 0.0
        %1299 = vmatprep.subr.mxu0 0.0
        %1300 = vmatpush1.msra.mxu0 0.0
        %1301 = vmatprep.subr.mxu0 0.0
        %1302 = vmatpush1.msra.mxu0 0.0
        %1303 = vmatprep.subr.mxu0 0.0
        %1304 = vmatpush1.msra.mxu0 0.0
        %1305 = vmatprep.subr.mxu0 0.0
        %1306 = vmatpush1.msra.mxu0 0.0
        %1307 = vmatprep.subr.mxu0 0.0
        %1308 = vmatpush1.msra.mxu0 0.0
        %1309 = vmatprep.subr.mxu0 0.0
        %1310 = vmatpush1.msra.mxu0 0.0
        %1311 = vmatprep.subr.mxu0 0.0
        %1312 = vmatpush1.msra.mxu0 0.0
        %1313 = vmatprep.subr.mxu0 0.0
        %1314 = vmatpush1.msra.mxu0 0.0
        %1315 = vmatprep.subr.mxu0 0.0
        %1316 = vmatpush1.msra.mxu0 0.0
        %1317 = vmatprep.subr.mxu0 0.0
        %1318 = vmatpush1.msra.mxu0 0.0
        %1319 = vmatprep.subr.mxu0 0.0
        %1320 = vmatpush1.msra.mxu0 0.0
        %1321 = vmatprep.subr.mxu0 0.0
        %1322 = vmatpush1.msra.mxu0 0.0
        %1323 = vmatprep.subr.mxu0 0.0
        %1324 = vmatpush1.msra.mxu0 0.0
        %1325 = vmatprep.subr.mxu0 0.0
        %1326 = vmatpush1.msra.mxu0 0.0
        %1327 = vmatprep.subr.mxu0 0.0
        %1328 = vmatpush1.msra.mxu0 0.0
        %1329 = vmatprep.subr.mxu0 0.0
        %1330 = vmatpush1.msra.mxu0 0.0
        %1331 = vmatprep.subr.mxu0 0.0
        %1332 = vmatpush1.msra.mxu0 0.0
        %1333 = vmatprep.subr.mxu0 0.0
        %1334 = vmatpush1.msra.mxu0 0.0
        %1335 = vmatprep.mubr.f32.mxu0 0.0
        %1336 = vmatmul.mubr.f32.gmra.mrb[0].mxu0 %v1269
        %v1337 = vpop.f32.mrb[0].mxu0
        %v1338 = vadd.f32 0.0, %v1337
        %v1339 = vpop.f32.mrb[0].mxu0
        %1340 = vdwg.mxu0
        %1342 = vrot.lane.b32.xlu0 %v986, 8
        %v1343 = vpop.permute.xlu0 %1342
        %1346 = vrot.lane.b32.xlu0 %v1162, 16
        %v1347 = vpop.permute.xlu0 %1346
        %1350 = vrot.lane.b32.xlu0 %v1338, 24
        %v1351 = vpop.permute.xlu0 %1350
        %v1353 = vsel %vm642, %v808, %v1343
        %v1354 = vsel %vm723, %v1353, %v1347
        %vm1355 = vcmask 195584
        %v1356 = vsel %vm1355, %v1354, %v1351
        %v1358 = vlaneseq
        %v1359 = vshrl.u32 %v1358, 7
        %v1360 = vsub.s32 0, %v1359
        %v1361 = vrot.slane %v411, %v1360
        %v1364 = vsel %vm412, %v1356, 0
        %1366 = vmatprep.subr.mxu0 0.0
        %1367 = vmatpush1.msra.mxu0 %v407
        %1368 = vmatprep.subr.mxu0 0.0
        %1369 = vmatpush1.msra.mxu0 %v408
        %1370 = vmatprep.subr.mxu0 0.0
        %1371 = vmatpush1.msra.mxu0 %v409
        %1372 = vmatprep.subr.mxu0 0.0
        %1373 = vmatpush1.msra.mxu0 %v410
        %1374 = vmatprep.subr.mxu0 0.0
        %1375 = vmatpush1.msra.mxu0 0.0
        %1376 = vmatprep.subr.mxu0 0.0
        %1377 = vmatpush1.msra.mxu0 0.0
        %1378 = vmatprep.subr.mxu0 0.0
        %1379 = vmatpush1.msra.mxu0 0.0
        %1380 = vmatprep.subr.mxu0 0.0
        %1381 = vmatpush1.msra.mxu0 0.0
        %1382 = vmatprep.subr.mxu0 0.0
        %1383 = vmatpush1.msra.mxu0 0.0
        %1384 = vmatprep.subr.mxu0 0.0
        %1385 = vmatpush1.msra.mxu0 0.0
        %1386 = vmatprep.subr.mxu0 0.0
        %1387 = vmatpush1.msra.mxu0 0.0
        %1388 = vmatprep.subr.mxu0 0.0
        %1389 = vmatpush1.msra.mxu0 0.0
        %1390 = vmatprep.subr.mxu0 0.0
        %1391 = vmatpush1.msra.mxu0 0.0
        %1392 = vmatprep.subr.mxu0 0.0
        %1393 = vmatpush1.msra.mxu0 0.0
        %1394 = vmatprep.subr.mxu0 0.0
        %1395 = vmatpush1.msra.mxu0 0.0
        %1396 = vmatprep.subr.mxu0 0.0
        %1397 = vmatpush1.msra.mxu0 0.0
        %1398 = vmatprep.subr.mxu0 0.0
        %1399 = vmatpush1.msra.mxu0 0.0
        %1400 = vmatprep.subr.mxu0 0.0
        %1401 = vmatpush1.msra.mxu0 0.0
        %1402 = vmatprep.subr.mxu0 0.0
        %1403 = vmatpush1.msra.mxu0 0.0
        %1404 = vmatprep.subr.mxu0 0.0
        %1405 = vmatpush1.msra.mxu0 0.0
        %1406 = vmatprep.subr.mxu0 0.0
        %1407 = vmatpush1.msra.mxu0 0.0
        %1408 = vmatprep.subr.mxu0 0.0
        %1409 = vmatpush1.msra.mxu0 0.0
        %1410 = vmatprep.subr.mxu0 0.0
        %1411 = vmatpush1.msra.mxu0 0.0
        %1412 = vmatprep.subr.mxu0 0.0
        %1413 = vmatpush1.msra.mxu0 0.0
        %1414 = vmatprep.subr.mxu0 0.0
        %1415 = vmatpush1.msra.mxu0 0.0
        %1416 = vmatprep.subr.mxu0 0.0
        %1417 = vmatpush1.msra.mxu0 0.0
        %1418 = vmatprep.subr.mxu0 0.0
        %1419 = vmatpush1.msra.mxu0 0.0
        %1420 = vmatprep.subr.mxu0 0.0
        %1421 = vmatpush1.msra.mxu0 0.0
        %1422 = vmatprep.subr.mxu0 0.0
        %1423 = vmatpush1.msra.mxu0 0.0
        %1424 = vmatprep.subr.mxu0 0.0
        %1425 = vmatpush1.msra.mxu0 0.0
        %1426 = vmatprep.subr.mxu0 0.0
        %1427 = vmatpush1.msra.mxu0 0.0
        %1428 = vmatprep.subr.mxu0 0.0
        %1429 = vmatpush1.msra.mxu0 0.0
        %1430 = vmatprep.mubr.f32.mxu0 0.0
        %1431 = vmatmul.mubr.f32.gmra.mrb[0].mxu0 %v1364
        %v1432 = vpop.f32.mrb[0].mxu0
        %v1433 = vadd.f32 %v1361, %v1432
        %v1434 = vpop.f32.mrb[0].mxu0
        %1435 = vdwg.mxu0
        %1436 = vst.msk [vmem:[%s391] sm:$0xff] %vm412, %v1433
        %s1437 = sand.u32 %s194, 1
        %s1438 = scalar_lea.sflag [#allocation4], %s1437
        %s1439 = sand.u32 %s194, 1
        %s1440 = smul.addr %s1439, 8
        %s1441 = scalar_lea.vmem [#allocation13], %s1440
        // Predicated region
        $region73: #{tpu_custom_call.1} parent=47 // pred_check
          %p1442 = pneg %p204
        $region74: #{tpu_custom_call.1} parent=47 // pred_check_branch
          %1444 = sbr.rel (%p1442) target = $region76
        $region75: #{tpu_custom_call.1} parent=47 // pred_region
          %s1446 = ssub.s32 128, 128
          %1447 = vsyncadd %s1438, %s1446
          %s1448 = smul.addr %s29, 128
          %s1449 = scalar_lea.hbm %s7, %s1448
          %s1451 = sshll.u32 %s1441, 4
          %s1452 = int_to_ptr.vmem [resolvable:$true] %s1451
          %1454 = dma.vmem_to_hbm [thread:$0]  %s1452, 128, %s1449, %s1438
        $region76: #{tpu_custom_call.1} parent=47 // pred_fallthru
          _
      $region48: #{tpu_custom_call.1} parent=5 // pred_fallthru
        _
      %p1455 = scmp.le.s32.totalorder 2, %s24
      // Predicated region
      $region77: #{tpu_custom_call.1} parent=5 // pred_check
        %p1456 = pneg %p1455
      $region78: #{tpu_custom_call.1} parent=5 // pred_check_branch
        %1458 = sbr.rel (%p1456) target = $region80
      $region79: #{tpu_custom_call.1} parent=5 // pred_region
        %s1459 = ssub.s32 %s24, 2
        // Predicated region
        $region81: #{tpu_custom_call.1} parent=79 // pred_check
          %p1460 = pneg %p210
        $region82: #{tpu_custom_call.1} parent=79 // pred_check_branch
          %1462 = sbr.rel (%p1460) target = $region84
        $region83: #{tpu_custom_call.1} parent=79 // pred_region
          %s1463 = sand.u32 %s195, 1
          %s1464 = scalar_lea.sflag [#allocation4], %s1463
          %s1465 = sand.u32 %s195, 1
          %s1466 = smul.addr %s1465, 8
          %s1467 = scalar_lea.vmem [#allocation13], %s1466
          %1468 = dma.done %s1464, 128
        $region84: #{tpu_custom_call.1} parent=79 // pred_fallthru
          _
      $region80: #{tpu_custom_call.1} parent=5 // pred_fallthru
        _
    $region6: #{tpu_custom_call.1} parent=1 // loop_footer
      %s28 = sadd.s32 1, %s24
    $region7: #{tpu_custom_call.1} parent=1 // loop_footer_branch
      %23 = sbr.rel target = $region3
    $region8: #{tpu_custom_call.1} parent=1 // loop_exit
      _
    %1469 = vsyncpa [#allocation3], 1
    %s1470 = scalar_lea.sflag [#allocation3], 1
    %1471 = vsyncpa %s1470, 1
    %1472 = vsyncpa [#allocation6], 1
    %s1473 = scalar_lea.sflag [#allocation6], 1
    %1474 = vsyncpa %s1473, 1
    %1475 = vsyncpa [#allocation9], 1
    %1476 = vsyncpa [#allocation12], 1
    %1477 = vsyncpa [#allocation4], 1
    %s1478 = scalar_lea.sflag [#allocation4], 1
    %1479 = vsyncpa %s1478, 1

// kernel: tpu_custom_call.1
$region0: #{tpu_custom_call.1}
  #allocation0 [shape = 'u32[]', space=smem, size = 0x4, offset = 0x4, fixed_abs, tag = 'smem constant byte address 0x4 - core index']
  #allocation1 [shape = 'u32[144,128]{1,0:T(1,128)}', space=vmem, size = 0x12000, scoped, tag = 'internal scratch']
  %s0 = inlined_call_operand.hbm [shape: f32[2,8,32], index: 0, kind: input, shape index: {}]
  %s1 = inlined_call_operand.hbm [shape: f32[2,16,32], index: 1, kind: input, shape index: {}]
  %s2 = inlined_call_operand.hbm [shape: f32[32,32], index: 2, kind: input, shape index: {}]
  %s3 = inlined_call_operand.hbm [shape: f32[32,32], index: 3, kind: input, shape index: {}]
  %s4 = inlined_call_operand.hbm [shape: f32[32,32], index: 4, kind: input, shape index: {}]
  %s5 = inlined_call_operand.hbm [shape: f32[32,32], index: 5, kind: input, shape index: {}]
  %s6 = inlined_call_operand.vmem [shape: f32[1,32], index: 6, kind: input, shape index: {}]
  %s7 = inlined_call_operand.hbm [shape: f32[2,8,32], index: 7, kind: output, shape index: {}]
  %s8 = sld [smem:[#allocation0]]
  $region85: #{tpu_custom_call.1} parent=0
    _
  %s10 = ssub.s32 1, %s8
  %s11 = scalar_select 0, %s10, %s8
  $region1: #{tpu_custom_call.1} parent=0
    #allocation2 [shape = 'u8[8192]{0}', space=vmem, size = 0x2000, scoped, tag = 'input window, operand 0']
    #allocation3 [shape = 's32[2]{0}', space=sflag, size = 0x8, scoped, tag = 'scoped memory for tpu_custom_call.1']
    #allocation4 [shape = 's32[2]{0}', space=sflag, size = 0x8, scoped, tag = 'scoped memory for tpu_custom_call.1']
    #allocation5 [shape = 'u8[16384]{0}', space=vmem, size = 0x4000, scoped, tag = 'input window, operand 1']
    #allocation6 [shape = 's32[2]{0}', space=sflag, size = 0x8, scoped, tag = 'scoped memory for tpu_custom_call.1']
    #allocation7 [shape = 'u8[16384]{0}', space=vmem, size = 0x4000, scoped, tag = 'input window, operand 2, single buffered']
    #allocation8 [shape = 'u8[16384]{0}', space=vmem, size = 0x4000, scoped, tag = 'input window, operand 3, single buffered']
    #allocation9 [shape = 's32[1]{0}', space=sflag, size = 0x4, scoped, tag = 'scoped memory for tpu_custom_call.1']
    #allocation10 [shape = 'u8[16384]{0}', space=vmem, size = 0x4000, scoped, tag = 'input window, operand 4, single buffered']
    #allocation11 [shape = 'u8[16384]{0}', space=vmem, size = 0x4000, scoped, tag = 'input window, operand 5, single buffered']
    #allocation12 [shape = 's32[1]{0}', space=sflag, size = 0x4, scoped, tag = 'scoped memory for tpu_custom_call.1']
    #allocation13 [shape = 'u8[8192]{0}', space=vmem, size = 0x2000, scoped, tag = 'output window, operand 0']
    %12 = vsyncpa [#allocation3], 0
    %s13 = scalar_lea.sflag [#allocation3], 1
    %14 = vsyncpa %s13, 0
    %15 = vsyncpa [#allocation6], 0
    %s16 = scalar_lea.sflag [#allocation6], 1
    %17 = vsyncpa %s16, 0
    %18 = vsyncpa [#allocation9], 0
    %19 = vsyncpa [#allocation12], 0
    %20 = vsyncpa [#allocation4], 0
    %s21 = scalar_lea.sflag [#allocation4], 1
    %22 = vsyncpa %s21, 0
    loop: start=0, step=1, limit=4
    $region2: #{tpu_custom_call.1} parent=1 // loop_pre_header
      _
    $region3: #{tpu_custom_call.1} parent=1 // loop_header
      %s24 = sphi 0, %s28
      %p25 = scmp.ge.s32.totalorder %s24, 4
      %s34 = sphi 0, %s36
      %s37 = sphi 0, %s34
      %s38 = sphi 0, %s37
      %s54 = sphi 0, %s38
      %s60 = sphi 0, %s62
      %s63 = sphi 0, %s60
      %s64 = sphi 0, %s63
      %s80 = sphi 0, %s64
      %s84 = sphi 0, %s84
      %s86 = sphi 0, %s84
      %s87 = sphi 0, %s86
      %s101 = sphi 0, %s87
      %s105 = sphi 0, %s105
      %s107 = sphi 0, %s105
      %s108 = sphi 0, %s107
      %s122 = sphi 0, %s108
      %s126 = sphi 0, %s126
      %s128 = sphi 0, %s126
      %s129 = sphi 0, %s128
      %s143 = sphi 0, %s129
      %s147 = sphi 0, %s147
      %s149 = sphi 0, %s147
      %s150 = sphi 0, %s149
      %s164 = sphi 0, %s150
      %s168 = sphi 0, %s168
      %s170 = sphi 0, %s168
      %s171 = sphi 0, %s170
      %s185 = sphi 0, %s171
      %s191 = sphi 0, %s193
      %s194 = sphi 0, %s191
      %s195 = sphi 0, %s194
      %s211 = sphi 0, %s195
    $region4: #{tpu_custom_call.1} parent=1 // loop_header_branch
      %27 = sbr.rel (%p25) target = $region8
    $region5: #{tpu_custom_call.1} parent=1 // loop_body
      %s29 = ssub.s32 %s24, 1
      %s30 = ssub.s32 %s24, 2
      %s31 = sadd.s32 %s24, 1
      %s32 = ssub.s32 %s24, %s31
      %p33 = scmp.eq.s32.totalorder %s32, 0
      %s35 = sadd.s32 %s34, 1
      %s36 = scalar_select %p33, %s34, %s35
      %p39 = pneg %p33
      %p40 = scmp.eq.s32.totalorder %s24, 1
      %p41 = por %p39, %p40
      %p42 = scmp.ne.s32.totalorder %s34, %s37
      %p43 = scmp.eq.s32.totalorder %s24, 0
      %p44 = por %p42, %p43
      %p45 = scmp.ne.s32.totalorder %s34, %s37
      %p46 = scmp.eq.s32.totalorder %s29, 1
      %p47 = por %p45, %p46
      %p48 = scmp.ne.s32.totalorder %s37, %s38
      %p49 = scmp.eq.s32.totalorder %s29, 0
      %p50 = por %p48, %p49
      %p51 = scmp.ne.s32.totalorder %s37, %s38
      %p52 = scmp.eq.s32.totalorder %s30, 1
      %p53 = por %p51, %p52
      %p55 = scmp.ne.s32.totalorder %s38, %s54
      %p56 = scmp.eq.s32.totalorder %s30, 0
      %p57 = por %p55, %p56
      %s58 = ssub.s32 %s24, %s31
      %p59 = scmp.eq.s32.totalorder %s58, 0
      %s61 = sadd.s32 %s60, 1
      %s62 = scalar_select %p59, %s60, %s61
      %p65 = pneg %p59
      %p66 = scmp.eq.s32.totalorder %s24, 1
      %p67 = por %p65, %p66
      %p68 = scmp.ne.s32.totalorder %s60, %s63
      %p69 = scmp.eq.s32.totalorder %s24, 0
      %p70 = por %p68, %p69
      %p71 = scmp.ne.s32.totalorder %s60, %s63
      %p72 = scmp.eq.s32.totalorder %s29, 1
      %p73 = por %p71, %p72
      %p74 = scmp.ne.s32.totalorder %s63, %s64
      %p75 = scmp.eq.s32.totalorder %s29, 0
      %p76 = por %p74, %p75
      %p77 = scmp.ne.s32.totalorder %s63, %s64
      %p78 = scmp.eq.s32.totalorder %s30, 1
      %p79 = por %p77, %p78
      %p81 = scmp.ne.s32.totalorder %s64, %s80
      %p82 = scmp.eq.s32.totalorder %s30, 0
      %p83 = por %p81, %p82
      %s85 = sadd.s32 %s84, 1
      %p88 = scmp.eq.s32.totalorder %s24, 1
      %p89 = scmp.ne.s32.totalorder %s84, %s86
      %p90 = scmp.eq.s32.totalorder %s24, 0
      %p91 = por %p89, %p90
      %p92 = scmp.ne.s32.totalorder %s84, %s86
      %p93 = scmp.eq.s32.totalorder %s29, 1
      %p94 = por %p92, %p93
      %p95 = scmp.ne.s32.totalorder %s86, %s87
      %p96 = scmp.eq.s32.totalorder %s29, 0
      %p97 = por %p95, %p96
      %p98 = scmp.ne.s32.totalorder %s86, %s87
      %p99 = scmp.eq.s32.totalorder %s30, 1
      %p100 = por %p98, %p99
      %p102 = scmp.ne.s32.totalorder %s87, %s101
      %p103 = scmp.eq.s32.totalorder %s30, 0
      %p104 = por %p102, %p103
      %s106 = sadd.s32 %s105, 1
      %p109 = scmp.eq.s32.totalorder %s24, 1
      %p110 = scmp.ne.s32.totalorder %s105, %s107
      %p111 = scmp.eq.s32.totalorder %s24, 0
      %p112 = por %p110, %p111
      %p113 = scmp.ne.s32.totalorder %s105, %s107
      %p114 = scmp.eq.s32.totalorder %s29, 1
      %p115 = por %p113, %p114
      %p116 = scmp.ne.s32.totalorder %s107, %s108
      %p117 = scmp.eq.s32.totalorder %s29, 0
      %p118 = por %p116, %p117
      %p119 = scmp.ne.s32.totalorder %s107, %s108
      %p120 = scmp.eq.s32.totalorder %s30, 1
      %p121 = por %p119, %p120
      %p123 = scmp.ne.s32.totalorder %s108, %s122
      %p124 = scmp.eq.s32.totalorder %s30, 0
      %p125 = por %p123, %p124
      %s127 = sadd.s32 %s126, 1
      %p130 = scmp.eq.s32.totalorder %s24, 1
      %p131 = scmp.ne.s32.totalorder %s126, %s128
      %p132 = scmp.eq.s32.totalorder %s24, 0
      %p133 = por %p131, %p132
      %p134 = scmp.ne.s32.totalorder %s126, %s128
      %p135 = scmp.eq.s32.totalorder %s29, 1
      %p136 = por %p134, %p135
      %p137 = scmp.ne.s32.totalorder %s128, %s129
      %p138 = scmp.eq.s32.totalorder %s29, 0
      %p139 = por %p137, %p138
      %p140 = scmp.ne.s32.totalorder %s128, %s129
      %p141 = scmp.eq.s32.totalorder %s30, 1
      %p142 = por %p140, %p141
      %p144 = scmp.ne.s32.totalorder %s129, %s143
      %p145 = scmp.eq.s32.totalorder %s30, 0
      %p146 = por %p144, %p145
      %s148 = sadd.s32 %s147, 1
      %p151 = scmp.eq.s32.totalorder %s24, 1
      %p152 = scmp.ne.s32.totalorder %s147, %s149
      %p153 = scmp.eq.s32.totalorder %s24, 0
      %p154 = por %p152, %p153
      %p155 = scmp.ne.s32.totalorder %s147, %s149
      %p156 = scmp.eq.s32.totalorder %s29, 1
      %p157 = por %p155, %p156
      %p158 = scmp.ne.s32.totalorder %s149, %s150
      %p159 = scmp.eq.s32.totalorder %s29, 0
      %p160 = por %p158, %p159
      %p161 = scmp.ne.s32.totalorder %s149, %s150
      %p162 = scmp.eq.s32.totalorder %s30, 1
      %p163 = por %p161, %p162
      %p165 = scmp.ne.s32.totalorder %s150, %s164
      %p166 = scmp.eq.s32.totalorder %s30, 0
      %p167 = por %p165, %p166
      %s169 = sadd.s32 %s168, 1
      %p172 = scmp.eq.s32.totalorder %s24, 1
      %p173 = scmp.ne.s32.totalorder %s168, %s170
      %p174 = scmp.eq.s32.totalorder %s24, 0
      %p175 = por %p173, %p174
      %p176 = scmp.ne.s32.totalorder %s168, %s170
      %p177 = scmp.eq.s32.totalorder %s29, 1
      %p178 = por %p176, %p177
      %p179 = scmp.ne.s32.totalorder %s170, %s171
      %p180 = scmp.eq.s32.totalorder %s29, 0
      %p181 = por %p179, %p180
      %p182 = scmp.ne.s32.totalorder %s170, %s171
      %p183 = scmp.eq.s32.totalorder %s30, 1
      %p184 = por %p182, %p183
      %p186 = scmp.ne.s32.totalorder %s171, %s185
      %p187 = scmp.eq.s32.totalorder %s30, 0
      %p188 = por %p186, %p187
      %s189 = ssub.s32 %s24, %s31
      %p190 = scmp.eq.s32.totalorder %s189, 0
      %s192 = sadd.s32 %s191, 1
      %s193 = scalar_select %p190, %s191, %s192
      %p196 = pneg %p190
      %p197 = scmp.eq.s32.totalorder %s24, 1
      %p198 = por %p196, %p197
      %p199 = scmp.ne.s32.totalorder %s191, %s194
      %p200 = scmp.eq.s32.totalorder %s24, 0
      %p201 = por %p199, %p200
      %p202 = scmp.ne.s32.totalorder %s191, %s194
      %p203 = scmp.eq.s32.totalorder %s29, 1
      %p204 = por %p202, %p203
      %p205 = scmp.ne.s32.totalorder %s194, %s195
      %p206 = scmp.eq.s32.totalorder %s29, 0
      %p207 = por %p205, %p206
      %p208 = scmp.ne.s32.totalorder %s194, %s195
      %p209 = scmp.eq.s32.totalorder %s30, 1
      %p210 = por %p208, %p209
      %p212 = scmp.ne.s32.totalorder %s195, %s211
      %p213 = scmp.eq.s32.totalorder %s30, 0
      %p214 = por %p212, %p213
      %p215 = scmp.le.s32.totalorder 1, %s24
      %p216 = scmp.lt.s32.totalorder %s24, 3
      %p217 = pnand %p215, %p216
      %p218 = pneg %p217
      // Predicated region
      $region9: #{tpu_custom_call.1} parent=5 // pred_check
        _
      $region10: #{tpu_custom_call.1} parent=5 // pred_check_branch
        %220 = sbr.rel (%p217) target = $region12
      $region11: #{tpu_custom_call.1} parent=5 // pred_region
        %s221 = ssub.s32 %s24, 1
        // Predicated region
        $region13: #{tpu_custom_call.1} parent=11 // pred_check
          %p222 = pneg %p97
        $region14: #{tpu_custom_call.1} parent=11 // pred_check_branch
          %224 = sbr.rel (%p222) target = $region16
        $region15: #{tpu_custom_call.1} parent=11 // pred_region
          %s226 = ssub.s32 512, 512
          %227 = vsyncadd [#allocation6], %s226
          %s228 = sshll.u32 [#allocation7], 4
          %s229 = int_to_ptr.vmem [resolvable:$true] %s228
          %234 = dma.hbm_to_vmem [thread:$0]  %s2, 512, %s229, [#allocation6], 128, 128, 8
        $region16: #{tpu_custom_call.1} parent=11 // pred_fallthru
          _
        // Predicated region
        $region17: #{tpu_custom_call.1} parent=11 // pred_check
          %p235 = pneg %p118
        $region18: #{tpu_custom_call.1} parent=11 // pred_check_branch
          %237 = sbr.rel (%p235) target = $region20
        $region19: #{tpu_custom_call.1} parent=11 // pred_region
          %s239 = ssub.s32 512, 512
          %240 = vsyncadd [#allocation9], %s239
          %s241 = sshll.u32 [#allocation8], 4
          %s242 = int_to_ptr.vmem [resolvable:$true] %s241
          %247 = dma.hbm_to_vmem [thread:$0]  %s3, 512, %s242, [#allocation9], 128, 128, 8
        $region20: #{tpu_custom_call.1} parent=11 // pred_fallthru
          _
        // Predicated region
        $region21: #{tpu_custom_call.1} parent=11 // pred_check
          %p248 = pneg %p139
        $region22: #{tpu_custom_call.1} parent=11 // pred_check_branch
          %250 = sbr.rel (%p248) target = $region24
        $region23: #{tpu_custom_call.1} parent=11 // pred_region
          %s252 = ssub.s32 512, 512
          %253 = vsyncadd [#allocation9], %s252
          %s254 = sshll.u32 [#allocation10], 4
          %s255 = int_to_ptr.vmem [resolvable:$true] %s254
          %260 = dma.hbm_to_vmem [thread:$0]  %s4, 512, %s255, [#allocation9], 128, 128, 8
        $region24: #{tpu_custom_call.1} parent=11 // pred_fallthru
          _
        // Predicated region
        $region25: #{tpu_custom_call.1} parent=11 // pred_check
          %p261 = pneg %p160
        $region26: #{tpu_custom_call.1} parent=11 // pred_check_branch
          %263 = sbr.rel (%p261) target = $region28
        $region27: #{tpu_custom_call.1} parent=11 // pred_region
          %s265 = ssub.s32 512, 512
          %266 = vsyncadd [#allocation12], %s265
          %s267 = sshll.u32 [#allocation11], 4
          %s268 = int_to_ptr.vmem [resolvable:$true] %s267
          %273 = dma.hbm_to_vmem [thread:$0]  %s5, 512, %s268, [#allocation12], 128, 128, 8
        $region28: #{tpu_custom_call.1} parent=11 // pred_fallthru
          _
        // Predicated region
        $region29: #{tpu_custom_call.1} parent=11 // pred_check
          %p274 = pneg %p181
        $region30: #{tpu_custom_call.1} parent=11 // pred_check_branch
          %276 = sbr.rel (%p274) target = $region32
        $region31: #{tpu_custom_call.1} parent=11 // pred_region
          _
        $region32: #{tpu_custom_call.1} parent=11 // pred_fallthru
          _
      $region12: #{tpu_custom_call.1} parent=5 // pred_fallthru
        _
      %p277 = scmp.lt.s32.totalorder %s24, 2
      // Predicated region
      $region33: #{tpu_custom_call.1} parent=5 // pred_check
        %p278 = pneg %p277
      $region34: #{tpu_custom_call.1} parent=5 // pred_check_branch
        %280 = sbr.rel (%p278) target = $region36
      $region35: #{tpu_custom_call.1} parent=5 // pred_region
        // Predicated region
        $region37: #{tpu_custom_call.1} parent=35 // pred_check
          %p281 = pneg %p44
        $region38: #{tpu_custom_call.1} parent=35 // pred_check_branch
          %283 = sbr.rel (%p281) target = $region40
        $region39: #{tpu_custom_call.1} parent=35 // pred_region
          %s284 = sand.u32 %s34, 1
          %s285 = scalar_lea.sflag [#allocation3], %s284
          %s286 = sand.u32 %s34, 1
          %s287 = smul.addr %s286, 8
          %s288 = scalar_lea.vmem [#allocation2], %s287
          %s290 = ssub.s32 128, 128
          %291 = vsyncadd %s285, %s290
          %s292 = smul.addr %s24, 128
          %s293 = scalar_lea.hbm %s0, %s292
          %s295 = sshll.u32 %s288, 4
          %s296 = int_to_ptr.vmem [resolvable:$true] %s295
          %298 = dma.hbm_to_vmem [thread:$0]  %s293, 128, %s296, %s285
        $region40: #{tpu_custom_call.1} parent=35 // pred_fallthru
          _
        // Predicated region
        $region41: #{tpu_custom_call.1} parent=35 // pred_check
          %p299 = pneg %p70
        $region42: #{tpu_custom_call.1} parent=35 // pred_check_branch
          %301 = sbr.rel (%p299) target = $region44
        $region43: #{tpu_custom_call.1} parent=35 // pred_region
          %s302 = sand.u32 %s24, 1
          %s303 = scalar_lea.sflag [#allocation6], %s302
          %s304 = sand.u32 %s60, 1
          %s305 = smul.addr %s304, 16
          %s306 = scalar_lea.vmem [#allocation5], %s305
          %s308 = ssub.s32 256, 256
          %309 = vsyncadd %s303, %s308
          %s310 = smul.addr %s24, 2
          %s311 = smul.addr %s310, 128
          %s312 = scalar_lea.hbm %s1, %s311
          %s313 = sshll.u32 %s306, 4
          %s314 = int_to_ptr.vmem [resolvable:$true] %s313
          %319 = dma.hbm_to_vmem [thread:$0]  %s312, 256, %s314, %s303, 128, 128, 8
        $region44: #{tpu_custom_call.1} parent=35 // pred_fallthru
          _
      $region36: #{tpu_custom_call.1} parent=5 // pred_fallthru
        _
      %p320 = scmp.le.s32.totalorder 1, %s24
      %p321 = scmp.lt.s32.totalorder %s24, 3
      %p322 = pnand %p320, %p321
      %p323 = pneg %p322
      // Predicated region
      $region45: #{tpu_custom_call.1} parent=5 // pred_check
        _
      $region46: #{tpu_custom_call.1} parent=5 // pred_check_branch
        %325 = sbr.rel (%p322) target = $region48
      $region47: #{tpu_custom_call.1} parent=5 // pred_region
        %s326 = ssub.s32 %s24, 1
        %s327 = sand.u32 %s37, 1
        %s328 = scalar_lea.sflag [#allocation3], %s327
        %s329 = sand.u32 %s37, 1
        %s330 = smul.addr %s329, 8
        %s331 = scalar_lea.vmem [#allocation2], %s330
        // Predicated region
        $region49: #{tpu_custom_call.1} parent=47 // pred_check
          %p332 = pneg %p50
        $region50: #{tpu_custom_call.1} parent=47 // pred_check_branch
          %334 = sbr.rel (%p332) target = $region52
        $region51: #{tpu_custom_call.1} parent=47 // pred_region
          %335 = dma.done %s328, 128
        $region52: #{tpu_custom_call.1} parent=47 // pred_fallthru
          _
        %s336 = sand.u32 %s29, 1
        %s337 = scalar_lea.sflag [#allocation6], %s336
        %s338 = sand.u32 %s63, 1
        %s339 = smul.addr %s338, 16
        %s340 = scalar_lea.vmem [#allocation5], %s339
        // Predicated region
        $region53: #{tpu_custom_call.1} parent=47 // pred_check
          %p341 = pneg %p76
        $region54: #{tpu_custom_call.1} parent=47 // pred_check_branch
          %343 = sbr.rel (%p341) target = $region56
        $region55: #{tpu_custom_call.1} parent=47 // pred_region
          %344 = dma.done %s337, 256
        $region56: #{tpu_custom_call.1} parent=47 // pred_fallthru
          _
        // Predicated region
        $region57: #{tpu_custom_call.1} parent=47 // pred_check
          %p345 = pneg %p97
        $region58: #{tpu_custom_call.1} parent=47 // pred_check_branch
          %347 = sbr.rel (%p345) target = $region60
        $region59: #{tpu_custom_call.1} parent=47 // pred_region
          %348 = dma.done [#allocation6], 512
        $region60: #{tpu_custom_call.1} parent=47 // pred_fallthru
          _
        // Predicated region
        $region61: #{tpu_custom_call.1} parent=47 // pred_check
          %p349 = pneg %p118
        $region62: #{tpu_custom_call.1} parent=47 // pred_check_branch
          %351 = sbr.rel (%p349) target = $region64
        $region63: #{tpu_custom_call.1} parent=47 // pred_region
          %352 = dma.done [#allocation9], 512
        $region64: #{tpu_custom_call.1} parent=47 // pred_fallthru
          _
        // Predicated region
        $region65: #{tpu_custom_call.1} parent=47 // pred_check
          %p353 = pneg %p139
        $region66: #{tpu_custom_call.1} parent=47 // pred_check_branch
          %355 = sbr.rel (%p353) target = $region68
        $region67: #{tpu_custom_call.1} parent=47 // pred_region
          %356 = dma.done [#allocation9], 512
        $region68: #{tpu_custom_call.1} parent=47 // pred_fallthru
          _
        // Predicated region
        $region69: #{tpu_custom_call.1} parent=47 // pred_check
          %p357 = pneg %p160
        $region70: #{tpu_custom_call.1} parent=47 // pred_check_branch
          %359 = sbr.rel (%p357) target = $region72
        $region71: #{tpu_custom_call.1} parent=47 // pred_region
          %360 = dma.done [#allocation12], 512
        $region72: #{tpu_custom_call.1} parent=47 // pred_fallthru
          _
        %s361 = sand.u32 %s37, 1
        %s362 = scalar_lea.sflag [#allocation3], %s361
        %s363 = sand.u32 %s37, 1
        %s364 = smul.addr %s363, 8
        %s365 = scalar_lea.vmem [#allocation2], %s364
        %p366 = pneg %p50
        %p367 = pneg %p47
        %s368 = sand.u32 %s29, 1
        %s369 = scalar_lea.sflag [#allocation6], %s368
        %s370 = sand.u32 %s63, 1
        %s371 = smul.addr %s370, 16
        %s372 = scalar_lea.vmem [#allocation5], %s371
        %p373 = pneg %p76
        %p374 = pneg %p73
        %p375 = pneg %p97
        %p376 = pneg %p94
        %p377 = pneg %p118
        %p378 = pneg %p115
        %p379 = pneg %p139
        %p380 = pneg %p136
        %p381 = pneg %p160
        %p382 = pneg %p157
        %p383 = pneg %p181
        %p384 = pneg %p178
        %p385 = pneg %p207
        %p386 = pneg %p204
        %s387 = sand.u32 %s194, 1
        %s388 = scalar_lea.sflag [#allocation4], %s387
        %s389 = sand.u32 %s194, 1
        %s390 = smul.addr %s389, 8
        %s391 = scalar_lea.vmem [#allocation13], %s390
        %v392 = vld [vmem:[%s331] sm:$0xff]
        %v393 = vld [vmem:[%s340] sm:$0xff]
        %v394 = vld [vmem:[%s340 + $0x8] sm:$0xff]
        %v395 = vld [vmem:[#allocation7] sm:$0xff]
        %v396 = vld [vmem:[#allocation7 + $0x8] sm:$0xff]
        %v397 = vld [vmem:[#allocation7 + $0x10] sm:$0xff]
        %v398 = vld [vmem:[#allocation7 + $0x18] sm:$0xff]
        %v399 = vld [vmem:[#allocation8] sm:$0xff]
        %v400 = vld [vmem:[#allocation8 + $0x8] sm:$0xff]
        %v401 = vld [vmem:[#allocation8 + $0x10] sm:$0xff]
        %v402 = vld [vmem:[#allocation8 + $0x18] sm:$0xff]
        %v403 = vld [vmem:[#allocation10] sm:$0xff]
        %v404 = vld [vmem:[#allocation10 + $0x8] sm:$0xff]
        %v405 = vld [vmem:[#allocation10 + $0x10] sm:$0xff]
        %v406 = vld [vmem:[#allocation10 + $0x18] sm:$0xff]
        %v407 = vld [vmem:[#allocation11] sm:$0xff]
        %v408 = vld [vmem:[#allocation11 + $0x8] sm:$0xff]
        %v409 = vld [vmem:[#allocation11 + $0x10] sm:$0xff]
        %v410 = vld [vmem:[#allocation11 + $0x18] sm:$0xff]
        %v411 = vld [vmem:[%s6] sm:$0x1]
        %vm412 = vcmask 261120
        %v414 = vsel %vm412, %v392, 0
        %416 = vmatprep.subr.mxu0 0.0
        %417 = vmatpush1.msra.mxu0 %v395
        %418 = vmatprep.subr.mxu0 0.0
        %419 = vmatpush1.msra.mxu0 %v396
        %420 = vmatprep.subr.mxu0 0.0
        %421 = vmatpush1.msra.mxu0 %v397
        %422 = vmatprep.subr.mxu0 0.0
        %423 = vmatpush1.msra.mxu0 %v398
        %424 = vmatprep.subr.mxu0 0.0
        %425 = vmatpush1.msra.mxu0 0.0
        %426 = vmatprep.subr.mxu0 0.0
        %427 = vmatpush1.msra.mxu0 0.0
        %428 = vmatprep.subr.mxu0 0.0
        %429 = vmatpush1.msra.mxu0 0.0
        %430 = vmatprep.subr.mxu0 0.0
        %431 = vmatpush1.msra.mxu0 0.0
        %432 = vmatprep.subr.mxu0 0.0
        %433 = vmatpush1.msra.mxu0 0.0
        %434 = vmatprep.subr.mxu0 0.0
        %435 = vmatpush1.msra.mxu0 0.0
        %436 = vmatprep.subr.mxu0 0.0
        %437 = vmatpush1.msra.mxu0 0.0
        %438 = vmatprep.subr.mxu0 0.0
        %439 = vmatpush1.msra.mxu0 0.0
        %440 = vmatprep.subr.mxu0 0.0
        %441 = vmatpush1.msra.mxu0 0.0
        %442 = vmatprep.subr.mxu0 0.0
        %443 = vmatpush1.msra.mxu0 0.0
        %444 = vmatprep.subr.mxu0 0.0
        %445 = vmatpush1.msra.mxu0 0.0
        %446 = vmatprep.subr.mxu0 0.0
        %447 = vmatpush1.msra.mxu0 0.0
        %448 = vmatprep.subr.mxu0 0.0
        %449 = vmatpush1.msra.mxu0 0.0
        %450 = vmatprep.subr.mxu0 0.0
        %451 = vmatpush1.msra.mxu0 0.0
        %452 = vmatprep.subr.mxu0 0.0
        %453 = vmatpush1.msra.mxu0 0.0
        %454 = vmatprep.subr.mxu0 0.0
        %455 = vmatpush1.msra.mxu0 0.0
        %456 = vmatprep.subr.mxu0 0.0
        %457 = vmatpush1.msra.mxu0 0.0
        %458 = vmatprep.subr.mxu0 0.0
        %459 = vmatpush1.msra.mxu0 0.0
        %460 = vmatprep.subr.mxu0 0.0
        %461 = vmatpush1.msra.mxu0 0.0
        %462 = vmatprep.subr.mxu0 0.0
        %463 = vmatpush1.msra.mxu0 0.0
        %464 = vmatprep.subr.mxu0 0.0
        %465 = vmatpush1.msra.mxu0 0.0
        %466 = vmatprep.subr.mxu0 0.0
        %467 = vmatpush1.msra.mxu0 0.0
        %468 = vmatprep.subr.mxu0 0.0
        %469 = vmatpush1.msra.mxu0 0.0
        %470 = vmatprep.subr.mxu0 0.0
        %471 = vmatpush1.msra.mxu0 0.0
        %472 = vmatprep.subr.mxu0 0.0
        %473 = vmatpush1.msra.mxu0 0.0
        %474 = vmatprep.subr.mxu0 0.0
        %475 = vmatpush1.msra.mxu0 0.0
        %476 = vmatprep.subr.mxu0 0.0
        %477 = vmatpush1.msra.mxu0 0.0
        %478 = vmatprep.subr.mxu0 0.0
        %479 = vmatpush1.msra.mxu0 0.0
        %480 = vmatprep.mubr.f32.mxu0 0.0
        %481 = vmatmul.mubr.f32.gmra.mrb[0].mxu0 %v414
        %v482 = vpop.f32.mrb[0].mxu0
        %v483 = vadd.f32 0.0, %v482
        %v484 = vpop.f32.mrb[0].mxu0
        %485 = vdwg.mxu0
        %v487 = vsel %vm412, %v393, 0
        %v490 = vsel %vm412, %v394, 0
        %492 = vmatprep.subr.mxu0 0.0
        %493 = vmatpush1.msra.mxu0 %v399
        %494 = vmatprep.subr.mxu0 0.0
        %495 = vmatpush1.msra.mxu0 %v400
        %496 = vmatprep.subr.mxu0 0.0
        %497 = vmatpush1.msra.mxu0 %v401
        %498 = vmatprep.subr.mxu0 0.0
        %499 = vmatpush1.msra.mxu0 %v402
        %500 = vmatprep.subr.mxu0 0.0
        %501 = vmatpush1.msra.mxu0 0.0
        %502 = vmatprep.subr.mxu0 0.0
        %503 = vmatpush1.msra.mxu0 0.0
        %504 = vmatprep.subr.mxu0 0.0
        %505 = vmatpush1.msra.mxu0 0.0
        %506 = vmatprep.subr.mxu0 0.0
        %507 = vmatpush1.msra.mxu0 0.0
        %508 = vmatprep.subr.mxu0 0.0
        %509 = vmatpush1.msra.mxu0 0.0
        %510 = vmatprep.subr.mxu0 0.0
        %511 = vmatpush1.msra.mxu0 0.0
        %512 = vmatprep.subr.mxu0 0.0
        %513 = vmatpush1.msra.mxu0 0.0
        %514 = vmatprep.subr.mxu0 0.0
        %515 = vmatpush1.msra.mxu0 0.0
        %516 = vmatprep.subr.mxu0 0.0
        %517 = vmatpush1.msra.mxu0 0.0
        %518 = vmatprep.subr.mxu0 0.0
        %519 = vmatpush1.msra.mxu0 0.0
        %520 = vmatprep.subr.mxu0 0.0
        %521 = vmatpush1.msra.mxu0 0.0
        %522 = vmatprep.subr.mxu0 0.0
        %523 = vmatpush1.msra.mxu0 0.0
        %524 = vmatprep.subr.mxu0 0.0
        %525 = vmatpush1.msra.mxu0 0.0
        %526 = vmatprep.subr.mxu0 0.0
        %527 = vmatpush1.msra.mxu0 0.0
        %528 = vmatprep.subr.mxu0 0.0
        %529 = vmatpush1.msra.mxu0 0.0
        %530 = vmatprep.subr.mxu0 0.0
        %531 = vmatpush1.msra.mxu0 0.0
        %532 = vmatprep.subr.mxu0 0.0
        %533 = vmatpush1.msra.mxu0 0.0
        %534 = vmatprep.subr.mxu0 0.0
        %535 = vmatpush1.msra.mxu0 0.0
        %536 = vmatprep.subr.mxu0 0.0
        %537 = vmatpush1.msra.mxu0 0.0
        %538 = vmatprep.subr.mxu0 0.0
        %539 = vmatpush1.msra.mxu0 0.0
        %540 = vmatprep.subr.mxu0 0.0
        %541 = vmatpush1.msra.mxu0 0.0
        %542 = vmatprep.subr.mxu0 0.0
        %543 = vmatpush1.msra.mxu0 0.0
        %544 = vmatprep.subr.mxu0 0.0
        %545 = vmatpush1.msra.mxu0 0.0
        %546 = vmatprep.subr.mxu0 0.0
        %547 = vmatpush1.msra.mxu0 0.0
        %548 = vmatprep.subr.mxu0 0.0
        %549 = vmatpush1.msra.mxu0 0.0
        %550 = vmatprep.subr.mxu0 0.0
        %551 = vmatpush1.msra.mxu0 0.0
        %552 = vmatprep.subr.mxu0 0.0
        %553 = vmatpush1.msra.mxu0 0.0
        %554 = vmatprep.subr.mxu0 0.0
        %555 = vmatpush1.msra.mxu0 0.0
        %556 = vmatprep.mubr.f32.mxu0 0.0
        %557 = vmatmul.mubr.f32.gmra.mrb[0].mxu0 %v487
        %v558 = vpop.f32.mrb[0].mxu0
        %v559 = vadd.f32 0.0, %v558
        %v560 = vpop.f32.mrb[0].mxu0
        %561 = vmatprep.mubr.f32.mxu0 0.0
        %562 = vmatmul.mubr.f32.gmra.mrb[0].mxu0 %v490
        %v563 = vpop.f32.mrb[0].mxu0
        %v564 = vadd.f32 0.0, %v563
        %v565 = vpop.f32.mrb[0].mxu0
        %566 = vdwg.mxu0
        %567 = vmatprep.subr.mxu0 0.0
        %568 = vmatpush1.msra.mxu0 %v403
        %569 = vmatprep.subr.mxu0 0.0
        %570 = vmatpush1.msra.mxu0 %v404
        %571 = vmatprep.subr.mxu0 0.0
        %572 = vmatpush1.msra.mxu0 %v405
        %573 = vmatprep.subr.mxu0 0.0
        %574 = vmatpush1.msra.mxu0 %v406
        %575 = vmatprep.subr.mxu0 0.0
        %576 = vmatpush1.msra.mxu0 0.0
        %577 = vmatprep.subr.mxu0 0.0
        %578 = vmatpush1.msra.mxu0 0.0
        %579 = vmatprep.subr.mxu0 0.0
        %580 = vmatpush1.msra.mxu0 0.0
        %581 = vmatprep.subr.mxu0 0.0
        %582 = vmatpush1.msra.mxu0 0.0
        %583 = vmatprep.subr.mxu0 0.0
        %584 = vmatpush1.msra.mxu0 0.0
        %585 = vmatprep.subr.mxu0 0.0
        %586 = vmatpush1.msra.mxu0 0.0
        %587 = vmatprep.subr.mxu0 0.0
        %588 = vmatpush1.msra.mxu0 0.0
        %589 = vmatprep.subr.mxu0 0.0
        %590 = vmatpush1.msra.mxu0 0.0
        %591 = vmatprep.subr.mxu0 0.0
        %592 = vmatpush1.msra.mxu0 0.0
        %593 = vmatprep.subr.mxu0 0.0
        %594 = vmatpush1.msra.mxu0 0.0
        %595 = vmatprep.subr.mxu0 0.0
        %596 = vmatpush1.msra.mxu0 0.0
        %597 = vmatprep.subr.mxu0 0.0
        %598 = vmatpush1.msra.mxu0 0.0
        %599 = vmatprep.subr.mxu0 0.0
        %600 = vmatpush1.msra.mxu0 0.0
        %601 = vmatprep.subr.mxu0 0.0
        %602 = vmatpush1.msra.mxu0 0.0
        %603 = vmatprep.subr.mxu0 0.0
        %604 = vmatpush1.msra.mxu0 0.0
        %605 = vmatprep.subr.mxu0 0.0
        %606 = vmatpush1.msra.mxu0 0.0
        %607 = vmatprep.subr.mxu0 0.0
        %608 = vmatpush1.msra.mxu0 0.0
        %609 = vmatprep.subr.mxu0 0.0
        %610 = vmatpush1.msra.mxu0 0.0
        %611 = vmatprep.subr.mxu0 0.0
        %612 = vmatpush1.msra.mxu0 0.0
        %613 = vmatprep.subr.mxu0 0.0
        %614 = vmatpush1.msra.mxu0 0.0
        %615 = vmatprep.subr.mxu0 0.0
        %616 = vmatpush1.msra.mxu0 0.0
        %617 = vmatprep.subr.mxu0 0.0
        %618 = vmatpush1.msra.mxu0 0.0
        %619 = vmatprep.subr.mxu0 0.0
        %620 = vmatpush1.msra.mxu0 0.0
        %621 = vmatprep.subr.mxu0 0.0
        %622 = vmatpush1.msra.mxu0 0.0
        %623 = vmatprep.subr.mxu0 0.0
        %624 = vmatpush1.msra.mxu0 0.0
        %625 = vmatprep.subr.mxu0 0.0
        %626 = vmatpush1.msra.mxu0 0.0
        %627 = vmatprep.subr.mxu0 0.0
        %628 = vmatpush1.msra.mxu0 0.0
        %629 = vmatprep.subr.mxu0 0.0
        %630 = vmatpush1.msra.mxu0 0.0
        %631 = vmatprep.mubr.f32.mxu0 0.0
        %632 = vmatmul.mubr.f32.gmra.mrb[0].mxu0 %v487
        %v633 = vpop.f32.mrb[0].mxu0
        %v634 = vadd.f32 0.0, %v633
        %v635 = vpop.f32.mrb[0].mxu0
        %636 = vmatprep.mubr.f32.mxu0 0.0
        %637 = vmatmul.mubr.f32.gmra.mrb[0].mxu0 %v490
        %v638 = vpop.f32.mrb[0].mxu0
        %v639 = vadd.f32 0.0, %v638
        %v640 = vpop.f32.mrb[0].mxu0
        %641 = vdwg.mxu0
        %vm642 = vcmask 64512
        %v644 = vsel %vm642, %v483, 0
        %v647 = vsel %vm642, %v559, 0
        %v650 = vsel %vm642, %v564, 0
        %652 = vmatprep.subr.mxu0 0.0
        %653 = vmatpush1.xpose.msra.mxu0 %v647
        %654 = vmatprep.subr.mxu0 0.0
        %655 = vmatpush1.xpose.msra.mxu0 %v650
        %656 = vmatprep.subr.mxu0 0.0
        %657 = vmatpush1.xpose.msra.mxu0 0.0
        %658 = vmatprep.subr.mxu0 0.0
        %659 = vmatpush1.xpose.msra.mxu0 0.0
        %660 = vmatprep.subr.mxu0 0.0
        %661 = vmatpush1.xpose.msra.mxu0 0.0
        %662 = vmatprep.subr.mxu0 0.0
        %663 = vmatpush1.xpose.msra.mxu0 0.0
        %664 = vmatprep.subr.mxu0 0.0
        %665 = vmatpush1.xpose.msra.mxu0 0.0
        %666 = vmatprep.subr.mxu0 0.0
        %667 = vmatpush1.xpose.msra.mxu0 0.0
        %668 = vmatprep.subr.mxu0 0.0
        %669 = vmatpush1.xpose.msra.mxu0 0.0
        %670 = vmatprep.subr.mxu0 0.0
        %671 = vmatpush1.xpose.msra.mxu0 0.0
        %672 = vmatprep.subr.mxu0 0.0
        %673 = vmatpush1.xpose.msra.mxu0 0.0
        %674 = vmatprep.subr.mxu0 0.0
        %675 = vmatpush1.xpose.msra.mxu0 0.0
        %676 = vmatprep.subr.mxu0 0.0
        %677 = vmatpush1.xpose.msra.mxu0 0.0
        %678 = vmatprep.subr.mxu0 0.0
        %679 = vmatpush1.xpose.msra.mxu0 0.0
        %680 = vmatprep.subr.mxu0 0.0
        %681 = vmatpush1.xpose.msra.mxu0 0.0
        %682 = vmatprep.subr.mxu0 0.0
        %683 = vmatpush1.xpose.msra.mxu0 0.0
        %684 = vmatprep.subr.mxu0 0.0
        %685 = vmatpush1.xpose.msra.mxu0 0.0
        %686 = vmatprep.subr.mxu0 0.0
        %687 = vmatpush1.xpose.msra.mxu0 0.0
        %688 = vmatprep.subr.mxu0 0.0
        %689 = vmatpush1.xpose.msra.mxu0 0.0
        %690 = vmatprep.subr.mxu0 0.0
        %691 = vmatpush1.xpose.msra.mxu0 0.0
        %692 = vmatprep.subr.mxu0 0.0
        %693 = vmatpush1.xpose.msra.mxu0 0.0
        %694 = vmatprep.subr.mxu0 0.0
        %695 = vmatpush1.xpose.msra.mxu0 0.0
        %696 = vmatprep.subr.mxu0 0.0
        %697 = vmatpush1.xpose.msra.mxu0 0.0
        %698 = vmatprep.subr.mxu0 0.0
        %699 = vmatpush1.xpose.msra.mxu0 0.0
        %700 = vmatprep.subr.mxu0 0.0
        %701 = vmatpush1.xpose.msra.mxu0 0.0
        %702 = vmatprep.subr.mxu0 0.0
        %703 = vmatpush1.xpose.msra.mxu0 0.0
        %704 = vmatprep.subr.mxu0 0.0
        %705 = vmatpush1.xpose.msra.mxu0 0.0
        %706 = vmatprep.subr.mxu0 0.0
        %707 = vmatpush1.xpose.msra.mxu0 0.0
        %708 = vmatprep.subr.mxu0 0.0
        %709 = vmatpush1.xpose.msra.mxu0 0.0
        %710 = vmatprep.subr.mxu0 0.0
        %711 = vmatpush1.xpose.msra.mxu0 0.0
        %712 = vmatprep.subr.mxu0 0.0
        %713 = vmatpush1.xpose.msra.mxu0 0.0
        %714 = vmatprep.subr.mxu0 0.0
        %715 = vmatpush1.xpose.msra.mxu0 0.0
        %716 = vmatprep.mubr.f32.mxu0 0.0
        %717 = vmatmul.mubr.f32.gmra.mrb[0].mxu0 %v644
        %v718 = vpop.f32.mrb[0].mxu0
        %v719 = vadd.f32 0.0, %v718
        %v720 = vpop.f32.mrb[0].mxu0
        %721 = vdwg.mxu0
        %v722 = vmul.f32 %v719, 0.35355338
        %vm723 = vcmask 130048
        %v724 = vsel %vm723, %v722, -inf
        %725 = vmax.xlane.f32.xlu0 %v724
        %v726 = vpop.xlane.xlu0 %725
        %v727 = vsub.f32 %v722, %v726
        %v728 = vmul.f32 %v727, 1.442695
        %v729 = vpow.pop %v728
        %v730 = vsel %vm723, %v729, 0.0
        %731 = vadd.xlane.f32.xlu0 %v730
        %v732 = vpop.xlane.xlu0 %731
        %v733 = vrcp.pop %v732
        %v734 = vmul.f32 %v732, %v733
        %v735 = vsub.f32 2.0, %v734
        %v736 = vmul.f32 %v733, %v735
        %v737 = vmul.f32 %v729, %v736
        %v739 = vsel %vm723, %v737, 0
        %741 = vmatprep.subr.mxu0 0.0
        %742 = vmatpush1.msra.mxu0 %v634
        %743 = vmatprep.subr.mxu0 0.0
        %744 = vmatpush1.msra.mxu0 %v639
        %745 = vmatprep.subr.mxu0 0.0
        %746 = vmatpush1.msra.mxu0 0.0
        %747 = vmatprep.subr.mxu0 0.0
        %748 = vmatpush1.msra.mxu0 0.0
        %749 = vmatprep.subr.mxu0 0.0
        %750 = vmatpush1.msra.mxu0 0.0
        %751 = vmatprep.subr.mxu0 0.0
        %752 = vmatpush1.msra.mxu0 0.0
        %753 = vmatprep.subr.mxu0 0.0
        %754 = vmatpush1.msra.mxu0 0.0
        %755 = vmatprep.subr.mxu0 0.0
        %756 = vmatpush1.msra.mxu0 0.0
        %757 = vmatprep.subr.mxu0 0.0
        %758 = vmatpush1.msra.mxu0 0.0
        %759 = vmatprep.subr.mxu0 0.0
        %760 = vmatpush1.msra.mxu0 0.0
        %761 = vmatprep.subr.mxu0 0.0
        %762 = vmatpush1.msra.mxu0 0.0
        %763 = vmatprep.subr.mxu0 0.0
        %764 = vmatpush1.msra.mxu0 0.0
        %765 = vmatprep.subr.mxu0 0.0
        %766 = vmatpush1.msra.mxu0 0.0
        %767 = vmatprep.subr.mxu0 0.0
        %768 = vmatpush1.msra.mxu0 0.0
        %769 = vmatprep.subr.mxu0 0.0
        %770 = vmatpush1.msra.mxu0 0.0
        %771 = vmatprep.subr.mxu0 0.0
        %772 = vmatpush1.msra.mxu0 0.0
        %773 = vmatprep.subr.mxu0 0.0
        %774 = vmatpush1.msra.mxu0 0.0
        %775 = vmatprep.subr.mxu0 0.0
        %776 = vmatpush1.msra.mxu0 0.0
        %777 = vmatprep.subr.mxu0 0.0
        %778 = vmatpush1.msra.mxu0 0.0
        %779 = vmatprep.subr.mxu0 0.0
        %780 = vmatpush1.msra.mxu0 0.0
        %781 = vmatprep.subr.mxu0 0.0
        %782 = vmatpush1.msra.mxu0 0.0
        %783 = vmatprep.subr.mxu0 0.0
        %784 = vmatpush1.msra.mxu0 0.0
        %785 = vmatprep.subr.mxu0 0.0
        %786 = vmatpush1.msra.mxu0 0.0
        %787 = vmatprep.subr.mxu0 0.0
        %788 = vmatpush1.msra.mxu0 0.0
        %789 = vmatprep.subr.mxu0 0.0
        %790 = vmatpush1.msra.mxu0 0.0
        %791 = vmatprep.subr.mxu0 0.0
        %792 = vmatpush1.msra.mxu0 0.0
        %793 = vmatprep.subr.mxu0 0.0
        %794 = vmatpush1.msra.mxu0 0.0
        %795 = vmatprep.subr.mxu0 0.0
        %796 = vmatpush1.msra.mxu0 0.0
        %797 = vmatprep.subr.mxu0 0.0
        %798 = vmatpush1.msra.mxu0 0.0
        %799 = vmatprep.subr.mxu0 0.0
        %800 = vmatpush1.msra.mxu0 0.0
        %801 = vmatprep.subr.mxu0 0.0
        %802 = vmatpush1.msra.mxu0 0.0
        %803 = vmatprep.subr.mxu0 0.0
        %804 = vmatpush1.msra.mxu0 0.0
        %805 = vmatprep.mubr.f32.mxu0 0.0
        %806 = vmatmul.mubr.f32.gmra.mrb[0].mxu0 %v739
        %v807 = vpop.f32.mrb[0].mxu0
        %v808 = vadd.f32 0.0, %v807
        %v809 = vpop.f32.mrb[0].mxu0
        %810 = vdwg.mxu0
        %811 = vrot.lane.b32.xlu0 %v483, 120
        %v812 = vpop.permute.xlu0 %811
        %813 = vrot.lane.b32.xlu0 %v559, 120
        %v814 = vpop.permute.xlu0 %813
        %815 = vrot.lane.b32.xlu0 %v564, 120
        %v816 = vpop.permute.xlu0 %815
        %v817 = vsel %vm642, %v812, 0
        %v819 = vsel %vm642, %v814, 0
        %v821 = vsel %vm642, %v816, 0
        %823 = vmatprep.subr.mxu0 0.0
        %824 = vmatpush1.xpose.msra.mxu0 %v819
        %825 = vmatprep.subr.mxu0 0.0
        %826 = vmatpush1.xpose.msra.mxu0 %v821
        %827 = vmatprep.subr.mxu0 0.0
        %828 = vmatpush1.xpose.msra.mxu0 0.0
        %829 = vmatprep.subr.mxu0 0.0
        %830 = vmatpush1.xpose.msra.mxu0 0.0
        %831 = vmatprep.subr.mxu0 0.0
        %832 = vmatpush1.xpose.msra.mxu0 0.0
        %833 = vmatprep.subr.mxu0 0.0
        %834 = vmatpush1.xpose.msra.mxu0 0.0
        %835 = vmatprep.subr.mxu0 0.0
        %836 = vmatpush1.xpose.msra.mxu0 0.0
        %837 = vmatprep.subr.mxu0 0.0
        %838 = vmatpush1.xpose.msra.mxu0 0.0
        %839 = vmatprep.subr.mxu0 0.0
        %840 = vmatpush1.xpose.msra.mxu0 0.0
        %841 = vmatprep.subr.mxu0 0.0
        %842 = vmatpush1.xpose.msra.mxu0 0.0
        %843 = vmatprep.subr.mxu0 0.0
        %844 = vmatpush1.xpose.msra.mxu0 0.0
        %845 = vmatprep.subr.mxu0 0.0
        %846 = vmatpush1.xpose.msra.mxu0 0.0
        %847 = vmatprep.subr.mxu0 0.0
        %848 = vmatpush1.xpose.msra.mxu0 0.0
        %849 = vmatprep.subr.mxu0 0.0
        %850 = vmatpush1.xpose.msra.mxu0 0.0
        %851 = vmatprep.subr.mxu0 0.0
        %852 = vmatpush1.xpose.msra.mxu0 0.0
        %853 = vmatprep.subr.mxu0 0.0
        %854 = vmatpush1.xpose.msra.mxu0 0.0
        %855 = vmatprep.subr.mxu0 0.0
        %856 = vmatpush1.xpose.msra.mxu0 0.0
        %857 = vmatprep.subr.mxu0 0.0
        %858 = vmatpush1.xpose.msra.mxu0 0.0
        %859 = vmatprep.subr.mxu0 0.0
        %860 = vmatpush1.xpose.msra.mxu0 0.0
        %861 = vmatprep.subr.mxu0 0.0
        %862 = vmatpush1.xpose.msra.mxu0 0.0
        %863 = vmatprep.subr.mxu0 0.0
        %864 = vmatpush1.xpose.msra.mxu0 0.0
        %865 = vmatprep.subr.mxu0 0.0
        %866 = vmatpush1.xpose.msra.mxu0 0.0
        %867 = vmatprep.subr.mxu0 0.0
        %868 = vmatpush1.xpose.msra.mxu0 0.0
        %869 = vmatprep.subr.mxu0 0.0
        %870 = vmatpush1.xpose.msra.mxu0 0.0
        %871 = vmatprep.subr.mxu0 0.0
        %872 = vmatpush1.xpose.msra.mxu0 0.0
        %873 = vmatprep.subr.mxu0 0.0
        %874 = vmatpush1.xpose.msra.mxu0 0.0
        %875 = vmatprep.subr.mxu0 0.0
        %876 = vmatpush1.xpose.msra.mxu0 0.0
        %877 = vmatprep.subr.mxu0 0.0
        %878 = vmatpush1.xpose.msra.mxu0 0.0
        %879 = vmatprep.subr.mxu0 0.0
        %880 = vmatpush1.xpose.msra.mxu0 0.0
        %881 = vmatprep.subr.mxu0 0.0
        %882 = vmatpush1.xpose.msra.mxu0 0.0
        %883 = vmatprep.subr.mxu0 0.0
        %884 = vmatpush1.xpose.msra.mxu0 0.0
        %885 = vmatprep.subr.mxu0 0.0
        %886 = vmatpush1.xpose.msra.mxu0 0.0
        %887 = vmatprep.mubr.f32.mxu0 0.0
        %888 = vmatmul.mubr.f32.gmra.mrb[0].mxu0 %v817
        %v889 = vpop.f32.mrb[0].mxu0
        %v890 = vadd.f32 0.0, %v889
        %v891 = vpop.f32.mrb[0].mxu0
        %892 = vdwg.mxu0
        %v893 = vmul.f32 %v890, 0.35355338
        %v894 = vsel %vm723, %v893, -inf
        %895 = vmax.xlane.f32.xlu0 %v894
        %v896 = vpop.xlane.xlu0 %895
        %v897 = vsub.f32 %v893, %v896
        %v898 = vmul.f32 %v897, 1.442695
        %v899 = vpow.pop %v898
        %v900 = vsel %vm723, %v899, 0.0
        %901 = vadd.xlane.f32.xlu0 %v900
        %v902 = vpop.xlane.xlu0 %901
        %v903 = vrcp.pop %v902
        %v904 = vmul.f32 %v902, %v903
        %v905 = vsub.f32 2.0, %v904
        %v906 = vmul.f32 %v903, %v905
        %v907 = vmul.f32 %v899, %v906
        %910 = vrot.lane.b32.xlu0 %v634, 120
        %v911 = vpop.permute.xlu0 %910
        %912 = vrot.lane.b32.xlu0 %v639, 120
        %v913 = vpop.permute.xlu0 %912
        %v917 = vsel %vm723, %v907, 0
        %919 = vmatprep.subr.mxu0 0.0
        %920 = vmatpush1.msra.mxu0 %v911
        %921 = vmatprep.subr.mxu0 0.0
        %922 = vmatpush1.msra.mxu0 %v913
        %923 = vmatprep.subr.mxu0 0.0
        %924 = vmatpush1.msra.mxu0 0.0
        %925 = vmatprep.subr.mxu0 0.0
        %926 = vmatpush1.msra.mxu0 0.0
        %927 = vmatprep.subr.mxu0 0.0
        %928 = vmatpush1.msra.mxu0 0.0
        %929 = vmatprep.subr.mxu0 0.0
        %930 = vmatpush1.msra.mxu0 0.0
        %931 = vmatprep.subr.mxu0 0.0
        %932 = vmatpush1.msra.mxu0 0.0
        %933 = vmatprep.subr.mxu0 0.0
        %934 = vmatpush1.msra.mxu0 0.0
        %935 = vmatprep.subr.mxu0 0.0
        %936 = vmatpush1.msra.mxu0 0.0
        %937 = vmatprep.subr.mxu0 0.0
        %938 = vmatpush1.msra.mxu0 0.0
        %939 = vmatprep.subr.mxu0 0.0
        %940 = vmatpush1.msra.mxu0 0.0
        %941 = vmatprep.subr.mxu0 0.0
        %942 = vmatpush1.msra.mxu0 0.0
        %943 = vmatprep.subr.mxu0 0.0
        %944 = vmatpush1.msra.mxu0 0.0
        %945 = vmatprep.subr.mxu0 0.0
        %946 = vmatpush1.msra.mxu0 0.0
        %947 = vmatprep.subr.mxu0 0.0
        %948 = vmatpush1.msra.mxu0 0.0
        %949 = vmatprep.subr.mxu0 0.0
        %950 = vmatpush1.msra.mxu0 0.0
        %951 = vmatprep.subr.mxu0 0.0
        %952 = vmatpush1.msra.mxu0 0.0
        %953 = vmatprep.subr.mxu0 0.0
        %954 = vmatpush1.msra.mxu0 0.0
        %955 = vmatprep.subr.mxu0 0.0
        %956 = vmatpush1.msra.mxu0 0.0
        %957 = vmatprep.subr.mxu0 0.0
        %958 = vmatpush1.msra.mxu0 0.0
        %959 = vmatprep.subr.mxu0 0.0
        %960 = vmatpush1.msra.mxu0 0.0
        %961 = vmatprep.subr.mxu0 0.0
        %962 = vmatpush1.msra.mxu0 0.0
        %963 = vmatprep.subr.mxu0 0.0
        %964 = vmatpush1.msra.mxu0 0.0
        %965 = vmatprep.subr.mxu0 0.0
        %966 = vmatpush1.msra.mxu0 0.0
        %967 = vmatprep.subr.mxu0 0.0
        %968 = vmatpush1.msra.mxu0 0.0
        %969 = vmatprep.subr.mxu0 0.0
        %970 = vmatpush1.msra.mxu0 0.0
        %971 = vmatprep.subr.mxu0 0.0
        %972 = vmatpush1.msra.mxu0 0.0
        %973 = vmatprep.subr.mxu0 0.0
        %974 = vmatpush1.msra.mxu0 0.0
        %975 = vmatprep.subr.mxu0 0.0
        %976 = vmatpush1.msra.mxu0 0.0
        %977 = vmatprep.subr.mxu0 0.0
        %978 = vmatpush1.msra.mxu0 0.0
        %979 = vmatprep.subr.mxu0 0.0
        %980 = vmatpush1.msra.mxu0 0.0
        %981 = vmatprep.subr.mxu0 0.0
        %982 = vmatpush1.msra.mxu0 0.0
        %983 = vmatprep.mubr.f32.mxu0 0.0
        %984 = vmatmul.mubr.f32.gmra.mrb[0].mxu0 %v917
        %v985 = vpop.f32.mrb[0].mxu0
        %v986 = vadd.f32 0.0, %v985
        %v987 = vpop.f32.mrb[0].mxu0
        %988 = vdwg.mxu0
        %989 = vrot.lane.b32.xlu0 %v483, 112
        %v990 = vpop.permute.xlu0 %989
        %991 = vrot.lane.b32.xlu0 %v559, 112
        %v992 = vpop.permute.xlu0 %991
        %993 = vrot.lane.b32.xlu0 %v564, 112
        %v994 = vpop.permute.xlu0 %993
        %v995 = vsel %vm642, %v990, 0
        %v997 = vsel %vm642, %v992, 0
        %v999 = vsel %vm642, %v994, 0
        %1001 = vmatprep.subr.mxu0 0.0
        %1002 = vmatpush1.xpose.msra.mxu0 %v997
        %1003 = vmatprep.subr.mxu0 0.0
        %1004 = vmatpush1.xpose.msra.mxu0 %v999
        %1005 = vmatprep.subr.mxu0 0.0
        %1006 = vmatpush1.xpose.msra.mxu0 0.0
        %1007 = vmatprep.subr.mxu0 0.0
        %1008 = vmatpush1.xpose.msra.mxu0 0.0
        %1009 = vmatprep.subr.mxu0 0.0
        %1010 = vmatpush1.xpose.msra.mxu0 0.0
        %1011 = vmatprep.subr.mxu0 0.0
        %1012 = vmatpush1.xpose.msra.mxu0 0.0
        %1013 = vmatprep.subr.mxu0 0.0
        %1014 = vmatpush1.xpose.msra.mxu0 0.0
        %1015 = vmatprep.subr.mxu0 0.0
        %1016 = vmatpush1.xpose.msra.mxu0 0.0
        %1017 = vmatprep.subr.mxu0 0.0
        %1018 = vmatpush1.xpose.msra.mxu0 0.0
        %1019 = vmatprep.subr.mxu0 0.0
        %1020 = vmatpush1.xpose.msra.mxu0 0.0
        %1021 = vmatprep.subr.mxu0 0.0
        %1022 = vmatpush1.xpose.msra.mxu0 0.0
        %1023 = vmatprep.subr.mxu0 0.0
        %1024 = vmatpush1.xpose.msra.mxu0 0.0
        %1025 = vmatprep.subr.mxu0 0.0
        %1026 = vmatpush1.xpose.msra.mxu0 0.0
        %1027 = vmatprep.subr.mxu0 0.0
        %1028 = vmatpush1.xpose.msra.mxu0 0.0
        %1029 = vmatprep.subr.mxu0 0.0
        %1030 = vmatpush1.xpose.msra.mxu0 0.0
        %1031 = vmatprep.subr.mxu0 0.0
        %1032 = vmatpush1.xpose.msra.mxu0 0.0
        %1033 = vmatprep.subr.mxu0 0.0
        %1034 = vmatpush1.xpose.msra.mxu0 0.0
        %1035 = vmatprep.subr.mxu0 0.0
        %1036 = vmatpush1.xpose.msra.mxu0 0.0
        %1037 = vmatprep.subr.mxu0 0.0
        %1038 = vmatpush1.xpose.msra.mxu0 0.0
        %1039 = vmatprep.subr.mxu0 0.0
        %1040 = vmatpush1.xpose.msra.mxu0 0.0
        %1041 = vmatprep.subr.mxu0 0.0
        %1042 = vmatpush1.xpose.msra.mxu0 0.0
        %1043 = vmatprep.subr.mxu0 0.0
        %1044 = vmatpush1.xpose.msra.mxu0 0.0
        %1045 = vmatprep.subr.mxu0 0.0
        %1046 = vmatpush1.xpose.msra.mxu0 0.0
        %1047 = vmatprep.subr.mxu0 0.0
        %1048 = vmatpush1.xpose.msra.mxu0 0.0
        %1049 = vmatprep.subr.mxu0 0.0
        %1050 = vmatpush1.xpose.msra.mxu0 0.0
        %1051 = vmatprep.subr.mxu0 0.0
        %1052 = vmatpush1.xpose.msra.mxu0 0.0
        %1053 = vmatprep.subr.mxu0 0.0
        %1054 = vmatpush1.xpose.msra.mxu0 0.0
        %1055 = vmatprep.subr.mxu0 0.0
        %1056 = vmatpush1.xpose.msra.mxu0 0.0
        %1057 = vmatprep.subr.mxu0 0.0
        %1058 = vmatpush1.xpose.msra.mxu0 0.0
        %1059 = vmatprep.subr.mxu0 0.0
        %1060 = vmatpush1.xpose.msra.mxu0 0.0
        %1061 = vmatprep.subr.mxu0 0.0
        %1062 = vmatpush1.xpose.msra.mxu0 0.0
        %1063 = vmatprep.subr.mxu0 0.0
        %1064 = vmatpush1.xpose.msra.mxu0 0.0
        %1065 = vmatprep.mubr.f32.mxu0 0.0
        %1066 = vmatmul.mubr.f32.gmra.mrb[0].mxu0 %v995
        %v1067 = vpop.f32.mrb[0].mxu0
        %v1068 = vadd.f32 0.0, %v1067
        %v1069 = vpop.f32.mrb[0].mxu0
        %1070 = vdwg.mxu0
        %v1071 = vmul.f32 %v1068, 0.35355338
        %v1072 = vsel %vm723, %v1071, -inf
        %1073 = vmax.xlane.f32.xlu0 %v1072
        %v1074 = vpop.xlane.xlu0 %1073
        %v1075 = vsub.f32 %v1071, %v1074
        %v1076 = vmul.f32 %v1075, 1.442695
        %v1077 = vpow.pop %v1076
        %v1078 = vsel %vm723, %v1077, 0.0
        %1079 = vadd.xlane.f32.xlu0 %v1078
        %v1080 = vpop.xlane.xlu0 %1079
        %v1081 = vrcp.pop %v1080
        %v1082 = vmul.f32 %v1080, %v1081
        %v1083 = vsub.f32 2.0, %v1082
        %v1084 = vmul.f32 %v1081, %v1083
        %v1085 = vmul.f32 %v1077, %v1084
        %1086 = vrot.lane.b32.xlu0 %v634, 112
        %v1087 = vpop.permute.xlu0 %1086
        %1088 = vrot.lane.b32.xlu0 %v639, 112
        %v1089 = vpop.permute.xlu0 %1088
        %v1093 = vsel %vm723, %v1085, 0
        %1095 = vmatprep.subr.mxu0 0.0
        %1096 = vmatpush1.msra.mxu0 %v1087
        %1097 = vmatprep.subr.mxu0 0.0
        %1098 = vmatpush1.msra.mxu0 %v1089
        %1099 = vmatprep.subr.mxu0 0.0
        %1100 = vmatpush1.msra.mxu0 0.0
        %1101 = vmatprep.subr.mxu0 0.0
        %1102 = vmatpush1.msra.mxu0 0.0
        %1103 = vmatprep.subr.mxu0 0.0
        %1104 = vmatpush1.msra.mxu0 0.0
        %1105 = vmatprep.subr.mxu0 0.0
        %1106 = vmatpush1.msra.mxu0 0.0
        %1107 = vmatprep.subr.mxu0 0.0
        %1108 = vmatpush1.msra.mxu0 0.0
        %1109 = vmatprep.subr.mxu0 0.0
        %1110 = vmatpush1.msra.mxu0 0.0
        %1111 = vmatprep.subr.mxu0 0.0
        %1112 = vmatpush1.msra.mxu0 0.0
        %1113 = vmatprep.subr.mxu0 0.0
        %1114 = vmatpush1.msra.mxu0 0.0
        %1115 = vmatprep.subr.mxu0 0.0
        %1116 = vmatpush1.msra.mxu0 0.0
        %1117 = vmatprep.subr.mxu0 0.0
        %1118 = vmatpush1.msra.mxu0 0.0
        %1119 = vmatprep.subr.mxu0 0.0
        %1120 = vmatpush1.msra.mxu0 0.0
        %1121 = vmatprep.subr.mxu0 0.0
        %1122 = vmatpush1.msra.mxu0 0.0
        %1123 = vmatprep.subr.mxu0 0.0
        %1124 = vmatpush1.msra.mxu0 0.0
        %1125 = vmatprep.subr.mxu0 0.0
        %1126 = vmatpush1.msra.mxu0 0.0
        %1127 = vmatprep.subr.mxu0 0.0
        %1128 = vmatpush1.msra.mxu0 0.0
        %1129 = vmatprep.subr.mxu0 0.0
        %1130 = vmatpush1.msra.mxu0 0.0
        %1131 = vmatprep.subr.mxu0 0.0
        %1132 = vmatpush1.msra.mxu0 0.0
        %1133 = vmatprep.subr.mxu0 0.0
        %1134 = vmatpush1.msra.mxu0 0.0
        %1135 = vmatprep.subr.mxu0 0.0
        %1136 = vmatpush1.msra.mxu0 0.0
        %1137 = vmatprep.subr.mxu0 0.0
        %1138 = vmatpush1.msra.mxu0 0.0
        %1139 = vmatprep.subr.mxu0 0.0
        %1140 = vmatpush1.msra.mxu0 0.0
        %1141 = vmatprep.subr.mxu0 0.0
        %1142 = vmatpush1.msra.mxu0 0.0
        %1143 = vmatprep.subr.mxu0 0.0
        %1144 = vmatpush1.msra.mxu0 0.0
        %1145 = vmatprep.subr.mxu0 0.0
        %1146 = vmatpush1.msra.mxu0 0.0
        %1147 = vmatprep.subr.mxu0 0.0
        %1148 = vmatpush1.msra.mxu0 0.0
        %1149 = vmatprep.subr.mxu0 0.0
        %1150 = vmatpush1.msra.mxu0 0.0
        %1151 = vmatprep.subr.mxu0 0.0
        %1152 = vmatpush1.msra.mxu0 0.0
        %1153 = vmatprep.subr.mxu0 0.0
        %1154 = vmatpush1.msra.mxu0 0.0
        %1155 = vmatprep.subr.mxu0 0.0
        %1156 = vmatpush1.msra.mxu0 0.0
        %1157 = vmatprep.subr.mxu0 0.0
        %1158 = vmatpush1.msra.mxu0 0.0
        %1159 = vmatprep.mubr.f32.mxu0 0.0
        %1160 = vmatmul.mubr.f32.gmra.mrb[0].mxu0 %v1093
        %v1161 = vpop.f32.mrb[0].mxu0
        %v1162 = vadd.f32 0.0, %v1161
        %v1163 = vpop.f32.mrb[0].mxu0
        %1164 = vdwg.mxu0
        %1165 = vrot.lane.b32.xlu0 %v483, 104
        %v1166 = vpop.permute.xlu0 %1165
        %1167 = vrot.lane.b32.xlu0 %v559, 104
        %v1168 = vpop.permute.xlu0 %1167
        %1169 = vrot.lane.b32.xlu0 %v564, 104
        %v1170 = vpop.permute.xlu0 %1169
        %v1171 = vsel %vm642, %v1166, 0
        %v1173 = vsel %vm642, %v1168, 0
        %v1175 = vsel %vm642, %v1170, 0
        %1177 = vmatprep.subr.mxu0 0.0
        %1178 = vmatpush1.xpose.msra.mxu0 %v1173
        %1179 = vmatprep.subr.mxu0 0.0
        %1180 = vmatpush1.xpose.msra.mxu0 %v1175
        %1181 = vmatprep.subr.mxu0 0.0
        %1182 = vmatpush1.xpose.msra.mxu0 0.0
        %1183 = vmatprep.subr.mxu0 0.0
        %1184 = vmatpush1.xpose.msra.mxu0 0.0
        %1185 = vmatprep.subr.mxu0 0.0
        %1186 = vmatpush1.xpose.msra.mxu0 0.0
        %1187 = vmatprep.subr.mxu0 0.0
        %1188 = vmatpush1.xpose.msra.mxu0 0.0
        %1189 = vmatprep.subr.mxu0 0.0
        %1190 = vmatpush1.xpose.msra.mxu0 0.0
        %1191 = vmatprep.subr.mxu0 0.0
        %1192 = vmatpush1.xpose.msra.mxu0 0.0
        %1193 = vmatprep.subr.mxu0 0.0
        %1194 = vmatpush1.xpose.msra.mxu0 0.0
        %1195 = vmatprep.subr.mxu0 0.0
        %1196 = vmatpush1.xpose.msra.mxu0 0.0
        %1197 = vmatprep.subr.mxu0 0.0
        %1198 = vmatpush1.xpose.msra.mxu0 0.0
        %1199 = vmatprep.subr.mxu0 0.0
        %1200 = vmatpush1.xpose.msra.mxu0 0.0
        %1201 = vmatprep.subr.mxu0 0.0
        %1202 = vmatpush1.xpose.msra.mxu0 0.0
        %1203 = vmatprep.subr.mxu0 0.0
        %1204 = vmatpush1.xpose.msra.mxu0 0.0
        %1205 = vmatprep.subr.mxu0 0.0
        %1206 = vmatpush1.xpose.msra.mxu0 0.0
        %1207 = vmatprep.subr.mxu0 0.0
        %1208 = vmatpush1.xpose.msra.mxu0 0.0
        %1209 = vmatprep.subr.mxu0 0.0
        %1210 = vmatpush1.xpose.msra.mxu0 0.0
        %1211 = vmatprep.subr.mxu0 0.0
        %1212 = vmatpush1.xpose.msra.mxu0 0.0
        %1213 = vmatprep.subr.mxu0 0.0
        %1214 = vmatpush1.xpose.msra.mxu0 0.0
        %1215 = vmatprep.subr.mxu0 0.0
        %1216 = vmatpush1.xpose.msra.mxu0 0.0
        %1217 = vmatprep.subr.mxu0 0.0
        %1218 = vmatpush1.xpose.msra.mxu0 0.0
        %1219 = vmatprep.subr.mxu0 0.0
        %1220 = vmatpush1.xpose.msra.mxu0 0.0
        %1221 = vmatprep.subr.mxu0 0.0
        %1222 = vmatpush1.xpose.msra.mxu0 0.0
        %1223 = vmatprep.subr.mxu0 0.0
        %1224 = vmatpush1.xpose.msra.mxu0 0.0
        %1225 = vmatprep.subr.mxu0 0.0
        %1226 = vmatpush1.xpose.msra.mxu0 0.0
        %1227 = vmatprep.subr.mxu0 0.0
        %1228 = vmatpush1.xpose.msra.mxu0 0.0
        %1229 = vmatprep.subr.mxu0 0.0
        %1230 = vmatpush1.xpose.msra.mxu0 0.0
        %1231 = vmatprep.subr.mxu0 0.0
        %1232 = vmatpush1.xpose.msra.mxu0 0.0
        %1233 = vmatprep.subr.mxu0 0.0
        %1234 = vmatpush1.xpose.msra.mxu0 0.0
        %1235 = vmatprep.subr.mxu0 0.0
        %1236 = vmatpush1.xpose.msra.mxu0 0.0
        %1237 = vmatprep.subr.mxu0 0.0
        %1238 = vmatpush1.xpose.msra.mxu0 0.0
        %1239 = vmatprep.subr.mxu0 0.0
        %1240 = vmatpush1.xpose.msra.mxu0 0.0
        %1241 = vmatprep.mubr.f32.mxu0 0.0
        %1242 = vmatmul.mubr.f32.gmra.mrb[0].mxu0 %v1171
        %v1243 = vpop.f32.mrb[0].mxu0
        %v1244 = vadd.f32 0.0, %v1243
        %v1245 = vpop.f32.mrb[0].mxu0
        %1246 = vdwg.mxu0
        %v1247 = vmul.f32 %v1244, 0.35355338
        %v1248 = vsel %vm723, %v1247, -inf
        %1249 = vmax.xlane.f32.xlu0 %v1248
        %v1250 = vpop.xlane.xlu0 %1249
        %v1251 = vsub.f32 %v1247, %v1250
        %v1252 = vmul.f32 %v1251, 1.442695
        %v1253 = vpow.pop %v1252
        %v1254 = vsel %vm723, %v1253, 0.0
        %1255 = vadd.xlane.f32.xlu0 %v1254
        %v1256 = vpop.xlane.xlu0 %1255
        %v1257 = vrcp.pop %v1256
        %v1258 = vmul.f32 %v1256, %v1257
        %v1259 = vsub.f32 2.0, %v1258
        %v1260 = vmul.f32 %v1257, %v1259
        %v1261 = vmul.f32 %v1253, %v1260
        %1262 = vrot.lane.b32.xlu0 %v634, 104
        %v1263 = vpop.permute.xlu0 %1262
        %1264 = vrot.lane.b32.xlu0 %v639, 104
        %v1265 = vpop.permute.xlu0 %1264
        %v1269 = vsel %vm723, %v1261, 0
        %1271 = vmatprep.subr.mxu0 0.0
        %1272 = vmatpush1.msra.mxu0 %v1263
        %1273 = vmatprep.subr.mxu0 0.0
        %1274 = vmatpush1.msra.mxu0 %v1265
        %1275 = vmatprep.subr.mxu0 0.0
        %1276 = vmatpush1.msra.mxu0 0.0
        %1277 = vmatprep.subr.mxu0 0.0
        %1278 = vmatpush1.msra.mxu0 0.0
        %1279 = vmatprep.subr.mxu0 0.0
        %1280 = vmatpush1.msra.mxu0 0.0
        %1281 = vmatprep.subr.mxu0 0.0
        %1282 = vmatpush1.msra.mxu0 0.0
        %1283 = vmatprep.subr.mxu0 0.0
        %1284 = vmatpush1.msra.mxu0 0.0
        %1285 = vmatprep.subr.mxu0 0.0
        %1286 = vmatpush1.msra.mxu0 0.0
        %1287 = vmatprep.subr.mxu0 0.0
        %1288 = vmatpush1.msra.mxu0 0.0
        %1289 = vmatprep.subr.mxu0 0.0
        %1290 = vmatpush1.msra.mxu0 0.0
        %1291 = vmatprep.subr.mxu0 0.0
        %1292 = vmatpush1.msra.mxu0 0.0
        %1293 = vmatprep.subr.mxu0 0.0
        %1294 = vmatpush1.msra.mxu0 0.0
        %1295 = vmatprep.subr.mxu0 0.0
        %1296 = vmatpush1.msra.mxu0 0.0
        %1297 = vmatprep.subr.mxu0 0.0
        %1298 = vmatpush1.msra.mxu0 0.0
        %1299 = vmatprep.subr.mxu0 0.0
        %1300 = vmatpush1.msra.mxu0 0.0
        %1301 = vmatprep.subr.mxu0 0.0
        %1302 = vmatpush1.msra.mxu0 0.0
        %1303 = vmatprep.subr.mxu0 0.0
        %1304 = vmatpush1.msra.mxu0 0.0
        %1305 = vmatprep.subr.mxu0 0.0
        %1306 = vmatpush1.msra.mxu0 0.0
        %1307 = vmatprep.subr.mxu0 0.0
        %1308 = vmatpush1.msra.mxu0 0.0
        %1309 = vmatprep.subr.mxu0 0.0
        %1310 = vmatpush1.msra.mxu0 0.0
        %1311 = vmatprep.subr.mxu0 0.0
        %1312 = vmatpush1.msra.mxu0 0.0
        %1313 = vmatprep.subr.mxu0 0.0
        %1314 = vmatpush1.msra.mxu0 0.0
        %1315 = vmatprep.subr.mxu0 0.0
        %1316 = vmatpush1.msra.mxu0 0.0
        %1317 = vmatprep.subr.mxu0 0.0
        %1318 = vmatpush1.msra.mxu0 0.0
        %1319 = vmatprep.subr.mxu0 0.0
        %1320 = vmatpush1.msra.mxu0 0.0
        %1321 = vmatprep.subr.mxu0 0.0
        %1322 = vmatpush1.msra.mxu0 0.0
        %1323 = vmatprep.subr.mxu0 0.0
        %1324 = vmatpush1.msra.mxu0 0.0
        %1325 = vmatprep.subr.mxu0 0.0
        %1326 = vmatpush1.msra.mxu0 0.0
        %1327 = vmatprep.subr.mxu0 0.0
        %1328 = vmatpush1.msra.mxu0 0.0
        %1329 = vmatprep.subr.mxu0 0.0
        %1330 = vmatpush1.msra.mxu0 0.0
        %1331 = vmatprep.subr.mxu0 0.0
        %1332 = vmatpush1.msra.mxu0 0.0
        %1333 = vmatprep.subr.mxu0 0.0
        %1334 = vmatpush1.msra.mxu0 0.0
        %1335 = vmatprep.mubr.f32.mxu0 0.0
        %1336 = vmatmul.mubr.f32.gmra.mrb[0].mxu0 %v1269
        %v1337 = vpop.f32.mrb[0].mxu0
        %v1338 = vadd.f32 0.0, %v1337
        %v1339 = vpop.f32.mrb[0].mxu0
        %1340 = vdwg.mxu0
        %1342 = vrot.lane.b32.xlu0 %v986, 8
        %v1343 = vpop.permute.xlu0 %1342
        %1346 = vrot.lane.b32.xlu0 %v1162, 16
        %v1347 = vpop.permute.xlu0 %1346
        %1350 = vrot.lane.b32.xlu0 %v1338, 24
        %v1351 = vpop.permute.xlu0 %1350
        %v1353 = vsel %vm642, %v808, %v1343
        %v1354 = vsel %vm723, %v1353, %v1347
        %vm1355 = vcmask 195584
        %v1356 = vsel %vm1355, %v1354, %v1351
        %v1358 = vlaneseq
        %v1359 = vshrl.u32 %v1358, 7
        %v1360 = vsub.s32 0, %v1359
        %v1361 = vrot.slane %v411, %v1360
        %v1364 = vsel %vm412, %v1356, 0
        %1366 = vmatprep.subr.mxu0 0.0
        %1367 = vmatpush1.msra.mxu0 %v407
        %1368 = vmatprep.subr.mxu0 0.0
        %1369 = vmatpush1.msra.mxu0 %v408
        %1370 = vmatprep.subr.mxu0 0.0
        %1371 = vmatpush1.msra.mxu0 %v409
        %1372 = vmatprep.subr.mxu0 0.0
        %1373 = vmatpush1.msra.mxu0 %v410
        %1374 = vmatprep.subr.mxu0 0.0
        %1375 = vmatpush1.msra.mxu0 0.0
        %1376 = vmatprep.subr.mxu0 0.0
        %1377 = vmatpush1.msra.mxu0 0.0
        %1378 = vmatprep.subr.mxu0 0.0
        %1379 = vmatpush1.msra.mxu0 0.0
        %1380 = vmatprep.subr.mxu0 0.0
        %1381 = vmatpush1.msra.mxu0 0.0
        %1382 = vmatprep.subr.mxu0 0.0
        %1383 = vmatpush1.msra.mxu0 0.0
        %1384 = vmatprep.subr.mxu0 0.0
        %1385 = vmatpush1.msra.mxu0 0.0
        %1386 = vmatprep.subr.mxu0 0.0
        %1387 = vmatpush1.msra.mxu0 0.0
        %1388 = vmatprep.subr.mxu0 0.0
        %1389 = vmatpush1.msra.mxu0 0.0
        %1390 = vmatprep.subr.mxu0 0.0
        %1391 = vmatpush1.msra.mxu0 0.0
        %1392 = vmatprep.subr.mxu0 0.0
        %1393 = vmatpush1.msra.mxu0 0.0
        %1394 = vmatprep.subr.mxu0 0.0
        %1395 = vmatpush1.msra.mxu0 0.0
        %1396 = vmatprep.subr.mxu0 0.0
        %1397 = vmatpush1.msra.mxu0 0.0
        %1398 = vmatprep.subr.mxu0 0.0
        %1399 = vmatpush1.msra.mxu0 0.0
        %1400 = vmatprep.subr.mxu0 0.0
        %1401 = vmatpush1.msra.mxu0 0.0
        %1402 = vmatprep.subr.mxu0 0.0
        %1403 = vmatpush1.msra.mxu0 0.0
        %1404 = vmatprep.subr.mxu0 0.0
        %1405 = vmatpush1.msra.mxu0 0.0
        %1406 = vmatprep.subr.mxu0 0.0
        %1407 = vmatpush1.msra.mxu0 0.0
        %1408 = vmatprep.subr.mxu0 0.0
        %1409 = vmatpush1.msra.mxu0 0.0
        %1410 = vmatprep.subr.mxu0 0.0
        %1411 = vmatpush1.msra.mxu0 0.0
        %1412 = vmatprep.subr.mxu0 0.0
        %1413 = vmatpush1.msra.mxu0 0.0
        %1414 = vmatprep.subr.mxu0 0.0
        %1415 = vmatpush1.msra.mxu0 0.0
        %1416 = vmatprep.subr.mxu0 0.0
        %1417 = vmatpush1.msra.mxu0 0.0
        %1418 = vmatprep.subr.mxu0 0.0
        %1419 = vmatpush1.msra.mxu0 0.0
        %1420 = vmatprep.subr.mxu0 0.0
        %1421 = vmatpush1.msra.mxu0 0.0
        %1422 = vmatprep.subr.mxu0 0.0
        %1423 = vmatpush1.msra.mxu0 0.0
        %1424 = vmatprep.subr.mxu0 0.0
        %1425 = vmatpush1.msra.mxu0 0.0
        %1426 = vmatprep.subr.mxu0 0.0
        %1427 = vmatpush1.msra.mxu0 0.0
        %1428 = vmatprep.subr.mxu0 0.0
        %1429 = vmatpush1.msra.mxu0 0.0
        %1430 = vmatprep.mubr.f32.mxu0 0.0
        %1431 = vmatmul.mubr.f32.gmra.mrb[0].mxu0 %v1364
        %v1432 = vpop.f32.mrb[0].mxu0
        %v1433 = vadd.f32 %v1361, %v1432
        %v1434 = vpop.f32.mrb[0].mxu0
        %1435 = vdwg.mxu0
        %1436 = vst.msk [vmem:[%s391] sm:$0xff] %vm412, %v1433
        %s1437 = sand.u32 %s194, 1
        %s1438 = scalar_lea.sflag [#allocation4], %s1437
        %s1439 = sand.u32 %s194, 1
        %s1440 = smul.addr %s1439, 8
        %s1441 = scalar_lea.vmem [#allocation13], %s1440
        // Predicated region
        $region73: #{tpu_custom_call.1} parent=47 // pred_check
          %p1442 = pneg %p204
        $region74: #{tpu_custom_call.1} parent=47 // pred_check_branch
          %1444 = sbr.rel (%p1442) target = $region76
        $region75: #{tpu_custom_call.1} parent=47 // pred_region
          %s1446 = ssub.s32 128, 128
          %1447 = vsyncadd %s1438, %s1446
          %s1448 = smul.addr %s29, 128
          %s1449 = scalar_lea.hbm %s7, %s1448
          %s1451 = sshll.u32 %s1441, 4
          %s1452 = int_to_ptr.vmem [resolvable:$true] %s1451
          %1454 = dma.vmem_to_hbm [thread:$0]  %s1452, 128, %s1449, %s1438
        $region76: #{tpu_custom_call.1} parent=47 // pred_fallthru
          _
      $region48: #{tpu_custom_call.1} parent=5 // pred_fallthru
        _
      %p1455 = scmp.le.s32.totalorder 2, %s24
      // Predicated region
      $region77: #{tpu_custom_call.1} parent=5 // pred_check
        %p1456 = pneg %p1455
      $region78: #{tpu_custom_call.1} parent=5 // pred_check_branch
        %1458 = sbr.rel (%p1456) target = $region80
      $region79: #{tpu_custom_call.1} parent=5 // pred_region
        %s1459 = ssub.s32 %s24, 2
        // Predicated region
        $region81: #{tpu_custom_call.1} parent=79 // pred_check
          %p1460 = pneg %p210
        $region82: #{tpu_custom_call.1} parent=79 // pred_check_branch
          %1462 = sbr.rel (%p1460) target = $region84
        $region83: #{tpu_custom_call.1} parent=79 // pred_region
          %s1463 = sand.u32 %s195, 1
          %s1464 = scalar_lea.sflag [#allocation4], %s1463
          %s1465 = sand.u32 %s195, 1
          %s1466 = smul.addr %s1465, 8
          %s1467 = scalar_lea.vmem [#allocation13], %s1466
          %1468 = dma.done %s1464, 128
        $region84: #{tpu_custom_call.1} parent=79 // pred_fallthru
          _
      $region80: #{tpu_custom_call.1} parent=5 // pred_fallthru
        _
    $region6: #{tpu_custom_call.1} parent=1 // loop_footer
      %s28 = sadd.s32 1, %s24
    $region7: #{tpu_custom_call.1} parent=1 // loop_footer_branch
      %23 = sbr.rel target = $region3
    $region8: #{tpu_custom_call.1} parent=1 // loop_exit
      _
    %1469 = vsyncpa [#allocation3], 1
    %s1470 = scalar_lea.sflag [#allocation3], 1
    %1471 = vsyncpa %s1470, 1
    %1472 = vsyncpa [#allocation6], 1
    %s1473 = scalar_lea.sflag [#allocation6], 1
    %1474 = vsyncpa %s1473, 1
    %1475 = vsyncpa [#allocation9], 1
    %1476 = vsyncpa [#allocation12], 1
    %1477 = vsyncpa [#allocation4], 1
    %s1478 = scalar_lea.sflag [#allocation4], 1
    %1479 = vsyncpa %s1478, 1

</llo_original>
